<compile_context>
chip_gen: v6e
topology: v6e:2x2x1
jax: 0.10.0
libtpu: 0.0.40
codegen_flags: <defaults>
</compile_context>

<pallas_src>
import functools
import math

import jax
import jax.numpy as jnp
from jax import lax
from jax.experimental import pallas as pl
from jax.experimental.pallas import tpu as pltpu


def _attention_kernel(x_ref, wqkv_ref, bqkv_ref, wproj_ref, bproj_ref, o_ref,
                      y_scr, *, n_head, block_b, mask_value):
    """One grid step = `block_b` batch elements, fully fused attention.

    x_ref:     (block_b, T, C)   bf16 input tile
    wqkv_ref:  (C, 3C)           c_attn weight, (in, out) layout, q cols pre-scaled
    bqkv_ref:  (1, 3C)  f32      c_attn bias, q part pre-scaled
    wproj_ref: (C, C)            c_proj weight, (in, out) layout
    bproj_ref: (1, C)   f32
    o_ref:     (block_b, T, C)   output tile (original input dtype)
    y_scr:     (block_b*T, C)    VMEM scratch holding concat-free head outputs
    """
    bt, T, C = x_ref.shape
    hd = C // n_head
    M = bt * T
    cdtype = x_ref.dtype

    x2 = x_ref[...].reshape(M, C)                      # free leading-dim reshape

    # Fused QKV projection (one big MXU matmul, f32 accumulation).
    qkv = jnp.dot(x2, wqkv_ref[...], preferred_element_type=jnp.float32)
    qkv = (qkv + bqkv_ref[...]).astype(cdtype)         # (M, 3C), bf16 for the MXU

    # Causal mask, built once per grid step and shared across heads/batch rows.
    row = lax.broadcasted_iota(jnp.int32, (T, T), 0)
    col = lax.broadcasted_iota(jnp.int32, (T, T), 1)
    causal = row >= col

    # Per (batch, head) attention.  n_head/block_b are static -> fully unrolled.
    # NOTE: q/k/v are static lane slices (hd-wide) of the lane-dense qkv; their
    # results are written straight into y_scr so no concatenate/relayout occurs.
    for b in range(block_b):
        r0 = b * T
        for h in range(n_head):
            q = qkv[r0:r0 + T, h * hd:(h + 1) * hd]
            k = qkv[r0:r0 + T, C + h * hd:C + (h + 1) * hd]
            v = qkv[r0:r0 + T, 2 * C + h * hd:2 * C + (h + 1) * hd]

            # q @ k^T (scale already folded into W_q on the host); f32 scores.
            att = lax.dot_general(q, k, (((1,), (1,)), ((), ())),
                                  preferred_element_type=jnp.float32)
            # mask_value is safe because `att` stays f32 here; do NOT reuse it
            # for bf16 score tensors (it would overflow to -inf).
            att = jnp.where(causal, att, mask_value)

            # Numerically-stable softmax; 1/l normalization deferred to yh.
            m = jnp.max(att, axis=-1, keepdims=True)
            p = jnp.exp(att - m)                        # unnormalized, in [0, 1]
            l = jnp.sum(p, axis=-1, keepdims=True)

            yh = jnp.dot(p.astype(cdtype), v, preferred_element_type=jnp.float32)
            yh = yh * pl.reciprocal(l, approx=True)     # (T, hd) on the EUP slot

            y_scr[r0:r0 + T, h * hd:(h + 1) * hd] = yh.astype(y_scr.dtype)

    # Output projection from the lane-dense scratch (full-K MXU matmul).
    out = jnp.dot(y_scr[...], wproj_ref[...], preferred_element_type=jnp.float32)
    out = out + bproj_ref[...]
    o_ref[...] = out.reshape(bt, T, C).astype(o_ref.dtype)


def _pick_block_b(B, T_pad, max_rows=512):
    """Pack batch elements per grid step so projections see M = bt*T_pad rows."""
    candidates = [bt for bt in range(1, B + 1)
                  if B % bt == 0 and bt * T_pad <= max_rows]
    if not candidates:
        return 1
    # Keep >= 2 grid steps when possible (pipelining / 2nd TensorCore work).
    multi = [bt for bt in candidates if B // bt >= 2]
    return max(multi) if multi else max(candidates)


def _vmem_estimate_bytes(bt, T_pad, C, compute_bytes, out_bytes):
    M = bt * T_pad
    io = 2 * M * C * compute_bytes + 2 * M * C * out_bytes      # x/out, 2 buffers
    weights = 2 * (3 * C * C + C * C) * compute_bytes + 2 * 4 * C * 4
    scratch = M * C * compute_bytes                             # y_scr
    temps = (M * 3 * C * (4 + compute_bytes)                    # qkv f32 + bf16
             + 3 * T_pad * T_pad * 4                            # att / p / mask
             + M * C * 4)                                       # out f32
    return io + weights + scratch + temps


@functools.partial(jax.jit, static_argnames=("n_head", "block_b", "compute_dtype"))
def causal_self_attention(x, w_attn, b_attn, w_proj, b_proj, *, n_head,
                          block_b=None, compute_dtype=jnp.bfloat16):
    """x: (B, T, C). w_attn: (C, 3C), b_attn: (3C,), w_proj: (C, C), b_proj: (C,).

    Weights are stored (in_features, out_features), i.e. transposed relative to
    PyTorch's nn.Linear.weight layout.  Matmuls run with `compute_dtype`
    operands (default bf16) and f32 accumulation; output keeps x.dtype.
    """
    B, T, C = x.shape
    assert C % n_head == 0, "n_embd must be divisible by n_head"
    hd = C // n_head

    # Pad the sequence to the compute dtype's sublane multiple.
    cbytes = jnp.dtype(compute_dtype).itemsize
    sublane = {4: 8, 2: 16, 1: 32}[cbytes]
    T_pad = pl.cdiv(T, sublane) * sublane

    bt = _pick_block_b(B, T_pad) if block_b is None else block_b
    assert B % bt == 0, "block_b must divide the batch size"

    # Fold 1/sqrt(hd) into the q columns of the QKV weight/bias (zero kernel cost).
    scale = 1.0 / math.sqrt(hd)
    w_attn = w_attn.at[:, :C].multiply(scale)
    b_attn = b_attn.at[:C].multiply(scale)

    xp = x if T_pad == T else jnp.pad(x, ((0, 0), (0, T_pad - T), (0, 0)))
    xp = xp.astype(compute_dtype)
    w_attn_c = w_attn.astype(compute_dtype)
    w_proj_c = w_proj.astype(compute_dtype)
    b_attn2 = b_attn.reshape(1, 3 * C).astype(jnp.float32)   # added to f32 accum
    b_proj2 = b_proj.reshape(1, C).astype(jnp.float32)

    kernel = functools.partial(_attention_kernel, n_head=n_head, block_b=bt,
                               mask_value=-1e30)

    # Advisory cost estimate for the XLA scheduler.
    flops = int(B * (8 * T_pad * C * C + 4 * T_pad * T_pad * C))
    transcendentals = int(B * n_head * T_pad * T_pad)
    bytes_accessed = int(xp.size * cbytes + B * T_pad * C * x.dtype.itemsize
                         + (3 * C * C + C * C) * cbytes + 4 * C * 4)
    cost = pl.CostEstimate(flops=flops, transcendentals=transcendentals,
                           bytes_accessed=bytes_accessed)

    # Computed VMEM budget (2x headroom), never below the common 32 MiB default
    # and never above 100 MiB.  TODO(synk): if this exceeds ~48 MiB the kernel
    # should switch to the flash-style tiling noted above (v7x has 64 MiB VMEM).
    est = _vmem_estimate_bytes(bt, T_pad, C, cbytes, x.dtype.itemsize)
    vmem_limit = int(min(max(2 * est, 32 * 1024 * 1024), 100 * 1024 * 1024))

    grid_spec = pltpu.PrefetchScalarGridSpec(
        num_scalar_prefetch=0,
        grid=(B // bt,),
        in_specs=[
            pl.BlockSpec((bt, T_pad, C), lambda i: (i, 0, 0)),   # x tile
            pl.BlockSpec((C, 3 * C), lambda i: (0, 0)),          # W_qkv (resident)
            pl.BlockSpec((1, 3 * C), lambda i: (0, 0)),          # b_qkv
            pl.BlockSpec((C, C), lambda i: (0, 0)),              # W_proj
            pl.BlockSpec((1, C), lambda i: (0, 0)),              # b_proj
        ],
        out_specs=pl.BlockSpec((bt, T_pad, C), lambda i: (i, 0, 0)),
        scratch_shapes=[pltpu.VMEM((bt * T_pad, C), compute_dtype)],  # head outs
    )

    out = pl.pallas_call(
        kernel,
        out_shape=jax.ShapeDtypeStruct((B, T_pad, C), x.dtype),
        grid_spec=grid_spec,
        compiler_params=pltpu.CompilerParams(
            dimension_semantics=("parallel",),
            vmem_limit_bytes=vmem_limit,
        ),
        cost_estimate=cost,
    )(xp, w_attn_c, b_attn2, w_proj_c, b_proj2)

    return out[:, :T, :]


def _init_params(key, n_embd, dtype=jnp.float32):
    """Deterministic init mimicking nn.Linear's uniform(-1/sqrt(fan_in), +)."""
    k1, k2, k3, k4 = jax.random.split(key, 4)
    lim = 1.0 / math.sqrt(n_embd)
    # Stored as (in_features, out_features) == PyTorch weight.T
    w_attn = jax.random.uniform(k1, (n_embd, 3 * n_embd), dtype, -lim, lim)
    b_attn = jax.random.uniform(k2, (3 * n_embd,), dtype, -lim, lim)
    w_proj = jax.random.uniform(k3, (n_embd, n_embd), dtype, -lim, lim)
    b_proj = jax.random.uniform(k4, (n_embd,), dtype, -lim, lim)
    return w_attn, b_attn, w_proj, b_proj


def _attention_ref(x, w_attn, b_attn, w_proj, b_proj, n_head):
    """Pure-JAX (f32) mirror of the PyTorch CausalSelfAttention.forward."""
    B, T, C = x.shape
    hd = C // n_head
    qkv = x @ w_attn + b_attn
    q, k, v = jnp.split(qkv, 3, axis=-1)
    q = q.reshape(B, T, n_head, hd).transpose(0, 2, 1, 3)
    k = k.reshape(B, T, n_head, hd).transpose(0, 2, 1, 3)
    v = v.reshape(B, T, n_head, hd).transpose(0, 2, 1, 3)
    att = jnp.einsum("bhqd,bhkd->bhqk", q, k) * (1.0 / math.sqrt(hd))
    mask = jnp.tril(jnp.ones((T, T), dtype=bool))
    att = jnp.where(mask[None, None], att, -jnp.inf)
    att = jax.nn.softmax(att, axis=-1)
    y = jnp.einsum("bhqk,bhkd->bhqd", att, v)
    y = y.transpose(0, 2, 1, 3).reshape(B, T, C)
    return y @ w_proj + b_proj


if __name__ == "__main__":
    key = jax.random.PRNGKey(0)
    kx, kp = jax.random.split(key)

    # Small, TPU-friendly demo shapes: lane-dense C=128, T multiple of 16 (bf16).
    batch, seq, n_embd, n_head = 4, 64, 128, 4
    x = jax.random.normal(kx, (batch, seq, n_embd), dtype=jnp.float32)
    w_attn, b_attn, w_proj, b_proj = _init_params(kp, n_embd)

    y = causal_self_attention(x, w_attn, b_attn, w_proj, b_proj, n_head=n_head)
    y = jax.block_until_ready(y)

    y_ref = _attention_ref(x, w_attn, b_attn, w_proj, b_proj, n_head)
    assert y.shape == (batch, seq, n_embd)
    # Tolerance is set for bf16 MXU operands (f32 accumulation); an all-f32 run
    # (compute_dtype=jnp.float32) matches the reference to ~1e-6.
    rel_err = jnp.linalg.norm(y - y_ref) / (jnp.linalg.norm(y_ref) + 1e-12)
    assert float(rel_err) < 2e-2, f"mismatch vs reference: rel_err={rel_err}"

    print("KERNEL_OK")
</pallas_src>

<mosaic_0001>
module attributes {stable_mosaic.version = 11 : i64} {
  func.func @_attention_kernel(%arg0: i32, %arg1: memref<2x64x128xbf16, #tpu.memory_space<vmem>>, %arg2: memref<128x384xbf16, #tpu.memory_space<vmem>>, %arg3: memref<1x384xf32, #tpu.memory_space<vmem>>, %arg4: memref<128x128xbf16, #tpu.memory_space<vmem>>, %arg5: memref<1x128xf32, #tpu.memory_space<vmem>>, %arg6: memref<2x64x128xf32, #tpu.memory_space<vmem>>, %arg7: memref<128x128xbf16, #tpu.memory_space<vmem>>) attributes {dimension_semantics = [#tpu.dimension_semantics<parallel>], iteration_bounds = array<i64: 2>, scalar_prefetch = 0 : i64, scratch_operands = 1 : i64, tpu.core_type = #tpu.core_type<tc>, window_params = [{transform_indices = @transform_0, window_bounds = array<i64: 2, 64, 128>}, {pipeline_mode = #tpu.pipeline_mode<synchronous>, transform_indices = @transform_1, window_bounds = array<i64: 128, 384>}, {pipeline_mode = #tpu.pipeline_mode<synchronous>, transform_indices = @transform_2, window_bounds = array<i64: 1, 384>}, {pipeline_mode = #tpu.pipeline_mode<synchronous>, transform_indices = @transform_3, window_bounds = array<i64: 128, 128>}, {pipeline_mode = #tpu.pipeline_mode<synchronous>, transform_indices = @transform_4, window_bounds = array<i64: 1, 128>}, {transform_indices = @transform_5, window_bounds = array<i64: 2, 64, 128>}]} {
    %c0 = arith.constant 0 : index
    %c0_0 = arith.constant 0 : index
    %c0_1 = arith.constant 0 : index
    %0 = vector.load %arg1[%c0, %c0_0, %c0_1] : memref<2x64x128xbf16, #tpu.memory_space<vmem>>, vector<2x64x128xbf16>
    %1 = vector.shape_cast %0 : vector<2x64x128xbf16> to vector<128x128xbf16>
    %c0_2 = arith.constant 0 : index
    %c0_3 = arith.constant 0 : index
    %2 = vector.load %arg2[%c0_2, %c0_3] : memref<128x384xbf16, #tpu.memory_space<vmem>>, vector<128x384xbf16>
    %cst = arith.constant dense<0.000000e+00> : vector<128x384xf32>
    %3 = tpu.matmul %1, %2, %cst {dimension_numbers = #tpu.dot_dimension_numbers<[1], [0], [0], [1], [0, 0, 1, 1], [], []>} : vector<128x128xbf16>, vector<128x384xbf16>, vector<128x384xf32> -> vector<128x384xf32>
    %c0_4 = arith.constant 0 : index
    %c0_5 = arith.constant 0 : index
    %4 = vector.load %arg3[%c0_4, %c0_5] : memref<1x384xf32, #tpu.memory_space<vmem>>, vector<1x384xf32>
    %5 = vector.broadcast %4 : vector<1x384xf32> to vector<128x384xf32>
    %6 = arith.addf %3, %5 : vector<128x384xf32>
    %7 = arith.truncf %6 : vector<128x384xf32> to vector<128x384xbf16>
    %8 = tpu.iota {dimensions = array<i32: 0>} : vector<64x64xi32>
    %9 = tpu.iota {dimensions = array<i32: 1>} : vector<64x64xi32>
    %10 = arith.cmpi sge, %8, %9 : vector<64x64xi32>
    %11 = vector.extract_strided_slice %7 {offsets = [0, 0], sizes = [64, 32], strides = [1, 1]} : vector<128x384xbf16> to vector<64x32xbf16>
    %12 = vector.extract_strided_slice %7 {offsets = [0, 128], sizes = [64, 32], strides = [1, 1]} : vector<128x384xbf16> to vector<64x32xbf16>
    %13 = vector.extract_strided_slice %7 {offsets = [0, 256], sizes = [64, 32], strides = [1, 1]} : vector<128x384xbf16> to vector<64x32xbf16>
    %cst_6 = arith.constant dense<0.000000e+00> : vector<64x64xf32>
    %14 = tpu.matmul %11, %12, %cst_6 {dimension_numbers = #tpu.dot_dimension_numbers<[1], [1], [0], [0], [0, 0, 1, 0], [], []>} : vector<64x32xbf16>, vector<64x32xbf16>, vector<64x64xf32> -> vector<64x64xf32>
    %cst_7 = arith.constant -1.000000e+30 : f32
    %15 = vector.broadcast %cst_7 : f32 to vector<64x64xf32>
    %16 = arith.select %10, %14, %15 : vector<64x64xi1>, vector<64x64xf32>
    %cst_8 = arith.constant dense<0xFF800000> : vector<64xf32>
    %17 = vector.multi_reduction <maximumf>, %16, %cst_8 [1] : vector<64x64xf32> to vector<64xf32>
    %18 = vector.shape_cast %17 : vector<64xf32> to vector<64x1xf32>
    %19 = vector.broadcast %18 : vector<64x1xf32> to vector<64x64xf32>
    %20 = arith.subf %16, %19 : vector<64x64xf32>
    %21 = math.exp %20 : vector<64x64xf32>
    %cst_9 = arith.constant dense<0.000000e+00> : vector<64xf32>
    %22 = vector.multi_reduction <add>, %21, %cst_9 [1] : vector<64x64xf32> to vector<64xf32>
    %23 = vector.shape_cast %22 : vector<64xf32> to vector<64x1xf32>
    %24 = arith.truncf %21 : vector<64x64xf32> to vector<64x64xbf16>
    %cst_10 = arith.constant dense<0.000000e+00> : vector<64x32xf32>
    %25 = tpu.matmul %24, %13, %cst_10 {dimension_numbers = #tpu.dot_dimension_numbers<[1], [0], [0], [1], [0, 0, 1, 1], [], []>} : vector<64x64xbf16>, vector<64x32xbf16>, vector<64x32xf32> -> vector<64x32xf32>
    %26 = tpu.reciprocal %23 {approx = true} : vector<64x1xf32> -> vector<64x1xf32>
    %27 = vector.broadcast %26 : vector<64x1xf32> to vector<64x32xf32>
    %28 = arith.mulf %25, %27 : vector<64x32xf32>
    %29 = arith.truncf %28 : vector<64x32xf32> to vector<64x32xbf16>
    %c0_11 = arith.constant 0 : index
    %c0_12 = arith.constant 0 : index
    %30 = vector.load %arg7[%c0_11, %c0_12] : memref<128x128xbf16, #tpu.memory_space<vmem>>, vector<64x32xbf16>
    tpu.vector_store %arg7[%c0_11, %c0_12], %29 {strides = array<i32>} : memref<128x128xbf16, #tpu.memory_space<vmem>>, vector<64x32xbf16>,
    %31 = vector.extract_strided_slice %7 {offsets = [0, 32], sizes = [64, 32], strides = [1, 1]} : vector<128x384xbf16> to vector<64x32xbf16>
    %32 = vector.extract_strided_slice %7 {offsets = [0, 160], sizes = [64, 32], strides = [1, 1]} : vector<128x384xbf16> to vector<64x32xbf16>
    %33 = vector.extract_strided_slice %7 {offsets = [0, 288], sizes = [64, 32], strides = [1, 1]} : vector<128x384xbf16> to vector<64x32xbf16>
    %cst_13 = arith.constant dense<0.000000e+00> : vector<64x64xf32>
    %34 = tpu.matmul %31, %32, %cst_13 {dimension_numbers = #tpu.dot_dimension_numbers<[1], [1], [0], [0], [0, 0, 1, 0], [], []>} : vector<64x32xbf16>, vector<64x32xbf16>, vector<64x64xf32> -> vector<64x64xf32>
    %cst_14 = arith.constant -1.000000e+30 : f32
    %35 = vector.broadcast %cst_14 : f32 to vector<64x64xf32>
    %36 = arith.select %10, %34, %35 : vector<64x64xi1>, vector<64x64xf32>
    %cst_15 = arith.constant dense<0xFF800000> : vector<64xf32>
    %37 = vector.multi_reduction <maximumf>, %36, %cst_15 [1] : vector<64x64xf32> to vector<64xf32>
    %38 = vector.shape_cast %37 : vector<64xf32> to vector<64x1xf32>
    %39 = vector.broadcast %38 : vector<64x1xf32> to vector<64x64xf32>
    %40 = arith.subf %36, %39 : vector<64x64xf32>
    %41 = math.exp %40 : vector<64x64xf32>
    %cst_16 = arith.constant dense<0.000000e+00> : vector<64xf32>
    %42 = vector.multi_reduction <add>, %41, %cst_16 [1] : vector<64x64xf32> to vector<64xf32>
    %43 = vector.shape_cast %42 : vector<64xf32> to vector<64x1xf32>
    %44 = arith.truncf %41 : vector<64x64xf32> to vector<64x64xbf16>
    %cst_17 = arith.constant dense<0.000000e+00> : vector<64x32xf32>
    %45 = tpu.matmul %44, %33, %cst_17 {dimension_numbers = #tpu.dot_dimension_numbers<[1], [0], [0], [1], [0, 0, 1, 1], [], []>} : vector<64x64xbf16>, vector<64x32xbf16>, vector<64x32xf32> -> vector<64x32xf32>
    %46 = tpu.reciprocal %43 {approx = true} : vector<64x1xf32> -> vector<64x1xf32>
    %47 = vector.broadcast %46 : vector<64x1xf32> to vector<64x32xf32>
    %48 = arith.mulf %45, %47 : vector<64x32xf32>
    %49 = arith.truncf %48 : vector<64x32xf32> to vector<64x32xbf16>
    %c0_18 = arith.constant 0 : index
    %c32 = arith.constant 32 : index
    %50 = vector.load %arg7[%c0_18, %c32] : memref<128x128xbf16, #tpu.memory_space<vmem>>, vector<64x32xbf16>
    tpu.vector_store %arg7[%c0_18, %c32], %49 {strides = array<i32>} : memref<128x128xbf16, #tpu.memory_space<vmem>>, vector<64x32xbf16>,
    %51 = vector.extract_strided_slice %7 {offsets = [0, 64], sizes = [64, 32], strides = [1, 1]} : vector<128x384xbf16> to vector<64x32xbf16>
    %52 = vector.extract_strided_slice %7 {offsets = [0, 192], sizes = [64, 32], strides = [1, 1]} : vector<128x384xbf16> to vector<64x32xbf16>
    %53 = vector.extract_strided_slice %7 {offsets = [0, 320], sizes = [64, 32], strides = [1, 1]} : vector<128x384xbf16> to vector<64x32xbf16>
    %cst_19 = arith.constant dense<0.000000e+00> : vector<64x64xf32>
    %54 = tpu.matmul %51, %52, %cst_19 {dimension_numbers = #tpu.dot_dimension_numbers<[1], [1], [0], [0], [0, 0, 1, 0], [], []>} : vector<64x32xbf16>, vector<64x32xbf16>, vector<64x64xf32> -> vector<64x64xf32>
    %cst_20 = arith.constant -1.000000e+30 : f32
    %55 = vector.broadcast %cst_20 : f32 to vector<64x64xf32>
    %56 = arith.select %10, %54, %55 : vector<64x64xi1>, vector<64x64xf32>
    %cst_21 = arith.constant dense<0xFF800000> : vector<64xf32>
    %57 = vector.multi_reduction <maximumf>, %56, %cst_21 [1] : vector<64x64xf32> to vector<64xf32>
    %58 = vector.shape_cast %57 : vector<64xf32> to vector<64x1xf32>
    %59 = vector.broadcast %58 : vector<64x1xf32> to vector<64x64xf32>
    %60 = arith.subf %56, %59 : vector<64x64xf32>
    %61 = math.exp %60 : vector<64x64xf32>
    %cst_22 = arith.constant dense<0.000000e+00> : vector<64xf32>
    %62 = vector.multi_reduction <add>, %61, %cst_22 [1] : vector<64x64xf32> to vector<64xf32>
    %63 = vector.shape_cast %62 : vector<64xf32> to vector<64x1xf32>
    %64 = arith.truncf %61 : vector<64x64xf32> to vector<64x64xbf16>
    %cst_23 = arith.constant dense<0.000000e+00> : vector<64x32xf32>
    %65 = tpu.matmul %64, %53, %cst_23 {dimension_numbers = #tpu.dot_dimension_numbers<[1], [0], [0], [1], [0, 0, 1, 1], [], []>} : vector<64x64xbf16>, vector<64x32xbf16>, vector<64x32xf32> -> vector<64x32xf32>
    %66 = tpu.reciprocal %63 {approx = true} : vector<64x1xf32> -> vector<64x1xf32>
    %67 = vector.broadcast %66 : vector<64x1xf32> to vector<64x32xf32>
    %68 = arith.mulf %65, %67 : vector<64x32xf32>
    %69 = arith.truncf %68 : vector<64x32xf32> to vector<64x32xbf16>
    %c0_24 = arith.constant 0 : index
    %c64 = arith.constant 64 : index
    %70 = vector.load %arg7[%c0_24, %c64] : memref<128x128xbf16, #tpu.memory_space<vmem>>, vector<64x32xbf16>
    tpu.vector_store %arg7[%c0_24, %c64], %69 {strides = array<i32>} : memref<128x128xbf16, #tpu.memory_space<vmem>>, vector<64x32xbf16>,
    %71 = vector.extract_strided_slice %7 {offsets = [0, 96], sizes = [64, 32], strides = [1, 1]} : vector<128x384xbf16> to vector<64x32xbf16>
    %72 = vector.extract_strided_slice %7 {offsets = [0, 224], sizes = [64, 32], strides = [1, 1]} : vector<128x384xbf16> to vector<64x32xbf16>
    %73 = vector.extract_strided_slice %7 {offsets = [0, 352], sizes = [64, 32], strides = [1, 1]} : vector<128x384xbf16> to vector<64x32xbf16>
    %cst_25 = arith.constant dense<0.000000e+00> : vector<64x64xf32>
    %74 = tpu.matmul %71, %72, %cst_25 {dimension_numbers = #tpu.dot_dimension_numbers<[1], [1], [0], [0], [0, 0, 1, 0], [], []>} : vector<64x32xbf16>, vector<64x32xbf16>, vector<64x64xf32> -> vector<64x64xf32>
    %cst_26 = arith.constant -1.000000e+30 : f32
    %75 = vector.broadcast %cst_26 : f32 to vector<64x64xf32>
    %76 = arith.select %10, %74, %75 : vector<64x64xi1>, vector<64x64xf32>
    %cst_27 = arith.constant dense<0xFF800000> : vector<64xf32>
    %77 = vector.multi_reduction <maximumf>, %76, %cst_27 [1] : vector<64x64xf32> to vector<64xf32>
    %78 = vector.shape_cast %77 : vector<64xf32> to vector<64x1xf32>
    %79 = vector.broadcast %78 : vector<64x1xf32> to vector<64x64xf32>
    %80 = arith.subf %76, %79 : vector<64x64xf32>
    %81 = math.exp %80 : vector<64x64xf32>
    %cst_28 = arith.constant dense<0.000000e+00> : vector<64xf32>
    %82 = vector.multi_reduction <add>, %81, %cst_28 [1] : vector<64x64xf32> to vector<64xf32>
    %83 = vector.shape_cast %82 : vector<64xf32> to vector<64x1xf32>
    %84 = arith.truncf %81 : vector<64x64xf32> to vector<64x64xbf16>
    %cst_29 = arith.constant dense<0.000000e+00> : vector<64x32xf32>
    %85 = tpu.matmul %84, %73, %cst_29 {dimension_numbers = #tpu.dot_dimension_numbers<[1], [0], [0], [1], [0, 0, 1, 1], [], []>} : vector<64x64xbf16>, vector<64x32xbf16>, vector<64x32xf32> -> vector<64x32xf32>
    %86 = tpu.reciprocal %83 {approx = true} : vector<64x1xf32> -> vector<64x1xf32>
    %87 = vector.broadcast %86 : vector<64x1xf32> to vector<64x32xf32>
    %88 = arith.mulf %85, %87 : vector<64x32xf32>
    %89 = arith.truncf %88 : vector<64x32xf32> to vector<64x32xbf16>
    %c0_30 = arith.constant 0 : index
    %c96 = arith.constant 96 : index
    %90 = vector.load %arg7[%c0_30, %c96] : memref<128x128xbf16, #tpu.memory_space<vmem>>, vector<64x32xbf16>
    tpu.vector_store %arg7[%c0_30, %c96], %89 {strides = array<i32>} : memref<128x128xbf16, #tpu.memory_space<vmem>>, vector<64x32xbf16>,
    %91 = vector.extract_strided_slice %7 {offsets = [64, 0], sizes = [64, 32], strides = [1, 1]} : vector<128x384xbf16> to vector<64x32xbf16>
    %92 = vector.extract_strided_slice %7 {offsets = [64, 128], sizes = [64, 32], strides = [1, 1]} : vector<128x384xbf16> to vector<64x32xbf16>
    %93 = vector.extract_strided_slice %7 {offsets = [64, 256], sizes = [64, 32], strides = [1, 1]} : vector<128x384xbf16> to vector<64x32xbf16>
    %cst_31 = arith.constant dense<0.000000e+00> : vector<64x64xf32>
    %94 = tpu.matmul %91, %92, %cst_31 {dimension_numbers = #tpu.dot_dimension_numbers<[1], [1], [0], [0], [0, 0, 1, 0], [], []>} : vector<64x32xbf16>, vector<64x32xbf16>, vector<64x64xf32> -> vector<64x64xf32>
    %cst_32 = arith.constant -1.000000e+30 : f32
    %95 = vector.broadcast %cst_32 : f32 to vector<64x64xf32>
    %96 = arith.select %10, %94, %95 : vector<64x64xi1>, vector<64x64xf32>
    %cst_33 = arith.constant dense<0xFF800000> : vector<64xf32>
    %97 = vector.multi_reduction <maximumf>, %96, %cst_33 [1] : vector<64x64xf32> to vector<64xf32>
    %98 = vector.shape_cast %97 : vector<64xf32> to vector<64x1xf32>
    %99 = vector.broadcast %98 : vector<64x1xf32> to vector<64x64xf32>
    %100 = arith.subf %96, %99 : vector<64x64xf32>
    %101 = math.exp %100 : vector<64x64xf32>
    %cst_34 = arith.constant dense<0.000000e+00> : vector<64xf32>
    %102 = vector.multi_reduction <add>, %101, %cst_34 [1] : vector<64x64xf32> to vector<64xf32>
    %103 = vector.shape_cast %102 : vector<64xf32> to vector<64x1xf32>
    %104 = arith.truncf %101 : vector<64x64xf32> to vector<64x64xbf16>
    %cst_35 = arith.constant dense<0.000000e+00> : vector<64x32xf32>
    %105 = tpu.matmul %104, %93, %cst_35 {dimension_numbers = #tpu.dot_dimension_numbers<[1], [0], [0], [1], [0, 0, 1, 1], [], []>} : vector<64x64xbf16>, vector<64x32xbf16>, vector<64x32xf32> -> vector<64x32xf32>
    %106 = tpu.reciprocal %103 {approx = true} : vector<64x1xf32> -> vector<64x1xf32>
    %107 = vector.broadcast %106 : vector<64x1xf32> to vector<64x32xf32>
    %108 = arith.mulf %105, %107 : vector<64x32xf32>
    %109 = arith.truncf %108 : vector<64x32xf32> to vector<64x32xbf16>
    %c64_36 = arith.constant 64 : index
    %c0_37 = arith.constant 0 : index
    %110 = vector.load %arg7[%c64_36, %c0_37] : memref<128x128xbf16, #tpu.memory_space<vmem>>, vector<64x32xbf16>
    tpu.vector_store %arg7[%c64_36, %c0_37], %109 {strides = array<i32>} : memref<128x128xbf16, #tpu.memory_space<vmem>>, vector<64x32xbf16>,
    %111 = vector.extract_strided_slice %7 {offsets = [64, 32], sizes = [64, 32], strides = [1, 1]} : vector<128x384xbf16> to vector<64x32xbf16>
    %112 = vector.extract_strided_slice %7 {offsets = [64, 160], sizes = [64, 32], strides = [1, 1]} : vector<128x384xbf16> to vector<64x32xbf16>
    %113 = vector.extract_strided_slice %7 {offsets = [64, 288], sizes = [64, 32], strides = [1, 1]} : vector<128x384xbf16> to vector<64x32xbf16>
    %cst_38 = arith.constant dense<0.000000e+00> : vector<64x64xf32>
    %114 = tpu.matmul %111, %112, %cst_38 {dimension_numbers = #tpu.dot_dimension_numbers<[1], [1], [0], [0], [0, 0, 1, 0], [], []>} : vector<64x32xbf16>, vector<64x32xbf16>, vector<64x64xf32> -> vector<64x64xf32>
    %cst_39 = arith.constant -1.000000e+30 : f32
    %115 = vector.broadcast %cst_39 : f32 to vector<64x64xf32>
    %116 = arith.select %10, %114, %115 : vector<64x64xi1>, vector<64x64xf32>
    %cst_40 = arith.constant dense<0xFF800000> : vector<64xf32>
    %117 = vector.multi_reduction <maximumf>, %116, %cst_40 [1] : vector<64x64xf32> to vector<64xf32>
    %118 = vector.shape_cast %117 : vector<64xf32> to vector<64x1xf32>
    %119 = vector.broadcast %118 : vector<64x1xf32> to vector<64x64xf32>
    %120 = arith.subf %116, %119 : vector<64x64xf32>
    %121 = math.exp %120 : vector<64x64xf32>
    %cst_41 = arith.constant dense<0.000000e+00> : vector<64xf32>
    %122 = vector.multi_reduction <add>, %121, %cst_41 [1] : vector<64x64xf32> to vector<64xf32>
    %123 = vector.shape_cast %122 : vector<64xf32> to vector<64x1xf32>
    %124 = arith.truncf %121 : vector<64x64xf32> to vector<64x64xbf16>
    %cst_42 = arith.constant dense<0.000000e+00> : vector<64x32xf32>
    %125 = tpu.matmul %124, %113, %cst_42 {dimension_numbers = #tpu.dot_dimension_numbers<[1], [0], [0], [1], [0, 0, 1, 1], [], []>} : vector<64x64xbf16>, vector<64x32xbf16>, vector<64x32xf32> -> vector<64x32xf32>
    %126 = tpu.reciprocal %123 {approx = true} : vector<64x1xf32> -> vector<64x1xf32>
    %127 = vector.broadcast %126 : vector<64x1xf32> to vector<64x32xf32>
    %128 = arith.mulf %125, %127 : vector<64x32xf32>
    %129 = arith.truncf %128 : vector<64x32xf32> to vector<64x32xbf16>
    %c64_43 = arith.constant 64 : index
    %c32_44 = arith.constant 32 : index
    %130 = vector.load %arg7[%c64_43, %c32_44] : memref<128x128xbf16, #tpu.memory_space<vmem>>, vector<64x32xbf16>
    tpu.vector_store %arg7[%c64_43, %c32_44], %129 {strides = array<i32>} : memref<128x128xbf16, #tpu.memory_space<vmem>>, vector<64x32xbf16>,
    %131 = vector.extract_strided_slice %7 {offsets = [64, 64], sizes = [64, 32], strides = [1, 1]} : vector<128x384xbf16> to vector<64x32xbf16>
    %132 = vector.extract_strided_slice %7 {offsets = [64, 192], sizes = [64, 32], strides = [1, 1]} : vector<128x384xbf16> to vector<64x32xbf16>
    %133 = vector.extract_strided_slice %7 {offsets = [64, 320], sizes = [64, 32], strides = [1, 1]} : vector<128x384xbf16> to vector<64x32xbf16>
    %cst_45 = arith.constant dense<0.000000e+00> : vector<64x64xf32>
    %134 = tpu.matmul %131, %132, %cst_45 {dimension_numbers = #tpu.dot_dimension_numbers<[1], [1], [0], [0], [0, 0, 1, 0], [], []>} : vector<64x32xbf16>, vector<64x32xbf16>, vector<64x64xf32> -> vector<64x64xf32>
    %cst_46 = arith.constant -1.000000e+30 : f32
    %135 = vector.broadcast %cst_46 : f32 to vector<64x64xf32>
    %136 = arith.select %10, %134, %135 : vector<64x64xi1>, vector<64x64xf32>
    %cst_47 = arith.constant dense<0xFF800000> : vector<64xf32>
    %137 = vector.multi_reduction <maximumf>, %136, %cst_47 [1] : vector<64x64xf32> to vector<64xf32>
    %138 = vector.shape_cast %137 : vector<64xf32> to vector<64x1xf32>
    %139 = vector.broadcast %138 : vector<64x1xf32> to vector<64x64xf32>
    %140 = arith.subf %136, %139 : vector<64x64xf32>
    %141 = math.exp %140 : vector<64x64xf32>
    %cst_48 = arith.constant dense<0.000000e+00> : vector<64xf32>
    %142 = vector.multi_reduction <add>, %141, %cst_48 [1] : vector<64x64xf32> to vector<64xf32>
    %143 = vector.shape_cast %142 : vector<64xf32> to vector<64x1xf32>
    %144 = arith.truncf %141 : vector<64x64xf32> to vector<64x64xbf16>
    %cst_49 = arith.constant dense<0.000000e+00> : vector<64x32xf32>
    %145 = tpu.matmul %144, %133, %cst_49 {dimension_numbers = #tpu.dot_dimension_numbers<[1], [0], [0], [1], [0, 0, 1, 1], [], []>} : vector<64x64xbf16>, vector<64x32xbf16>, vector<64x32xf32> -> vector<64x32xf32>
    %146 = tpu.reciprocal %143 {approx = true} : vector<64x1xf32> -> vector<64x1xf32>
    %147 = vector.broadcast %146 : vector<64x1xf32> to vector<64x32xf32>
    %148 = arith.mulf %145, %147 : vector<64x32xf32>
    %149 = arith.truncf %148 : vector<64x32xf32> to vector<64x32xbf16>
    %c64_50 = arith.constant 64 : index
    %c64_51 = arith.constant 64 : index
    %150 = vector.load %arg7[%c64_50, %c64_51] : memref<128x128xbf16, #tpu.memory_space<vmem>>, vector<64x32xbf16>
    tpu.vector_store %arg7[%c64_50, %c64_51], %149 {strides = array<i32>} : memref<128x128xbf16, #tpu.memory_space<vmem>>, vector<64x32xbf16>,
    %151 = vector.extract_strided_slice %7 {offsets = [64, 96], sizes = [64, 32], strides = [1, 1]} : vector<128x384xbf16> to vector<64x32xbf16>
    %152 = vector.extract_strided_slice %7 {offsets = [64, 224], sizes = [64, 32], strides = [1, 1]} : vector<128x384xbf16> to vector<64x32xbf16>
    %153 = vector.extract_strided_slice %7 {offsets = [64, 352], sizes = [64, 32], strides = [1, 1]} : vector<128x384xbf16> to vector<64x32xbf16>
    %cst_52 = arith.constant dense<0.000000e+00> : vector<64x64xf32>
    %154 = tpu.matmul %151, %152, %cst_52 {dimension_numbers = #tpu.dot_dimension_numbers<[1], [1], [0], [0], [0, 0, 1, 0], [], []>} : vector<64x32xbf16>, vector<64x32xbf16>, vector<64x64xf32> -> vector<64x64xf32>
    %cst_53 = arith.constant -1.000000e+30 : f32
    %155 = vector.broadcast %cst_53 : f32 to vector<64x64xf32>
    %156 = arith.select %10, %154, %155 : vector<64x64xi1>, vector<64x64xf32>
    %cst_54 = arith.constant dense<0xFF800000> : vector<64xf32>
    %157 = vector.multi_reduction <maximumf>, %156, %cst_54 [1] : vector<64x64xf32> to vector<64xf32>
    %158 = vector.shape_cast %157 : vector<64xf32> to vector<64x1xf32>
    %159 = vector.broadcast %158 : vector<64x1xf32> to vector<64x64xf32>
    %160 = arith.subf %156, %159 : vector<64x64xf32>
    %161 = math.exp %160 : vector<64x64xf32>
    %cst_55 = arith.constant dense<0.000000e+00> : vector<64xf32>
    %162 = vector.multi_reduction <add>, %161, %cst_55 [1] : vector<64x64xf32> to vector<64xf32>
    %163 = vector.shape_cast %162 : vector<64xf32> to vector<64x1xf32>
    %164 = arith.truncf %161 : vector<64x64xf32> to vector<64x64xbf16>
    %cst_56 = arith.constant dense<0.000000e+00> : vector<64x32xf32>
    %165 = tpu.matmul %164, %153, %cst_56 {dimension_numbers = #tpu.dot_dimension_numbers<[1], [0], [0], [1], [0, 0, 1, 1], [], []>} : vector<64x64xbf16>, vector<64x32xbf16>, vector<64x32xf32> -> vector<64x32xf32>
    %166 = tpu.reciprocal %163 {approx = true} : vector<64x1xf32> -> vector<64x1xf32>
    %167 = vector.broadcast %166 : vector<64x1xf32> to vector<64x32xf32>
    %168 = arith.mulf %165, %167 : vector<64x32xf32>
    %169 = arith.truncf %168 : vector<64x32xf32> to vector<64x32xbf16>
    %c64_57 = arith.constant 64 : index
    %c96_58 = arith.constant 96 : index
    %170 = vector.load %arg7[%c64_57, %c96_58] : memref<128x128xbf16, #tpu.memory_space<vmem>>, vector<64x32xbf16>
    tpu.vector_store %arg7[%c64_57, %c96_58], %169 {strides = array<i32>} : memref<128x128xbf16, #tpu.memory_space<vmem>>, vector<64x32xbf16>,
    %c0_59 = arith.constant 0 : index
    %c0_60 = arith.constant 0 : index
    %171 = vector.load %arg7[%c0_59, %c0_60] : memref<128x128xbf16, #tpu.memory_space<vmem>>, vector<128x128xbf16>
    %c0_61 = arith.constant 0 : index
    %c0_62 = arith.constant 0 : index
    %172 = vector.load %arg4[%c0_61, %c0_62] : memref<128x128xbf16, #tpu.memory_space<vmem>>, vector<128x128xbf16>
    %cst_63 = arith.constant dense<0.000000e+00> : vector<128x128xf32>
    %173 = tpu.matmul %171, %172, %cst_63 {dimension_numbers = #tpu.dot_dimension_numbers<[1], [0], [0], [1], [0, 0, 1, 1], [], []>} : vector<128x128xbf16>, vector<128x128xbf16>, vector<128x128xf32> -> vector<128x128xf32>
    %c0_64 = arith.constant 0 : index
    %c0_65 = arith.constant 0 : index
    %174 = vector.load %arg5[%c0_64, %c0_65] : memref<1x128xf32, #tpu.memory_space<vmem>>, vector<1x128xf32>
    %175 = vector.broadcast %174 : vector<1x128xf32> to vector<128x128xf32>
    %176 = arith.addf %173, %175 : vector<128x128xf32>
    %177 = vector.shape_cast %176 : vector<128x128xf32> to vector<2x64x128xf32>
    %c0_66 = arith.constant 0 : index
    %c0_67 = arith.constant 0 : index
    %c0_68 = arith.constant 0 : index
    %178 = vector.load %arg6[%c0_66, %c0_67, %c0_68] : memref<2x64x128xf32, #tpu.memory_space<vmem>>, vector<2x64x128xf32>
    tpu.vector_store %arg6[%c0_66, %c0_67, %c0_68], %177 {strides = array<i32>} : memref<2x64x128xf32, #tpu.memory_space<vmem>>, vector<2x64x128xf32>,
    return
  }
  func.func @transform_0(%arg0: i32) -> (i32, i32, i32) {
    %c0_i32 = arith.constant 0 : i32
    %c0_i32_0 = arith.constant 0 : i32
    %c0_i32_1 = arith.constant 0 : i32
    return %arg0, %c0_i32, %c0_i32_0 : i32, i32, i32
  }
  func.func @transform_1(%arg0: i32) -> (i32, i32) {
    %c0_i32 = arith.constant 0 : i32
    %c0_i32_0 = arith.constant 0 : i32
    %c0_i32_1 = arith.constant 0 : i32
    return %c0_i32, %c0_i32_0 : i32, i32
  }
  func.func @transform_2(%arg0: i32) -> (i32, i32) {
    %c0_i32 = arith.constant 0 : i32
    %c0_i32_0 = arith.constant 0 : i32
    %c0_i32_1 = arith.constant 0 : i32
    return %c0_i32, %c0_i32_0 : i32, i32
  }
  func.func @transform_3(%arg0: i32) -> (i32, i32) {
    %c0_i32 = arith.constant 0 : i32
    %c0_i32_0 = arith.constant 0 : i32
    %c0_i32_1 = arith.constant 0 : i32
    return %c0_i32, %c0_i32_0 : i32, i32
  }
  func.func @transform_4(%arg0: i32) -> (i32, i32) {
    %c0_i32 = arith.constant 0 : i32
    %c0_i32_0 = arith.constant 0 : i32
    %c0_i32_1 = arith.constant 0 : i32
    return %c0_i32, %c0_i32_0 : i32, i32
  }
  func.func @transform_5(%arg0: i32) -> (i32, i32, i32) {
    %c0_i32 = arith.constant 0 : i32
    %c0_i32_0 = arith.constant 0 : i32
    %c0_i32_1 = arith.constant 0 : i32
    return %arg0, %c0_i32, %c0_i32_0 : i32, i32, i32
  }
}

</mosaic_0001>

<llo_original>
// kernel: causal_self_attention.1
$region0: #{causal_self_attention.1}
  #allocation0 [shape = 'u32[]', space=smem, size = 0x4, offset = 0x4, fixed_abs, tag = 'smem constant byte address 0x4 - core index']
  #allocation1 [shape = 'u32[144,128]{1,0:T(1,128)}', space=vmem, size = 0x12000, scoped, tag = 'internal scratch']
  #allocation2 [shape = 'bf16[128,128]{1,0:T(8,128)(2,1)}', space=vmem, size = 0x8000, scoped, tag = 'scratch operand']
  %s0 = inlined_call_operand.vmem [shape: bf16[4,64,128], index: 0, kind: input, shape index: {}]
  %s1 = inlined_call_operand.vmem [shape: bf16[128,384], index: 1, kind: input, shape index: {}]
  %s2 = inlined_call_operand.vmem [shape: f32[1,384], index: 2, kind: input, shape index: {}]
  %s3 = inlined_call_operand.vmem [shape: bf16[128,128], index: 3, kind: input, shape index: {}]
  %s4 = inlined_call_operand.vmem [shape: f32[1,128], index: 4, kind: input, shape index: {}]
  %s5 = inlined_call_operand.hbm [shape: f32[4,64,128], index: 5, kind: output, shape index: {}]
  %s6 = sld [smem:[#allocation0]]
  $region53: #{causal_self_attention.1} parent=0
    _
  %s8 = ssub.s32 1, %s6
  %s9 = scalar_select 0, %s8, %s6
  $region1: #{causal_self_attention.1} parent=0
    #allocation3 [shape = 'u8[131072]{0}', space=vmem, size = 0x20000, scoped, tag = 'output window, operand 0']
    #allocation4 [shape = 's32[2]{0}', space=sflag, size = 0x8, scoped, tag = 'scoped memory for causal_self_attention.1']
    %10 = vsyncpa [#allocation4], 0
    %s11 = scalar_lea.sflag [#allocation4], 1
    %12 = vsyncpa %s11, 0
    loop: start=0, step=1, limit=4
    $region2: #{causal_self_attention.1} parent=1 // loop_pre_header
      _
    $region3: #{causal_self_attention.1} parent=1 // loop_header
      %s14 = sphi 0, %s18
      %p15 = scmp.ge.s32.totalorder %s14, 4
      %s24 = sphi 0, %s26
      %s27 = sphi 0, %s24
      %s28 = sphi 0, %s27
      %s44 = sphi 0, %s28
      %s48 = sphi 0, %s48
      %s50 = sphi 0, %s48
      %s51 = sphi 0, %s50
      %s65 = sphi 0, %s51
      %s69 = sphi 0, %s69
      %s71 = sphi 0, %s69
      %s72 = sphi 0, %s71
      %s86 = sphi 0, %s72
      %s90 = sphi 0, %s90
      %s92 = sphi 0, %s90
      %s93 = sphi 0, %s92
      %s107 = sphi 0, %s93
      %s111 = sphi 0, %s111
      %s113 = sphi 0, %s111
      %s114 = sphi 0, %s113
      %s128 = sphi 0, %s114
      %s134 = sphi 0, %s136
      %s137 = sphi 0, %s134
      %s138 = sphi 0, %s137
      %s154 = sphi 0, %s138
    $region4: #{causal_self_attention.1} parent=1 // loop_header_branch
      %17 = sbr.rel (%p15) target = $region8
    $region5: #{causal_self_attention.1} parent=1 // loop_body
      %s19 = ssub.s32 %s14, 1
      %s20 = ssub.s32 %s14, 2
      %s21 = sadd.s32 %s14, 1
      %s22 = ssub.s32 %s14, %s21
      %p23 = scmp.eq.s32.totalorder %s22, 0
      %s25 = sadd.s32 %s24, 1
      %s26 = scalar_select %p23, %s24, %s25
      %p29 = pneg %p23
      %p30 = scmp.eq.s32.totalorder %s14, 1
      %p31 = por %p29, %p30
      %p32 = scmp.ne.s32.totalorder %s24, %s27
      %p33 = scmp.eq.s32.totalorder %s14, 0
      %p34 = por %p32, %p33
      %p35 = scmp.ne.s32.totalorder %s24, %s27
      %p36 = scmp.eq.s32.totalorder %s19, 1
      %p37 = por %p35, %p36
      %p38 = scmp.ne.s32.totalorder %s27, %s28
      %p39 = scmp.eq.s32.totalorder %s19, 0
      %p40 = por %p38, %p39
      %p41 = scmp.ne.s32.totalorder %s27, %s28
      %p42 = scmp.eq.s32.totalorder %s20, 1
      %p43 = por %p41, %p42
      %p45 = scmp.ne.s32.totalorder %s28, %s44
      %p46 = scmp.eq.s32.totalorder %s20, 0
      %p47 = por %p45, %p46
      %s49 = sadd.s32 %s48, 1
      %p52 = scmp.eq.s32.totalorder %s14, 1
      %p53 = scmp.ne.s32.totalorder %s48, %s50
      %p54 = scmp.eq.s32.totalorder %s14, 0
      %p55 = por %p53, %p54
      %p56 = scmp.ne.s32.totalorder %s48, %s50
      %p57 = scmp.eq.s32.totalorder %s19, 1
      %p58 = por %p56, %p57
      %p59 = scmp.ne.s32.totalorder %s50, %s51
      %p60 = scmp.eq.s32.totalorder %s19, 0
      %p61 = por %p59, %p60
      %p62 = scmp.ne.s32.totalorder %s50, %s51
      %p63 = scmp.eq.s32.totalorder %s20, 1
      %p64 = por %p62, %p63
      %p66 = scmp.ne.s32.totalorder %s51, %s65
      %p67 = scmp.eq.s32.totalorder %s20, 0
      %p68 = por %p66, %p67
      %s70 = sadd.s32 %s69, 1
      %p73 = scmp.eq.s32.totalorder %s14, 1
      %p74 = scmp.ne.s32.totalorder %s69, %s71
      %p75 = scmp.eq.s32.totalorder %s14, 0
      %p76 = por %p74, %p75
      %p77 = scmp.ne.s32.totalorder %s69, %s71
      %p78 = scmp.eq.s32.totalorder %s19, 1
      %p79 = por %p77, %p78
      %p80 = scmp.ne.s32.totalorder %s71, %s72
      %p81 = scmp.eq.s32.totalorder %s19, 0
      %p82 = por %p80, %p81
      %p83 = scmp.ne.s32.totalorder %s71, %s72
      %p84 = scmp.eq.s32.totalorder %s20, 1
      %p85 = por %p83, %p84
      %p87 = scmp.ne.s32.totalorder %s72, %s86
      %p88 = scmp.eq.s32.totalorder %s20, 0
      %p89 = por %p87, %p88
      %s91 = sadd.s32 %s90, 1
      %p94 = scmp.eq.s32.totalorder %s14, 1
      %p95 = scmp.ne.s32.totalorder %s90, %s92
      %p96 = scmp.eq.s32.totalorder %s14, 0
      %p97 = por %p95, %p96
      %p98 = scmp.ne.s32.totalorder %s90, %s92
      %p99 = scmp.eq.s32.totalorder %s19, 1
      %p100 = por %p98, %p99
      %p101 = scmp.ne.s32.totalorder %s92, %s93
      %p102 = scmp.eq.s32.totalorder %s19, 0
      %p103 = por %p101, %p102
      %p104 = scmp.ne.s32.totalorder %s92, %s93
      %p105 = scmp.eq.s32.totalorder %s20, 1
      %p106 = por %p104, %p105
      %p108 = scmp.ne.s32.totalorder %s93, %s107
      %p109 = scmp.eq.s32.totalorder %s20, 0
      %p110 = por %p108, %p109
      %s112 = sadd.s32 %s111, 1
      %p115 = scmp.eq.s32.totalorder %s14, 1
      %p116 = scmp.ne.s32.totalorder %s111, %s113
      %p117 = scmp.eq.s32.totalorder %s14, 0
      %p118 = por %p116, %p117
      %p119 = scmp.ne.s32.totalorder %s111, %s113
      %p120 = scmp.eq.s32.totalorder %s19, 1
      %p121 = por %p119, %p120
      %p122 = scmp.ne.s32.totalorder %s113, %s114
      %p123 = scmp.eq.s32.totalorder %s19, 0
      %p124 = por %p122, %p123
      %p125 = scmp.ne.s32.totalorder %s113, %s114
      %p126 = scmp.eq.s32.totalorder %s20, 1
      %p127 = por %p125, %p126
      %p129 = scmp.ne.s32.totalorder %s114, %s128
      %p130 = scmp.eq.s32.totalorder %s20, 0
      %p131 = por %p129, %p130
      %s132 = ssub.s32 %s14, %s21
      %p133 = scmp.eq.s32.totalorder %s132, 0
      %s135 = sadd.s32 %s134, 1
      %s136 = scalar_select %p133, %s134, %s135
      %p139 = pneg %p133
      %p140 = scmp.eq.s32.totalorder %s14, 1
      %p141 = por %p139, %p140
      %p142 = scmp.ne.s32.totalorder %s134, %s137
      %p143 = scmp.eq.s32.totalorder %s14, 0
      %p144 = por %p142, %p143
      %p145 = scmp.ne.s32.totalorder %s134, %s137
      %p146 = scmp.eq.s32.totalorder %s19, 1
      %p147 = por %p145, %p146
      %p148 = scmp.ne.s32.totalorder %s137, %s138
      %p149 = scmp.eq.s32.totalorder %s19, 0
      %p150 = por %p148, %p149
      %p151 = scmp.ne.s32.totalorder %s137, %s138
      %p152 = scmp.eq.s32.totalorder %s20, 1
      %p153 = por %p151, %p152
      %p155 = scmp.ne.s32.totalorder %s138, %s154
      %p156 = scmp.eq.s32.totalorder %s20, 0
      %p157 = por %p155, %p156
      %p158 = scmp.le.s32.totalorder 1, %s14
      %p159 = scmp.lt.s32.totalorder %s14, 3
      %p160 = pnand %p158, %p159
      %p161 = pneg %p160
      // Predicated region
      $region9: #{causal_self_attention.1} parent=5 // pred_check
        _
      $region10: #{causal_self_attention.1} parent=5 // pred_check_branch
        %163 = sbr.rel (%p160) target = $region12
      $region11: #{causal_self_attention.1} parent=5 // pred_region
        %s164 = ssub.s32 %s14, 1
        // Predicated region
        $region13: #{causal_self_attention.1} parent=11 // pred_check
          %p165 = pneg %p61
        $region14: #{causal_self_attention.1} parent=11 // pred_check_branch
          %167 = sbr.rel (%p165) target = $region16
        $region15: #{causal_self_attention.1} parent=11 // pred_region
          _
        $region16: #{causal_self_attention.1} parent=11 // pred_fallthru
          _
        // Predicated region
        $region17: #{causal_self_attention.1} parent=11 // pred_check
          %p168 = pneg %p82
        $region18: #{causal_self_attention.1} parent=11 // pred_check_branch
          %170 = sbr.rel (%p168) target = $region20
        $region19: #{causal_self_attention.1} parent=11 // pred_region
          _
        $region20: #{causal_self_attention.1} parent=11 // pred_fallthru
          _
        // Predicated region
        $region21: #{causal_self_attention.1} parent=11 // pred_check
          %p171 = pneg %p103
        $region22: #{causal_self_attention.1} parent=11 // pred_check_branch
          %173 = sbr.rel (%p171) target = $region24
        $region23: #{causal_self_attention.1} parent=11 // pred_region
          _
        $region24: #{causal_self_attention.1} parent=11 // pred_fallthru
          _
        // Predicated region
        $region25: #{causal_self_attention.1} parent=11 // pred_check
          %p174 = pneg %p124
        $region26: #{causal_self_attention.1} parent=11 // pred_check_branch
          %176 = sbr.rel (%p174) target = $region28
        $region27: #{causal_self_attention.1} parent=11 // pred_region
          _
        $region28: #{causal_self_attention.1} parent=11 // pred_fallthru
          _
      $region12: #{causal_self_attention.1} parent=5 // pred_fallthru
        _
      %p177 = scmp.lt.s32.totalorder %s14, 2
      // Predicated region
      $region29: #{causal_self_attention.1} parent=5 // pred_check
        %p178 = pneg %p177
      $region30: #{causal_self_attention.1} parent=5 // pred_check_branch
        %180 = sbr.rel (%p178) target = $region32
      $region31: #{causal_self_attention.1} parent=5 // pred_region
        // Predicated region
        $region33: #{causal_self_attention.1} parent=31 // pred_check
          %p181 = pneg %p34
        $region34: #{causal_self_attention.1} parent=31 // pred_check_branch
          %183 = sbr.rel (%p181) target = $region36
        $region35: #{causal_self_attention.1} parent=31 // pred_region
          %s184 = smul.u32 2, %s14
          %p185 = scmp.lt.s32.totalorder %s184, 3
          %s186 = scalar_select %p185, %s184, 3
          %s187 = smul.addr %s186, 8
          %s188 = smul.addr %s187, 4
          %s189 = scalar_lea.vmem %s0, %s188
          %s190 = smul.u32 2, %s14
        $region36: #{causal_self_attention.1} parent=31 // pred_fallthru
          _
      $region32: #{causal_self_attention.1} parent=5 // pred_fallthru
        _
      %p191 = scmp.le.s32.totalorder 1, %s14
      %p192 = scmp.lt.s32.totalorder %s14, 3
      %p193 = pnand %p191, %p192
      %p194 = pneg %p193
      // Predicated region
      $region37: #{causal_self_attention.1} parent=5 // pred_check
        _
      $region38: #{causal_self_attention.1} parent=5 // pred_check_branch
        %196 = sbr.rel (%p193) target = $region40
      $region39: #{causal_self_attention.1} parent=5 // pred_region
        %s197 = ssub.s32 %s14, 1
        %s198 = smul.u32 2, %s19
        %p199 = scmp.lt.s32.totalorder %s198, 3
        %s200 = scalar_select %p199, %s198, 3
        %s201 = smul.addr %s200, 8
        %s202 = smul.addr %s201, 4
        %s203 = scalar_lea.vmem %s0, %s202
        %p204 = pneg %p40
        %p205 = pneg %p37
        %p206 = pneg %p61
        %p207 = pneg %p58
        %p208 = pneg %p82
        %p209 = pneg %p79
        %p210 = pneg %p103
        %p211 = pneg %p100
        %p212 = pneg %p124
        %p213 = pneg %p121
        %p214 = pneg %p150
        %p215 = pneg %p147
        %s216 = sand.u32 %s137, 1
        %s217 = scalar_lea.sflag [#allocation4], %s216
        %s218 = sand.u32 %s137, 1
        %s219 = smul.addr %s218, 128
        %s220 = scalar_lea.vmem [#allocation3], %s219
        %s221 = smul.u32 2, %s19
        %p222 = scmp.lt.s32.totalorder %s221, 3
        %s223 = scalar_select %p222, %s221, 3
        %s224 = smul.addr %s223, 8
        %s225 = smul.addr %s224, 4
        %s226 = scalar_lea.vmem %s0, %s225
        %s227 = smul.u32 2, %s19
        %s228 = smul.u32 2, %s19
        %v230 = vld [vmem:[%s226] sm:$0xf]
        %v231 = vld [vmem:[%s226 + $0x4] sm:$0xf]
        %v232 = vld [vmem:[%s226 + $0x8] sm:$0xf]
        %v233 = vld [vmem:[%s226 + $0xc] sm:$0xf]
        %v234 = vld [vmem:[%s226 + $0x10] sm:$0xf]
        %v235 = vld [vmem:[%s226 + $0x14] sm:$0xf]
        %v236 = vld [vmem:[%s226 + $0x18] sm:$0xf]
        %v237 = vld [vmem:[%s226 + $0x1c] sm:$0xf]
        %v238 = vld [vmem:[%s226 + $0x20] sm:$0xf]
        %v239 = vld [vmem:[%s226 + $0x24] sm:$0xf]
        %v240 = vld [vmem:[%s226 + $0x28] sm:$0xf]
        %v241 = vld [vmem:[%s226 + $0x2c] sm:$0xf]
        %v242 = vld [vmem:[%s226 + $0x30] sm:$0xf]
        %v243 = vld [vmem:[%s226 + $0x34] sm:$0xf]
        %v244 = vld [vmem:[%s226 + $0x38] sm:$0xf]
        %v245 = vld [vmem:[%s226 + $0x3c] sm:$0xf]
        %v246 = vld [vmem:[%s1] sm:$0xff]
        %v247 = vld [vmem:[%s1 + $0x8] sm:$0xf]
        %v248 = vld [vmem:[%s1 + $0xc] sm:$0xff]
        %v249 = vld [vmem:[%s1 + $0x14] sm:$0xf]
        %v250 = vld [vmem:[%s1 + $0x18] sm:$0xff]
        %v251 = vld [vmem:[%s1 + $0x20] sm:$0xf]
        %v252 = vld [vmem:[%s1 + $0x24] sm:$0xff]
        %v253 = vld [vmem:[%s1 + $0x2c] sm:$0xf]
        %v254 = vld [vmem:[%s1 + $0x30] sm:$0xff]
        %v255 = vld [vmem:[%s1 + $0x38] sm:$0xf]
        %v256 = vld [vmem:[%s1 + $0x3c] sm:$0xff]
        %v257 = vld [vmem:[%s1 + $0x44] sm:$0xf]
        %v258 = vld [vmem:[%s1 + $0x48] sm:$0xff]
        %v259 = vld [vmem:[%s1 + $0x50] sm:$0xf]
        %v260 = vld [vmem:[%s1 + $0x54] sm:$0xff]
        %v261 = vld [vmem:[%s1 + $0x5c] sm:$0xf]
        %v262 = vld [vmem:[%s1 + $0x60] sm:$0xff]
        %v263 = vld [vmem:[%s1 + $0x68] sm:$0xf]
        %v264 = vld [vmem:[%s1 + $0x6c] sm:$0xff]
        %v265 = vld [vmem:[%s1 + $0x74] sm:$0xf]
        %v266 = vld [vmem:[%s1 + $0x78] sm:$0xff]
        %v267 = vld [vmem:[%s1 + $0x80] sm:$0xf]
        %v268 = vld [vmem:[%s1 + $0x84] sm:$0xff]
        %v269 = vld [vmem:[%s1 + $0x8c] sm:$0xf]
        %v270 = vld [vmem:[%s1 + $0x90] sm:$0xff]
        %v271 = vld [vmem:[%s1 + $0x98] sm:$0xf]
        %v272 = vld [vmem:[%s1 + $0x9c] sm:$0xff]
        %v273 = vld [vmem:[%s1 + $0xa4] sm:$0xf]
        %v274 = vld [vmem:[%s1 + $0xa8] sm:$0xff]
        %v275 = vld [vmem:[%s1 + $0xb0] sm:$0xf]
        %v276 = vld [vmem:[%s1 + $0xb4] sm:$0xff]
        %v277 = vld [vmem:[%s1 + $0xbc] sm:$0xf]
        %v278 = vld [vmem:[%s2] sm:$0x7]
        %v280 = vlaneseq
        %v281 = vshrl.u32 %v280, 7
        %v282 = vsub.s32 0, %v281
        %v283 = vrot.slane %v278, %v282
        %v284 = vlaneseq
        %v285 = vshrl.u32 %v284, 7
        %v286 = vsub.s32 1, %v285
        %v287 = vrot.slane %v278, %v286
        %v288 = vlaneseq
        %v289 = vshrl.u32 %v288, 7
        %v290 = vsub.s32 2, %v289
        %v291 = vrot.slane %v278, %v290
        %v311 = vunpack.c.l.b16 %v230
        %v312 = vunpack.c.l.b16 %v231
        %v313 = vunpack.c.l.b16 %v232
        %v314 = vunpack.c.l.b16 %v233
        %v315 = vunpack.c.l.b16 %v234
        %v316 = vunpack.c.l.b16 %v235
        %v317 = vunpack.c.l.b16 %v236
        %v318 = vunpack.c.l.b16 %v237
        %v319 = vunpack.c.l.b16 %v238
        %v320 = vunpack.c.l.b16 %v239
        %v321 = vunpack.c.l.b16 %v240
        %v322 = vunpack.c.l.b16 %v241
        %v323 = vunpack.c.l.b16 %v242
        %v324 = vunpack.c.l.b16 %v243
        %v325 = vunpack.c.l.b16 %v244
        %v326 = vunpack.c.l.b16 %v245
        %v327 = vpack.c.b16 %v312, %v311
        %v328 = vpack.c.b16 %v314, %v313
        %v329 = vpack.c.b16 %v316, %v315
        %v330 = vpack.c.b16 %v318, %v317
        %v331 = vpack.c.b16 %v320, %v319
        %v332 = vpack.c.b16 %v322, %v321
        %v333 = vpack.c.b16 %v324, %v323
        %v334 = vpack.c.b16 %v326, %v325
        %v375 = vunpack.c.l.b16 %v246
        %v376 = vunpack.c.h.b16 %v246
        %v377 = vunpack.c.l.b16 %v247
        %v378 = vunpack.c.l.b16 %v248
        %v379 = vunpack.c.h.b16 %v248
        %v380 = vunpack.c.l.b16 %v249
        %v381 = vunpack.c.l.b16 %v250
        %v382 = vunpack.c.h.b16 %v250
        %v383 = vunpack.c.l.b16 %v251
        %v384 = vunpack.c.l.b16 %v252
        %v385 = vunpack.c.h.b16 %v252
        %v386 = vunpack.c.l.b16 %v253
        %v387 = vunpack.c.l.b16 %v254
        %v388 = vunpack.c.h.b16 %v254
        %v389 = vunpack.c.l.b16 %v255
        %v390 = vunpack.c.l.b16 %v256
        %v391 = vunpack.c.h.b16 %v256
        %v392 = vunpack.c.l.b16 %v257
        %v393 = vunpack.c.l.b16 %v258
        %v394 = vunpack.c.h.b16 %v258
        %v395 = vunpack.c.l.b16 %v259
        %v396 = vunpack.c.l.b16 %v260
        %v397 = vunpack.c.h.b16 %v260
        %v398 = vunpack.c.l.b16 %v261
        %v399 = vunpack.c.l.b16 %v262
        %v400 = vunpack.c.h.b16 %v262
        %v401 = vunpack.c.l.b16 %v263
        %v402 = vunpack.c.l.b16 %v264
        %v403 = vunpack.c.h.b16 %v264
        %v404 = vunpack.c.l.b16 %v265
        %v405 = vunpack.c.l.b16 %v266
        %v406 = vunpack.c.h.b16 %v266
        %v407 = vunpack.c.l.b16 %v267
        %v408 = vunpack.c.l.b16 %v268
        %v409 = vunpack.c.h.b16 %v268
        %v410 = vunpack.c.l.b16 %v269
        %v411 = vunpack.c.l.b16 %v270
        %v412 = vunpack.c.h.b16 %v270
        %v413 = vunpack.c.l.b16 %v271
        %v414 = vunpack.c.l.b16 %v272
        %v415 = vunpack.c.h.b16 %v272
        %v416 = vunpack.c.l.b16 %v273
        %v417 = vunpack.c.l.b16 %v274
        %v418 = vunpack.c.h.b16 %v274
        %v419 = vunpack.c.l.b16 %v275
        %v420 = vunpack.c.l.b16 %v276
        %v421 = vunpack.c.h.b16 %v276
        %v422 = vunpack.c.l.b16 %v277
        %v423 = vpack.c.b16 %v378, %v375
        %v424 = vpack.c.b16 %v379, %v376
        %v425 = vpack.c.b16 %v380, %v377
        %v426 = vpack.c.b16 %v384, %v381
        %v427 = vpack.c.b16 %v385, %v382
        %v428 = vpack.c.b16 %v386, %v383
        %v429 = vpack.c.b16 %v390, %v387
        %v430 = vpack.c.b16 %v391, %v388
        %v431 = vpack.c.b16 %v392, %v389
        %v432 = vpack.c.b16 %v396, %v393
        %v433 = vpack.c.b16 %v397, %v394
        %v434 = vpack.c.b16 %v398, %v395
        %v435 = vpack.c.b16 %v402, %v399
        %v436 = vpack.c.b16 %v403, %v400
        %v437 = vpack.c.b16 %v404, %v401
        %v438 = vpack.c.b16 %v408, %v405
        %v439 = vpack.c.b16 %v409, %v406
        %v440 = vpack.c.b16 %v410, %v407
        %v441 = vpack.c.b16 %v414, %v411
        %v442 = vpack.c.b16 %v415, %v412
        %v443 = vpack.c.b16 %v416, %v413
        %v444 = vpack.c.b16 %v420, %v417
        %v445 = vpack.c.b16 %v421, %v418
        %v446 = vpack.c.b16 %v422, %v419
        %471 = vmatprep.subr.bf16.mxu0 %v445
        %472 = vmatpush1.bf16.msra.mxu0 %v444
        %473 = vmatprep.subr.bf16.mxu0 %v442
        %474 = vmatpush1.bf16.msra.mxu0 %v441
        %475 = vmatprep.subr.bf16.mxu0 %v439
        %476 = vmatpush1.bf16.msra.mxu0 %v438
        %477 = vmatprep.subr.bf16.mxu0 %v436
        %478 = vmatpush1.bf16.msra.mxu0 %v435
        %479 = vmatprep.subr.bf16.mxu0 %v433
        %480 = vmatpush1.bf16.msra.mxu0 %v432
        %481 = vmatprep.subr.bf16.mxu0 %v430
        %482 = vmatpush1.bf16.msra.mxu0 %v429
        %483 = vmatprep.subr.bf16.mxu0 %v427
        %484 = vmatpush1.bf16.msra.mxu0 %v426
        %485 = vmatprep.subr.bf16.mxu0 %v424
        %486 = vmatpush1.bf16.msra.mxu0 %v423
        %487 = vmatprep.subr.bf16.mxu0 0
        %488 = vmatpush2.bf16.msra.mxu0 0
        %489 = vmatprep.subr.bf16.mxu0 0
        %490 = vmatpush2.bf16.msra.mxu0 0
        %491 = vmatprep.subr.bf16.mxu0 0
        %492 = vmatpush2.bf16.msra.mxu0 0
        %493 = vmatprep.subr.bf16.mxu0 0
        %494 = vmatpush2.bf16.msra.mxu0 0
        %495 = vmatprep.subr.bf16.mxu0 0
        %496 = vmatpush2.bf16.msra.mxu0 0
        %497 = vmatprep.subr.bf16.mxu0 0
        %498 = vmatpush2.bf16.msra.mxu0 0
        %499 = vmatprep.subr.bf16.mxu0 0
        %500 = vmatpush2.bf16.msra.mxu0 0
        %501 = vmatprep.subr.bf16.mxu0 0
        %502 = vmatpush2.bf16.msra.mxu0 0
        %503 = vmatprep.mubr.bf16.mxu0 0
        %504 = vmatmul.mubr.bf16.gmra.mxu0 %v327
        %v505 = vpop.f32.mrf.mxu0
        %v506 = vadd.f32 %v283, %v505
        %v507 = vpop.f32.mrf.mxu0
        %v508 = vadd.f32 %v287, %v507
        %v509 = vpop.f32.mrf.mxu0
        %v510 = vadd.f32 %v283, %v509
        %v511 = vpop.f32.mrf.mxu0
        %v512 = vadd.f32 %v287, %v511
        %513 = vmatprep.mubr.bf16.mxu0 0
        %514 = vmatmul.mubr.bf16.gmra.mxu0 %v328
        %v515 = vpop.f32.mrf.mxu0
        %v516 = vadd.f32 %v283, %v515
        %v517 = vpop.f32.mrf.mxu0
        %v518 = vadd.f32 %v287, %v517
        %v519 = vpop.f32.mrf.mxu0
        %v520 = vadd.f32 %v283, %v519
        %v521 = vpop.f32.mrf.mxu0
        %v522 = vadd.f32 %v287, %v521
        %523 = vmatprep.mubr.bf16.mxu0 0
        %524 = vmatmul.mubr.bf16.gmra.mxu0 %v329
        %v525 = vpop.f32.mrf.mxu0
        %v526 = vadd.f32 %v283, %v525
        %v527 = vpop.f32.mrf.mxu0
        %v528 = vadd.f32 %v287, %v527
        %v529 = vpop.f32.mrf.mxu0
        %v530 = vadd.f32 %v283, %v529
        %v531 = vpop.f32.mrf.mxu0
        %v532 = vadd.f32 %v287, %v531
        %533 = vmatprep.mubr.bf16.mxu0 0
        %534 = vmatmul.mubr.bf16.gmra.mxu0 %v330
        %v535 = vpop.f32.mrf.mxu0
        %v536 = vadd.f32 %v283, %v535
        %v537 = vpop.f32.mrf.mxu0
        %v538 = vadd.f32 %v287, %v537
        %v539 = vpop.f32.mrf.mxu0
        %v540 = vadd.f32 %v283, %v539
        %v541 = vpop.f32.mrf.mxu0
        %v542 = vadd.f32 %v287, %v541
        %543 = vmatprep.mubr.bf16.mxu0 0
        %544 = vmatmul.mubr.bf16.gmra.mxu0 %v331
        %v545 = vpop.f32.mrf.mxu0
        %v546 = vadd.f32 %v283, %v545
        %v547 = vpop.f32.mrf.mxu0
        %v548 = vadd.f32 %v287, %v547
        %v549 = vpop.f32.mrf.mxu0
        %v550 = vadd.f32 %v283, %v549
        %v551 = vpop.f32.mrf.mxu0
        %v552 = vadd.f32 %v287, %v551
        %553 = vmatprep.mubr.bf16.mxu0 0
        %554 = vmatmul.mubr.bf16.gmra.mxu0 %v332
        %v555 = vpop.f32.mrf.mxu0
        %v556 = vadd.f32 %v283, %v555
        %v557 = vpop.f32.mrf.mxu0
        %v558 = vadd.f32 %v287, %v557
        %v559 = vpop.f32.mrf.mxu0
        %v560 = vadd.f32 %v283, %v559
        %v561 = vpop.f32.mrf.mxu0
        %v562 = vadd.f32 %v287, %v561
        %563 = vmatprep.mubr.bf16.mxu0 0
        %564 = vmatmul.mubr.bf16.gmra.mxu0 %v333
        %v565 = vpop.f32.mrf.mxu0
        %v566 = vadd.f32 %v283, %v565
        %v567 = vpop.f32.mrf.mxu0
        %v568 = vadd.f32 %v287, %v567
        %v569 = vpop.f32.mrf.mxu0
        %v570 = vadd.f32 %v283, %v569
        %v571 = vpop.f32.mrf.mxu0
        %v572 = vadd.f32 %v287, %v571
        %573 = vmatprep.mubr.bf16.mxu0 0
        %574 = vmatmul.mubr.bf16.gmra.mxu0 %v334
        %v575 = vpop.f32.mrf.mxu0
        %v576 = vadd.f32 %v283, %v575
        %v577 = vpop.f32.mrf.mxu0
        %v578 = vadd.f32 %v287, %v577
        %v579 = vpop.f32.mrf.mxu0
        %v580 = vadd.f32 %v283, %v579
        %v581 = vpop.f32.mrf.mxu0
        %v582 = vadd.f32 %v287, %v581
        %583 = vdwg.mxu0
        %584 = vmatprep.subr.bf16.mxu0 0
        %585 = vmatpush1.bf16.msra.mxu0 %v446
        %586 = vmatprep.subr.bf16.mxu0 0
        %587 = vmatpush1.bf16.msra.mxu0 %v443
        %588 = vmatprep.subr.bf16.mxu0 0
        %589 = vmatpush1.bf16.msra.mxu0 %v440
        %590 = vmatprep.subr.bf16.mxu0 0
        %591 = vmatpush1.bf16.msra.mxu0 %v437
        %592 = vmatprep.subr.bf16.mxu0 0
        %593 = vmatpush1.bf16.msra.mxu0 %v434
        %594 = vmatprep.subr.bf16.mxu0 0
        %595 = vmatpush1.bf16.msra.mxu0 %v431
        %596 = vmatprep.subr.bf16.mxu0 0
        %597 = vmatpush1.bf16.msra.mxu0 %v428
        %598 = vmatprep.subr.bf16.mxu0 0
        %599 = vmatpush1.bf16.msra.mxu0 %v425
        %600 = vmatprep.subr.bf16.mxu0 0
        %601 = vmatpush2.bf16.msra.mxu0 0
        %602 = vmatprep.subr.bf16.mxu0 0
        %603 = vmatpush2.bf16.msra.mxu0 0
        %604 = vmatprep.subr.bf16.mxu0 0
        %605 = vmatpush2.bf16.msra.mxu0 0
        %606 = vmatprep.subr.bf16.mxu0 0
        %607 = vmatpush2.bf16.msra.mxu0 0
        %608 = vmatprep.subr.bf16.mxu0 0
        %609 = vmatpush2.bf16.msra.mxu0 0
        %610 = vmatprep.subr.bf16.mxu0 0
        %611 = vmatpush2.bf16.msra.mxu0 0
        %612 = vmatprep.subr.bf16.mxu0 0
        %613 = vmatpush2.bf16.msra.mxu0 0
        %614 = vmatprep.subr.bf16.mxu0 0
        %615 = vmatpush2.bf16.msra.mxu0 0
        %616 = vmatprep.mubr.bf16.mxu0 0
        %617 = vmatmul.mubr.bf16.gmra.mxu0 %v327
        %v618 = vpop.f32.mrf.mxu0
        %v619 = vadd.f32 %v291, %v618
        %v620 = vpop.f32.mrf.mxu0
        %v621 = vpop.f32.mrf.mxu0
        %v622 = vadd.f32 %v291, %v621
        %v623 = vpop.f32.mrf.mxu0
        %624 = vmatprep.mubr.bf16.mxu0 0
        %625 = vmatmul.mubr.bf16.gmra.mxu0 %v328
        %v626 = vpop.f32.mrf.mxu0
        %v627 = vadd.f32 %v291, %v626
        %v628 = vpop.f32.mrf.mxu0
        %v629 = vpop.f32.mrf.mxu0
        %v630 = vadd.f32 %v291, %v629
        %v631 = vpop.f32.mrf.mxu0
        %632 = vmatprep.mubr.bf16.mxu0 0
        %633 = vmatmul.mubr.bf16.gmra.mxu0 %v329
        %v634 = vpop.f32.mrf.mxu0
        %v635 = vadd.f32 %v291, %v634
        %v636 = vpop.f32.mrf.mxu0
        %v637 = vpop.f32.mrf.mxu0
        %v638 = vadd.f32 %v291, %v637
        %v639 = vpop.f32.mrf.mxu0
        %640 = vmatprep.mubr.bf16.mxu0 0
        %641 = vmatmul.mubr.bf16.gmra.mxu0 %v330
        %v642 = vpop.f32.mrf.mxu0
        %v643 = vadd.f32 %v291, %v642
        %v644 = vpop.f32.mrf.mxu0
        %v645 = vpop.f32.mrf.mxu0
        %v646 = vadd.f32 %v291, %v645
        %v647 = vpop.f32.mrf.mxu0
        %648 = vmatprep.mubr.bf16.mxu0 0
        %649 = vmatmul.mubr.bf16.gmra.mxu0 %v331
        %v650 = vpop.f32.mrf.mxu0
        %v651 = vadd.f32 %v291, %v650
        %v652 = vpop.f32.mrf.mxu0
        %v653 = vpop.f32.mrf.mxu0
        %v654 = vadd.f32 %v291, %v653
        %v655 = vpop.f32.mrf.mxu0
        %656 = vmatprep.mubr.bf16.mxu0 0
        %657 = vmatmul.mubr.bf16.gmra.mxu0 %v332
        %v658 = vpop.f32.mrf.mxu0
        %v659 = vadd.f32 %v291, %v658
        %v660 = vpop.f32.mrf.mxu0
        %v661 = vpop.f32.mrf.mxu0
        %v662 = vadd.f32 %v291, %v661
        %v663 = vpop.f32.mrf.mxu0
        %664 = vmatprep.mubr.bf16.mxu0 0
        %665 = vmatmul.mubr.bf16.gmra.mxu0 %v333
        %v666 = vpop.f32.mrf.mxu0
        %v667 = vadd.f32 %v291, %v666
        %v668 = vpop.f32.mrf.mxu0
        %v669 = vpop.f32.mrf.mxu0
        %v670 = vadd.f32 %v291, %v669
        %v671 = vpop.f32.mrf.mxu0
        %672 = vmatprep.mubr.bf16.mxu0 0
        %673 = vmatmul.mubr.bf16.gmra.mxu0 %v334
        %v674 = vpop.f32.mrf.mxu0
        %v675 = vadd.f32 %v291, %v674
        %v676 = vpop.f32.mrf.mxu0
        %v677 = vpop.f32.mrf.mxu0
        %v678 = vadd.f32 %v291, %v677
        %v679 = vpop.f32.mrf.mxu0
        %680 = vdwg.mxu0
        %v681 = vpack.c.bf16 %v510, %v506
        %v682 = vpack.c.bf16 %v512, %v508
        %v683 = vpack.c.bf16 %v622, %v619
        %v684 = vpack.c.bf16 %v520, %v516
        %v685 = vpack.c.bf16 %v522, %v518
        %v686 = vpack.c.bf16 %v630, %v627
        %v687 = vpack.c.bf16 %v530, %v526
        %v688 = vpack.c.bf16 %v532, %v528
        %v689 = vpack.c.bf16 %v638, %v635
        %v690 = vpack.c.bf16 %v540, %v536
        %v691 = vpack.c.bf16 %v542, %v538
        %v692 = vpack.c.bf16 %v646, %v643
        %v693 = vpack.c.bf16 %v550, %v546
        %v694 = vpack.c.bf16 %v552, %v548
        %v695 = vpack.c.bf16 %v654, %v651
        %v696 = vpack.c.bf16 %v560, %v556
        %v697 = vpack.c.bf16 %v562, %v558
        %v698 = vpack.c.bf16 %v662, %v659
        %v699 = vpack.c.bf16 %v570, %v566
        %v700 = vpack.c.bf16 %v572, %v568
        %v701 = vpack.c.bf16 %v670, %v667
        %v702 = vpack.c.bf16 %v580, %v576
        %v703 = vpack.c.bf16 %v582, %v578
        %v704 = vpack.c.bf16 %v678, %v675
        %v705 = vlaneseq
        %v706 = vshrl.u32 %v705, 7
        %v707 = vadd.s32 %v706, 8
        %v708 = vadd.s32 %v706, 16
        %v709 = vadd.s32 %v706, 24
        %v710 = vadd.s32 %v706, 32
        %v711 = vadd.s32 %v706, 40
        %v712 = vadd.s32 %v706, 48
        %v713 = vadd.s32 %v706, 56
        %v714 = vlaneseq
        %v715 = vand.u32 %v714, 127
        %vm716 = vcmp.ge.s32.totalorder %v706, %v715
        %vm717 = vcmp.ge.s32.totalorder %v707, %v715
        %vm718 = vcmp.ge.s32.totalorder %v708, %v715
        %vm719 = vcmp.ge.s32.totalorder %v709, %v715
        %vm720 = vcmp.ge.s32.totalorder %v710, %v715
        %vm721 = vcmp.ge.s32.totalorder %v711, %v715
        %vm722 = vcmp.ge.s32.totalorder %v712, %v715
        %vm723 = vcmp.ge.s32.totalorder %v713, %v715
        %vm724 = vcmask 261120
        %v726 = vsel %vm724, %v681, 0
        %v729 = vsel %vm724, %v684, 0
        %v732 = vsel %vm724, %v687, 0
        %v735 = vsel %vm724, %v690, 0
        %v738 = vsel %vm724, %v682, 0
        %v741 = vsel %vm724, %v685, 0
        %v744 = vsel %vm724, %v688, 0
        %v747 = vsel %vm724, %v691, 0
        %749 = vmatprep.subr.bf16.mxu0 0
        %750 = vmatpush1.bf16.xpose.msra.mxu0 0
        %751 = vmatprep.subr.bf16.mxu0 0
        %752 = vmatpush1.bf16.xpose.msra.mxu0 0
        %753 = vmatprep.subr.bf16.mxu0 0
        %754 = vmatpush1.bf16.xpose.msra.mxu0 0
        %755 = vmatprep.subr.bf16.mxu0 0
        %756 = vmatpush1.bf16.xpose.msra.mxu0 0
        %757 = vmatprep.subr.bf16.mxu0 0
        %758 = vmatpush1.bf16.xpose.msra.mxu0 %v747
        %759 = vmatprep.subr.bf16.mxu0 0
        %760 = vmatpush1.bf16.xpose.msra.mxu0 %v744
        %761 = vmatprep.subr.bf16.mxu0 0
        %762 = vmatpush1.bf16.xpose.msra.mxu0 %v741
        %763 = vmatprep.subr.bf16.mxu0 0
        %764 = vmatpush1.bf16.xpose.msra.mxu0 %v738
        %765 = vmatprep.subr.bf16.mxu0 0
        %766 = vmatpush2.bf16.xpose.msra.mxu0 0
        %767 = vmatprep.subr.bf16.mxu0 0
        %768 = vmatpush2.bf16.xpose.msra.mxu0 0
        %769 = vmatprep.subr.bf16.mxu0 0
        %770 = vmatpush2.bf16.xpose.msra.mxu0 0
        %771 = vmatprep.subr.bf16.mxu0 0
        %772 = vmatpush2.bf16.xpose.msra.mxu0 0
        %773 = vmatprep.subr.bf16.mxu0 0
        %774 = vmatpush2.bf16.xpose.msra.mxu0 0
        %775 = vmatprep.subr.bf16.mxu0 0
        %776 = vmatpush2.bf16.xpose.msra.mxu0 0
        %777 = vmatprep.subr.bf16.mxu0 0
        %778 = vmatpush2.bf16.xpose.msra.mxu0 0
        %779 = vmatprep.subr.bf16.mxu0 0
        %780 = vmatpush2.bf16.xpose.msra.mxu0 0
        %781 = vmatprep.mubr.bf16.mxu0 0
        %782 = vmatmul.mubr.bf16.gmra.mxu0 %v726
        %v783 = vpop.f32.mrf.mxu0
        %v784 = vadd.f32 0.0, %v783
        %v785 = vpop.f32.mrf.mxu0
        %v786 = vpop.f32.mrf.mxu0
        %v787 = vadd.f32 0.0, %v786
        %v788 = vpop.f32.mrf.mxu0
        %789 = vmatprep.mubr.bf16.mxu0 0
        %790 = vmatmul.mubr.bf16.gmra.mxu0 %v729
        %v791 = vpop.f32.mrf.mxu0
        %v792 = vadd.f32 0.0, %v791
        %v793 = vpop.f32.mrf.mxu0
        %v794 = vpop.f32.mrf.mxu0
        %v795 = vadd.f32 0.0, %v794
        %v796 = vpop.f32.mrf.mxu0
        %797 = vmatprep.mubr.bf16.mxu0 0
        %798 = vmatmul.mubr.bf16.gmra.mxu0 %v732
        %v799 = vpop.f32.mrf.mxu0
        %v800 = vadd.f32 0.0, %v799
        %v801 = vpop.f32.mrf.mxu0
        %v802 = vpop.f32.mrf.mxu0
        %v803 = vadd.f32 0.0, %v802
        %v804 = vpop.f32.mrf.mxu0
        %805 = vmatprep.mubr.bf16.mxu0 0
        %806 = vmatmul.mubr.bf16.gmra.mxu0 %v735
        %v807 = vpop.f32.mrf.mxu0
        %v808 = vadd.f32 0.0, %v807
        %v809 = vpop.f32.mrf.mxu0
        %v810 = vpop.f32.mrf.mxu0
        %v811 = vadd.f32 0.0, %v810
        %v812 = vpop.f32.mrf.mxu0
        %813 = vdwg.mxu0
        %v814 = vsel %vm716, %v784, -1e+30
        %v815 = vsel %vm717, %v787, -1e+30
        %v816 = vsel %vm718, %v792, -1e+30
        %v817 = vsel %vm719, %v795, -1e+30
        %v818 = vsel %vm720, %v800, -1e+30
        %v819 = vsel %vm721, %v803, -1e+30
        %v820 = vsel %vm722, %v808, -1e+30
        %v821 = vsel %vm723, %v811, -1e+30
        %vm822 = vcmask 523264
        %v823 = vsel %vm822, %v814, -inf
        %824 = vmax.xlane.f32.xlu0 %v823
        %v825 = vpop.xlane.xlu0 %824
        %v826 = vsel %vm822, %v815, -inf
        %827 = vmax.xlane.f32.xlu0 %v826
        %v828 = vpop.xlane.xlu0 %827
        %v829 = vsel %vm822, %v816, -inf
        %830 = vmax.xlane.f32.xlu0 %v829
        %v831 = vpop.xlane.xlu0 %830
        %v832 = vsel %vm822, %v817, -inf
        %833 = vmax.xlane.f32.xlu0 %v832
        %v834 = vpop.xlane.xlu0 %833
        %v835 = vsel %vm822, %v818, -inf
        %836 = vmax.xlane.f32.xlu0 %v835
        %v837 = vpop.xlane.xlu0 %836
        %v838 = vsel %vm822, %v819, -inf
        %839 = vmax.xlane.f32.xlu0 %v838
        %v840 = vpop.xlane.xlu0 %839
        %v841 = vsel %vm822, %v820, -inf
        %842 = vmax.xlane.f32.xlu0 %v841
        %v843 = vpop.xlane.xlu0 %842
        %v844 = vsel %vm822, %v821, -inf
        %845 = vmax.xlane.f32.xlu0 %v844
        %v846 = vpop.xlane.xlu0 %845
        %v847 = vsub.f32 %v814, %v825
        %v848 = vsub.f32 %v815, %v828
        %v849 = vsub.f32 %v816, %v831
        %v850 = vsub.f32 %v817, %v834
        %v851 = vsub.f32 %v818, %v837
        %v852 = vsub.f32 %v819, %v840
        %v853 = vsub.f32 %v820, %v843
        %v854 = vsub.f32 %v821, %v846
        %v855 = vmul.f32 %v847, 1.442695
        %v856 = vpow.pop %v855
        %v857 = vmul.f32 %v848, 1.442695
        %v858 = vpow.pop %v857
        %v859 = vmul.f32 %v849, 1.442695
        %v860 = vpow.pop %v859
        %v861 = vmul.f32 %v850, 1.442695
        %v862 = vpow.pop %v861
        %v863 = vmul.f32 %v851, 1.442695
        %v864 = vpow.pop %v863
        %v865 = vmul.f32 %v852, 1.442695
        %v866 = vpow.pop %v865
        %v867 = vmul.f32 %v853, 1.442695
        %v868 = vpow.pop %v867
        %v869 = vmul.f32 %v854, 1.442695
        %v870 = vpow.pop %v869
        %v871 = vsel %vm822, %v856, 0.0
        %872 = vadd.xlane.f32.xlu0 %v871
        %v873 = vpop.xlane.xlu0 %872
        %v874 = vsel %vm822, %v858, 0.0
        %875 = vadd.xlane.f32.xlu0 %v874
        %v876 = vpop.xlane.xlu0 %875
        %v877 = vsel %vm822, %v860, 0.0
        %878 = vadd.xlane.f32.xlu0 %v877
        %v879 = vpop.xlane.xlu0 %878
        %v880 = vsel %vm822, %v862, 0.0
        %881 = vadd.xlane.f32.xlu0 %v880
        %v882 = vpop.xlane.xlu0 %881
        %v883 = vsel %vm822, %v864, 0.0
        %884 = vadd.xlane.f32.xlu0 %v883
        %v885 = vpop.xlane.xlu0 %884
        %v886 = vsel %vm822, %v866, 0.0
        %887 = vadd.xlane.f32.xlu0 %v886
        %v888 = vpop.xlane.xlu0 %887
        %v889 = vsel %vm822, %v868, 0.0
        %890 = vadd.xlane.f32.xlu0 %v889
        %v891 = vpop.xlane.xlu0 %890
        %v892 = vsel %vm822, %v870, 0.0
        %893 = vadd.xlane.f32.xlu0 %v892
        %v894 = vpop.xlane.xlu0 %893
        %v895 = vpack.c.bf16 %v858, %v856
        %v896 = vpack.c.bf16 %v862, %v860
        %v897 = vpack.c.bf16 %v866, %v864
        %v898 = vpack.c.bf16 %v870, %v868
        %v900 = vsel %vm822, %v895, 0
        %v903 = vsel %vm822, %v896, 0
        %v906 = vsel %vm822, %v897, 0
        %v909 = vsel %vm822, %v898, 0
        %911 = vmatprep.subr.bf16.mxu0 0
        %912 = vmatpush1.bf16.msra.mxu0 0
        %913 = vmatprep.subr.bf16.mxu0 0
        %914 = vmatpush1.bf16.msra.mxu0 0
        %915 = vmatprep.subr.bf16.mxu0 0
        %916 = vmatpush1.bf16.msra.mxu0 0
        %917 = vmatprep.subr.bf16.mxu0 0
        %918 = vmatpush1.bf16.msra.mxu0 0
        %919 = vmatprep.subr.bf16.mxu0 0
        %920 = vmatpush1.bf16.msra.mxu0 %v692
        %921 = vmatprep.subr.bf16.mxu0 0
        %922 = vmatpush1.bf16.msra.mxu0 %v689
        %923 = vmatprep.subr.bf16.mxu0 0
        %924 = vmatpush1.bf16.msra.mxu0 %v686
        %925 = vmatprep.subr.bf16.mxu0 0
        %926 = vmatpush1.bf16.msra.mxu0 %v683
        %927 = vmatprep.subr.bf16.mxu0 0
        %928 = vmatpush2.bf16.msra.mxu0 0
        %929 = vmatprep.subr.bf16.mxu0 0
        %930 = vmatpush2.bf16.msra.mxu0 0
        %931 = vmatprep.subr.bf16.mxu0 0
        %932 = vmatpush2.bf16.msra.mxu0 0
        %933 = vmatprep.subr.bf16.mxu0 0
        %934 = vmatpush2.bf16.msra.mxu0 0
        %935 = vmatprep.subr.bf16.mxu0 0
        %936 = vmatpush2.bf16.msra.mxu0 0
        %937 = vmatprep.subr.bf16.mxu0 0
        %938 = vmatpush2.bf16.msra.mxu0 0
        %939 = vmatprep.subr.bf16.mxu0 0
        %940 = vmatpush2.bf16.msra.mxu0 0
        %941 = vmatprep.subr.bf16.mxu0 0
        %942 = vmatpush2.bf16.msra.mxu0 0
        %943 = vmatprep.mubr.bf16.mxu0 0
        %944 = vmatmul.mubr.bf16.gmra.mxu0 %v900
        %v945 = vpop.f32.mrf.mxu0
        %v946 = vadd.f32 0.0, %v945
        %v947 = vpop.f32.mrf.mxu0
        %v948 = vpop.f32.mrf.mxu0
        %v949 = vadd.f32 0.0, %v948
        %v950 = vpop.f32.mrf.mxu0
        %951 = vmatprep.mubr.bf16.mxu0 0
        %952 = vmatmul.mubr.bf16.gmra.mxu0 %v903
        %v953 = vpop.f32.mrf.mxu0
        %v954 = vadd.f32 0.0, %v953
        %v955 = vpop.f32.mrf.mxu0
        %v956 = vpop.f32.mrf.mxu0
        %v957 = vadd.f32 0.0, %v956
        %v958 = vpop.f32.mrf.mxu0
        %959 = vmatprep.mubr.bf16.mxu0 0
        %960 = vmatmul.mubr.bf16.gmra.mxu0 %v906
        %v961 = vpop.f32.mrf.mxu0
        %v962 = vadd.f32 0.0, %v961
        %v963 = vpop.f32.mrf.mxu0
        %v964 = vpop.f32.mrf.mxu0
        %v965 = vadd.f32 0.0, %v964
        %v966 = vpop.f32.mrf.mxu0
        %967 = vmatprep.mubr.bf16.mxu0 0
        %968 = vmatmul.mubr.bf16.gmra.mxu0 %v909
        %v969 = vpop.f32.mrf.mxu0
        %v970 = vadd.f32 0.0, %v969
        %v971 = vpop.f32.mrf.mxu0
        %v972 = vpop.f32.mrf.mxu0
        %v973 = vadd.f32 0.0, %v972
        %v974 = vpop.f32.mrf.mxu0
        %975 = vdwg.mxu0
        %v976 = vrcp.pop %v873
        %v977 = vrcp.pop %v876
        %v978 = vrcp.pop %v879
        %v979 = vrcp.pop %v882
        %v980 = vrcp.pop %v885
        %v981 = vrcp.pop %v888
        %v982 = vrcp.pop %v891
        %v983 = vrcp.pop %v894
        %v984 = vmul.f32 %v946, %v976
        %v985 = vmul.f32 %v949, %v977
        %v986 = vmul.f32 %v954, %v978
        %v987 = vmul.f32 %v957, %v979
        %v988 = vmul.f32 %v962, %v980
        %v989 = vmul.f32 %v965, %v981
        %v990 = vmul.f32 %v970, %v982
        %v991 = vmul.f32 %v973, %v983
        %v992 = vpack.c.bf16 %v985, %v984
        %v993 = vpack.c.bf16 %v987, %v986
        %v994 = vpack.c.bf16 %v989, %v988
        %v995 = vpack.c.bf16 %v991, %v990
        %v1000 = vunpack.c.l.b16 %v992
        %v1001 = vunpack.c.h.b16 %v992
        %v1002 = vunpack.c.l.b16 %v993
        %v1003 = vunpack.c.h.b16 %v993
        %v1004 = vunpack.c.l.b16 %v994
        %v1005 = vunpack.c.h.b16 %v994
        %v1006 = vunpack.c.l.b16 %v995
        %v1007 = vunpack.c.h.b16 %v995
        %v1008 = vpack.c.b16 %v1000, %v1000
        %v1009 = vpack.c.b16 %v1001, %v1001
        %v1010 = vpack.c.b16 %v1002, %v1002
        %v1011 = vpack.c.b16 %v1003, %v1003
        %v1012 = vpack.c.b16 %v1004, %v1004
        %v1013 = vpack.c.b16 %v1005, %v1005
        %v1014 = vpack.c.b16 %v1006, %v1006
        %v1015 = vpack.c.b16 %v1007, %v1007
        %vm1024 = vcmask 257024
        %1025 = vst.msk [vmem:[#allocation2] sm:$0xf] %vm1024, %v1008
        %1026 = vst.msk [vmem:[#allocation2 + $0x4] sm:$0xf] %vm1024, %v1009
        %1027 = vst.msk [vmem:[#allocation2 + $0x8] sm:$0xf] %vm1024, %v1010
        %1028 = vst.msk [vmem:[#allocation2 + $0xc] sm:$0xf] %vm1024, %v1011
        %1029 = vst.msk [vmem:[#allocation2 + $0x10] sm:$0xf] %vm1024, %v1012
        %1030 = vst.msk [vmem:[#allocation2 + $0x14] sm:$0xf] %vm1024, %v1013
        %1031 = vst.msk [vmem:[#allocation2 + $0x18] sm:$0xf] %vm1024, %v1014
        %1032 = vst.msk [vmem:[#allocation2 + $0x1c] sm:$0xf] %vm1024, %v1015
        %1037 = vrot.lane.b32.xlu0 %v681, 96
        %v1038 = vpop.permute.xlu0 %1037
        %1039 = vrot.lane.b32.xlu0 %v684, 96
        %v1040 = vpop.permute.xlu0 %1039
        %1041 = vrot.lane.b32.xlu0 %v687, 96
        %v1042 = vpop.permute.xlu0 %1041
        %1043 = vrot.lane.b32.xlu0 %v690, 96
        %v1044 = vpop.permute.xlu0 %1043
        %1049 = vrot.lane.b32.xlu0 %v682, 96
        %v1050 = vpop.permute.xlu0 %1049
        %1051 = vrot.lane.b32.xlu0 %v685, 96
        %v1052 = vpop.permute.xlu0 %1051
        %1053 = vrot.lane.b32.xlu0 %v688, 96
        %v1054 = vpop.permute.xlu0 %1053
        %1055 = vrot.lane.b32.xlu0 %v691, 96
        %v1056 = vpop.permute.xlu0 %1055
        %v1058 = vsel %vm724, %v1038, 0
        %v1061 = vsel %vm724, %v1040, 0
        %v1064 = vsel %vm724, %v1042, 0
        %v1067 = vsel %vm724, %v1044, 0
        %v1070 = vsel %vm724, %v1050, 0
        %v1073 = vsel %vm724, %v1052, 0
        %v1076 = vsel %vm724, %v1054, 0
        %v1079 = vsel %vm724, %v1056, 0
        %1081 = vmatprep.subr.bf16.mxu0 0
        %1082 = vmatpush1.bf16.xpose.msra.mxu0 0
        %1083 = vmatprep.subr.bf16.mxu0 0
        %1084 = vmatpush1.bf16.xpose.msra.mxu0 0
        %1085 = vmatprep.subr.bf16.mxu0 0
        %1086 = vmatpush1.bf16.xpose.msra.mxu0 0
        %1087 = vmatprep.subr.bf16.mxu0 0
        %1088 = vmatpush1.bf16.xpose.msra.mxu0 0
        %1089 = vmatprep.subr.bf16.mxu0 0
        %1090 = vmatpush1.bf16.xpose.msra.mxu0 %v1079
        %1091 = vmatprep.subr.bf16.mxu0 0
        %1092 = vmatpush1.bf16.xpose.msra.mxu0 %v1076
        %1093 = vmatprep.subr.bf16.mxu0 0
        %1094 = vmatpush1.bf16.xpose.msra.mxu0 %v1073
        %1095 = vmatprep.subr.bf16.mxu0 0
        %1096 = vmatpush1.bf16.xpose.msra.mxu0 %v1070
        %1097 = vmatprep.subr.bf16.mxu0 0
        %1098 = vmatpush2.bf16.xpose.msra.mxu0 0
        %1099 = vmatprep.subr.bf16.mxu0 0
        %1100 = vmatpush2.bf16.xpose.msra.mxu0 0
        %1101 = vmatprep.subr.bf16.mxu0 0
        %1102 = vmatpush2.bf16.xpose.msra.mxu0 0
        %1103 = vmatprep.subr.bf16.mxu0 0
        %1104 = vmatpush2.bf16.xpose.msra.mxu0 0
        %1105 = vmatprep.subr.bf16.mxu0 0
        %1106 = vmatpush2.bf16.xpose.msra.mxu0 0
        %1107 = vmatprep.subr.bf16.mxu0 0
        %1108 = vmatpush2.bf16.xpose.msra.mxu0 0
        %1109 = vmatprep.subr.bf16.mxu0 0
        %1110 = vmatpush2.bf16.xpose.msra.mxu0 0
        %1111 = vmatprep.subr.bf16.mxu0 0
        %1112 = vmatpush2.bf16.xpose.msra.mxu0 0
        %1113 = vmatprep.mubr.bf16.mxu0 0
        %1114 = vmatmul.mubr.bf16.gmra.mxu0 %v1058
        %v1115 = vpop.f32.mrf.mxu0
        %v1116 = vadd.f32 0.0, %v1115
        %v1117 = vpop.f32.mrf.mxu0
        %v1118 = vpop.f32.mrf.mxu0
        %v1119 = vadd.f32 0.0, %v1118
        %v1120 = vpop.f32.mrf.mxu0
        %1121 = vmatprep.mubr.bf16.mxu0 0
        %1122 = vmatmul.mubr.bf16.gmra.mxu0 %v1061
        %v1123 = vpop.f32.mrf.mxu0
        %v1124 = vadd.f32 0.0, %v1123
        %v1125 = vpop.f32.mrf.mxu0
        %v1126 = vpop.f32.mrf.mxu0
        %v1127 = vadd.f32 0.0, %v1126
        %v1128 = vpop.f32.mrf.mxu0
        %1129 = vmatprep.mubr.bf16.mxu0 0
        %1130 = vmatmul.mubr.bf16.gmra.mxu0 %v1064
        %v1131 = vpop.f32.mrf.mxu0
        %v1132 = vadd.f32 0.0, %v1131
        %v1133 = vpop.f32.mrf.mxu0
        %v1134 = vpop.f32.mrf.mxu0
        %v1135 = vadd.f32 0.0, %v1134
        %v1136 = vpop.f32.mrf.mxu0
        %1137 = vmatprep.mubr.bf16.mxu0 0
        %1138 = vmatmul.mubr.bf16.gmra.mxu0 %v1067
        %v1139 = vpop.f32.mrf.mxu0
        %v1140 = vadd.f32 0.0, %v1139
        %v1141 = vpop.f32.mrf.mxu0
        %v1142 = vpop.f32.mrf.mxu0
        %v1143 = vadd.f32 0.0, %v1142
        %v1144 = vpop.f32.mrf.mxu0
        %1145 = vdwg.mxu0
        %v1146 = vsel %vm716, %v1116, -1e+30
        %v1147 = vsel %vm717, %v1119, -1e+30
        %v1148 = vsel %vm718, %v1124, -1e+30
        %v1149 = vsel %vm719, %v1127, -1e+30
        %v1150 = vsel %vm720, %v1132, -1e+30
        %v1151 = vsel %vm721, %v1135, -1e+30
        %v1152 = vsel %vm722, %v1140, -1e+30
        %v1153 = vsel %vm723, %v1143, -1e+30
        %v1154 = vsel %vm822, %v1146, -inf
        %1155 = vmax.xlane.f32.xlu0 %v1154
        %v1156 = vpop.xlane.xlu0 %1155
        %v1157 = vsel %vm822, %v1147, -inf
        %1158 = vmax.xlane.f32.xlu0 %v1157
        %v1159 = vpop.xlane.xlu0 %1158
        %v1160 = vsel %vm822, %v1148, -inf
        %1161 = vmax.xlane.f32.xlu0 %v1160
        %v1162 = vpop.xlane.xlu0 %1161
        %v1163 = vsel %vm822, %v1149, -inf
        %1164 = vmax.xlane.f32.xlu0 %v1163
        %v1165 = vpop.xlane.xlu0 %1164
        %v1166 = vsel %vm822, %v1150, -inf
        %1167 = vmax.xlane.f32.xlu0 %v1166
        %v1168 = vpop.xlane.xlu0 %1167
        %v1169 = vsel %vm822, %v1151, -inf
        %1170 = vmax.xlane.f32.xlu0 %v1169
        %v1171 = vpop.xlane.xlu0 %1170
        %v1172 = vsel %vm822, %v1152, -inf
        %1173 = vmax.xlane.f32.xlu0 %v1172
        %v1174 = vpop.xlane.xlu0 %1173
        %v1175 = vsel %vm822, %v1153, -inf
        %1176 = vmax.xlane.f32.xlu0 %v1175
        %v1177 = vpop.xlane.xlu0 %1176
        %v1178 = vsub.f32 %v1146, %v1156
        %v1179 = vsub.f32 %v1147, %v1159
        %v1180 = vsub.f32 %v1148, %v1162
        %v1181 = vsub.f32 %v1149, %v1165
        %v1182 = vsub.f32 %v1150, %v1168
        %v1183 = vsub.f32 %v1151, %v1171
        %v1184 = vsub.f32 %v1152, %v1174
        %v1185 = vsub.f32 %v1153, %v1177
        %v1186 = vmul.f32 %v1178, 1.442695
        %v1187 = vpow.pop %v1186
        %v1188 = vmul.f32 %v1179, 1.442695
        %v1189 = vpow.pop %v1188
        %v1190 = vmul.f32 %v1180, 1.442695
        %v1191 = vpow.pop %v1190
        %v1192 = vmul.f32 %v1181, 1.442695
        %v1193 = vpow.pop %v1192
        %v1194 = vmul.f32 %v1182, 1.442695
        %v1195 = vpow.pop %v1194
        %v1196 = vmul.f32 %v1183, 1.442695
        %v1197 = vpow.pop %v1196
        %v1198 = vmul.f32 %v1184, 1.442695
        %v1199 = vpow.pop %v1198
        %v1200 = vmul.f32 %v1185, 1.442695
        %v1201 = vpow.pop %v1200
        %v1202 = vsel %vm822, %v1187, 0.0
        %1203 = vadd.xlane.f32.xlu0 %v1202
        %v1204 = vpop.xlane.xlu0 %1203
        %v1205 = vsel %vm822, %v1189, 0.0
        %1206 = vadd.xlane.f32.xlu0 %v1205
        %v1207 = vpop.xlane.xlu0 %1206
        %v1208 = vsel %vm822, %v1191, 0.0
        %1209 = vadd.xlane.f32.xlu0 %v1208
        %v1210 = vpop.xlane.xlu0 %1209
        %v1211 = vsel %vm822, %v1193, 0.0
        %1212 = vadd.xlane.f32.xlu0 %v1211
        %v1213 = vpop.xlane.xlu0 %1212
        %v1214 = vsel %vm822, %v1195, 0.0
        %1215 = vadd.xlane.f32.xlu0 %v1214
        %v1216 = vpop.xlane.xlu0 %1215
        %v1217 = vsel %vm822, %v1197, 0.0
        %1218 = vadd.xlane.f32.xlu0 %v1217
        %v1219 = vpop.xlane.xlu0 %1218
        %v1220 = vsel %vm822, %v1199, 0.0
        %1221 = vadd.xlane.f32.xlu0 %v1220
        %v1222 = vpop.xlane.xlu0 %1221
        %v1223 = vsel %vm822, %v1201, 0.0
        %1224 = vadd.xlane.f32.xlu0 %v1223
        %v1225 = vpop.xlane.xlu0 %1224
        %v1226 = vpack.c.bf16 %v1189, %v1187
        %v1227 = vpack.c.bf16 %v1193, %v1191
        %v1228 = vpack.c.bf16 %v1197, %v1195
        %v1229 = vpack.c.bf16 %v1201, %v1199
        %1234 = vrot.lane.b32.xlu0 %v683, 96
        %v1235 = vpop.permute.xlu0 %1234
        %1236 = vrot.lane.b32.xlu0 %v686, 96
        %v1237 = vpop.permute.xlu0 %1236
        %1238 = vrot.lane.b32.xlu0 %v689, 96
        %v1239 = vpop.permute.xlu0 %1238
        %1240 = vrot.lane.b32.xlu0 %v692, 96
        %v1241 = vpop.permute.xlu0 %1240
        %v1247 = vsel %vm822, %v1226, 0
        %v1250 = vsel %vm822, %v1227, 0
        %v1253 = vsel %vm822, %v1228, 0
        %v1256 = vsel %vm822, %v1229, 0
        %1258 = vmatprep.subr.bf16.mxu0 0
        %1259 = vmatpush1.bf16.msra.mxu0 0
        %1260 = vmatprep.subr.bf16.mxu0 0
        %1261 = vmatpush1.bf16.msra.mxu0 0
        %1262 = vmatprep.subr.bf16.mxu0 0
        %1263 = vmatpush1.bf16.msra.mxu0 0
        %1264 = vmatprep.subr.bf16.mxu0 0
        %1265 = vmatpush1.bf16.msra.mxu0 0
        %1266 = vmatprep.subr.bf16.mxu0 0
        %1267 = vmatpush1.bf16.msra.mxu0 %v1241
        %1268 = vmatprep.subr.bf16.mxu0 0
        %1269 = vmatpush1.bf16.msra.mxu0 %v1239
        %1270 = vmatprep.subr.bf16.mxu0 0
        %1271 = vmatpush1.bf16.msra.mxu0 %v1237
        %1272 = vmatprep.subr.bf16.mxu0 0
        %1273 = vmatpush1.bf16.msra.mxu0 %v1235
        %1274 = vmatprep.subr.bf16.mxu0 0
        %1275 = vmatpush2.bf16.msra.mxu0 0
        %1276 = vmatprep.subr.bf16.mxu0 0
        %1277 = vmatpush2.bf16.msra.mxu0 0
        %1278 = vmatprep.subr.bf16.mxu0 0
        %1279 = vmatpush2.bf16.msra.mxu0 0
        %1280 = vmatprep.subr.bf16.mxu0 0
        %1281 = vmatpush2.bf16.msra.mxu0 0
        %1282 = vmatprep.subr.bf16.mxu0 0
        %1283 = vmatpush2.bf16.msra.mxu0 0
        %1284 = vmatprep.subr.bf16.mxu0 0
        %1285 = vmatpush2.bf16.msra.mxu0 0
        %1286 = vmatprep.subr.bf16.mxu0 0
        %1287 = vmatpush2.bf16.msra.mxu0 0
        %1288 = vmatprep.subr.bf16.mxu0 0
        %1289 = vmatpush2.bf16.msra.mxu0 0
        %1290 = vmatprep.mubr.bf16.mxu0 0
        %1291 = vmatmul.mubr.bf16.gmra.mxu0 %v1247
        %v1292 = vpop.f32.mrf.mxu0
        %v1293 = vadd.f32 0.0, %v1292
        %v1294 = vpop.f32.mrf.mxu0
        %v1295 = vpop.f32.mrf.mxu0
        %v1296 = vadd.f32 0.0, %v1295
        %v1297 = vpop.f32.mrf.mxu0
        %1298 = vmatprep.mubr.bf16.mxu0 0
        %1299 = vmatmul.mubr.bf16.gmra.mxu0 %v1250
        %v1300 = vpop.f32.mrf.mxu0
        %v1301 = vadd.f32 0.0, %v1300
        %v1302 = vpop.f32.mrf.mxu0
        %v1303 = vpop.f32.mrf.mxu0
        %v1304 = vadd.f32 0.0, %v1303
        %v1305 = vpop.f32.mrf.mxu0
        %1306 = vmatprep.mubr.bf16.mxu0 0
        %1307 = vmatmul.mubr.bf16.gmra.mxu0 %v1253
        %v1308 = vpop.f32.mrf.mxu0
        %v1309 = vadd.f32 0.0, %v1308
        %v1310 = vpop.f32.mrf.mxu0
        %v1311 = vpop.f32.mrf.mxu0
        %v1312 = vadd.f32 0.0, %v1311
        %v1313 = vpop.f32.mrf.mxu0
        %1314 = vmatprep.mubr.bf16.mxu0 0
        %1315 = vmatmul.mubr.bf16.gmra.mxu0 %v1256
        %v1316 = vpop.f32.mrf.mxu0
        %v1317 = vadd.f32 0.0, %v1316
        %v1318 = vpop.f32.mrf.mxu0
        %v1319 = vpop.f32.mrf.mxu0
        %v1320 = vadd.f32 0.0, %v1319
        %v1321 = vpop.f32.mrf.mxu0
        %1322 = vdwg.mxu0
        %v1323 = vrcp.pop %v1204
        %v1324 = vrcp.pop %v1207
        %v1325 = vrcp.pop %v1210
        %v1326 = vrcp.pop %v1213
        %v1327 = vrcp.pop %v1216
        %v1328 = vrcp.pop %v1219
        %v1329 = vrcp.pop %v1222
        %v1330 = vrcp.pop %v1225
        %v1331 = vmul.f32 %v1293, %v1323
        %v1332 = vmul.f32 %v1296, %v1324
        %v1333 = vmul.f32 %v1301, %v1325
        %v1334 = vmul.f32 %v1304, %v1326
        %v1335 = vmul.f32 %v1309, %v1327
        %v1336 = vmul.f32 %v1312, %v1328
        %v1337 = vmul.f32 %v1317, %v1329
        %v1338 = vmul.f32 %v1320, %v1330
        %v1339 = vpack.c.bf16 %v1332, %v1331
        %v1340 = vpack.c.bf16 %v1334, %v1333
        %v1341 = vpack.c.bf16 %v1336, %v1335
        %v1342 = vpack.c.bf16 %v1338, %v1337
        %v1347 = vunpack.c.l.b16 %v1339
        %v1348 = vunpack.c.h.b16 %v1339
        %v1349 = vunpack.c.l.b16 %v1340
        %v1350 = vunpack.c.h.b16 %v1340
        %v1351 = vunpack.c.l.b16 %v1341
        %v1352 = vunpack.c.h.b16 %v1341
        %v1353 = vunpack.c.l.b16 %v1342
        %v1354 = vunpack.c.h.b16 %v1342
        %v1355 = vpack.c.b16 %v1347, %v1347
        %v1356 = vpack.c.b16 %v1348, %v1348
        %v1357 = vpack.c.b16 %v1349, %v1349
        %v1358 = vpack.c.b16 %v1350, %v1350
        %v1359 = vpack.c.b16 %v1351, %v1351
        %v1360 = vpack.c.b16 %v1352, %v1352
        %v1361 = vpack.c.b16 %v1353, %v1353
        %v1362 = vpack.c.b16 %v1354, %v1354
        %1363 = vrot.lane.b32.xlu0 %v1355, 32
        %v1364 = vpop.permute.xlu0 %1363
        %1365 = vrot.lane.b32.xlu0 %v1356, 32
        %v1366 = vpop.permute.xlu0 %1365
        %1367 = vrot.lane.b32.xlu0 %v1357, 32
        %v1368 = vpop.permute.xlu0 %1367
        %1369 = vrot.lane.b32.xlu0 %v1358, 32
        %v1370 = vpop.permute.xlu0 %1369
        %1371 = vrot.lane.b32.xlu0 %v1359, 32
        %v1372 = vpop.permute.xlu0 %1371
        %1373 = vrot.lane.b32.xlu0 %v1360, 32
        %v1374 = vpop.permute.xlu0 %1373
        %1375 = vrot.lane.b32.xlu0 %v1361, 32
        %v1376 = vpop.permute.xlu0 %1375
        %1377 = vrot.lane.b32.xlu0 %v1362, 32
        %v1378 = vpop.permute.xlu0 %1377
        %vm1387 = vcmask 519424
        %1388 = vst.msk [vmem:[#allocation2] sm:$0xf] %vm1387, %v1364
        %1389 = vst.msk [vmem:[#allocation2 + $0x4] sm:$0xf] %vm1387, %v1366
        %1390 = vst.msk [vmem:[#allocation2 + $0x8] sm:$0xf] %vm1387, %v1368
        %1391 = vst.msk [vmem:[#allocation2 + $0xc] sm:$0xf] %vm1387, %v1370
        %1392 = vst.msk [vmem:[#allocation2 + $0x10] sm:$0xf] %vm1387, %v1372
        %1393 = vst.msk [vmem:[#allocation2 + $0x14] sm:$0xf] %vm1387, %v1374
        %1394 = vst.msk [vmem:[#allocation2 + $0x18] sm:$0xf] %vm1387, %v1376
        %1395 = vst.msk [vmem:[#allocation2 + $0x1c] sm:$0xf] %vm1387, %v1378
        %1396 = vrot.lane.b32.xlu0 %v681, 64
        %v1397 = vpop.permute.xlu0 %1396
        %1398 = vrot.lane.b32.xlu0 %v684, 64
        %v1399 = vpop.permute.xlu0 %1398
        %1400 = vrot.lane.b32.xlu0 %v687, 64
        %v1401 = vpop.permute.xlu0 %1400
        %1402 = vrot.lane.b32.xlu0 %v690, 64
        %v1403 = vpop.permute.xlu0 %1402
        %1404 = vrot.lane.b32.xlu0 %v682, 64
        %v1405 = vpop.permute.xlu0 %1404
        %1406 = vrot.lane.b32.xlu0 %v685, 64
        %v1407 = vpop.permute.xlu0 %1406
        %1408 = vrot.lane.b32.xlu0 %v688, 64
        %v1409 = vpop.permute.xlu0 %1408
        %1410 = vrot.lane.b32.xlu0 %v691, 64
        %v1411 = vpop.permute.xlu0 %1410
        %v1413 = vsel %vm724, %v1397, 0
        %v1416 = vsel %vm724, %v1399, 0
        %v1419 = vsel %vm724, %v1401, 0
        %v1422 = vsel %vm724, %v1403, 0
        %v1425 = vsel %vm724, %v1405, 0
        %v1428 = vsel %vm724, %v1407, 0
        %v1431 = vsel %vm724, %v1409, 0
        %v1434 = vsel %vm724, %v1411, 0
        %1436 = vmatprep.subr.bf16.mxu0 0
        %1437 = vmatpush1.bf16.xpose.msra.mxu0 0
        %1438 = vmatprep.subr.bf16.mxu0 0
        %1439 = vmatpush1.bf16.xpose.msra.mxu0 0
        %1440 = vmatprep.subr.bf16.mxu0 0
        %1441 = vmatpush1.bf16.xpose.msra.mxu0 0
        %1442 = vmatprep.subr.bf16.mxu0 0
        %1443 = vmatpush1.bf16.xpose.msra.mxu0 0
        %1444 = vmatprep.subr.bf16.mxu0 0
        %1445 = vmatpush1.bf16.xpose.msra.mxu0 %v1434
        %1446 = vmatprep.subr.bf16.mxu0 0
        %1447 = vmatpush1.bf16.xpose.msra.mxu0 %v1431
        %1448 = vmatprep.subr.bf16.mxu0 0
        %1449 = vmatpush1.bf16.xpose.msra.mxu0 %v1428
        %1450 = vmatprep.subr.bf16.mxu0 0
        %1451 = vmatpush1.bf16.xpose.msra.mxu0 %v1425
        %1452 = vmatprep.subr.bf16.mxu0 0
        %1453 = vmatpush2.bf16.xpose.msra.mxu0 0
        %1454 = vmatprep.subr.bf16.mxu0 0
        %1455 = vmatpush2.bf16.xpose.msra.mxu0 0
        %1456 = vmatprep.subr.bf16.mxu0 0
        %1457 = vmatpush2.bf16.xpose.msra.mxu0 0
        %1458 = vmatprep.subr.bf16.mxu0 0
        %1459 = vmatpush2.bf16.xpose.msra.mxu0 0
        %1460 = vmatprep.subr.bf16.mxu0 0
        %1461 = vmatpush2.bf16.xpose.msra.mxu0 0
        %1462 = vmatprep.subr.bf16.mxu0 0
        %1463 = vmatpush2.bf16.xpose.msra.mxu0 0
        %1464 = vmatprep.subr.bf16.mxu0 0
        %1465 = vmatpush2.bf16.xpose.msra.mxu0 0
        %1466 = vmatprep.subr.bf16.mxu0 0
        %1467 = vmatpush2.bf16.xpose.msra.mxu0 0
        %1468 = vmatprep.mubr.bf16.mxu0 0
        %1469 = vmatmul.mubr.bf16.gmra.mxu0 %v1413
        %v1470 = vpop.f32.mrf.mxu0
        %v1471 = vadd.f32 0.0, %v1470
        %v1472 = vpop.f32.mrf.mxu0
        %v1473 = vpop.f32.mrf.mxu0
        %v1474 = vadd.f32 0.0, %v1473
        %v1475 = vpop.f32.mrf.mxu0
        %1476 = vmatprep.mubr.bf16.mxu0 0
        %1477 = vmatmul.mubr.bf16.gmra.mxu0 %v1416
        %v1478 = vpop.f32.mrf.mxu0
        %v1479 = vadd.f32 0.0, %v1478
        %v1480 = vpop.f32.mrf.mxu0
        %v1481 = vpop.f32.mrf.mxu0
        %v1482 = vadd.f32 0.0, %v1481
        %v1483 = vpop.f32.mrf.mxu0
        %1484 = vmatprep.mubr.bf16.mxu0 0
        %1485 = vmatmul.mubr.bf16.gmra.mxu0 %v1419
        %v1486 = vpop.f32.mrf.mxu0
        %v1487 = vadd.f32 0.0, %v1486
        %v1488 = vpop.f32.mrf.mxu0
        %v1489 = vpop.f32.mrf.mxu0
        %v1490 = vadd.f32 0.0, %v1489
        %v1491 = vpop.f32.mrf.mxu0
        %1492 = vmatprep.mubr.bf16.mxu0 0
        %1493 = vmatmul.mubr.bf16.gmra.mxu0 %v1422
        %v1494 = vpop.f32.mrf.mxu0
        %v1495 = vadd.f32 0.0, %v1494
        %v1496 = vpop.f32.mrf.mxu0
        %v1497 = vpop.f32.mrf.mxu0
        %v1498 = vadd.f32 0.0, %v1497
        %v1499 = vpop.f32.mrf.mxu0
        %1500 = vdwg.mxu0
        %v1501 = vsel %vm716, %v1471, -1e+30
        %v1502 = vsel %vm717, %v1474, -1e+30
        %v1503 = vsel %vm718, %v1479, -1e+30
        %v1504 = vsel %vm719, %v1482, -1e+30
        %v1505 = vsel %vm720, %v1487, -1e+30
        %v1506 = vsel %vm721, %v1490, -1e+30
        %v1507 = vsel %vm722, %v1495, -1e+30
        %v1508 = vsel %vm723, %v1498, -1e+30
        %v1509 = vsel %vm822, %v1501, -inf
        %1510 = vmax.xlane.f32.xlu0 %v1509
        %v1511 = vpop.xlane.xlu0 %1510
        %v1512 = vsel %vm822, %v1502, -inf
        %1513 = vmax.xlane.f32.xlu0 %v1512
        %v1514 = vpop.xlane.xlu0 %1513
        %v1515 = vsel %vm822, %v1503, -inf
        %1516 = vmax.xlane.f32.xlu0 %v1515
        %v1517 = vpop.xlane.xlu0 %1516
        %v1518 = vsel %vm822, %v1504, -inf
        %1519 = vmax.xlane.f32.xlu0 %v1518
        %v1520 = vpop.xlane.xlu0 %1519
        %v1521 = vsel %vm822, %v1505, -inf
        %1522 = vmax.xlane.f32.xlu0 %v1521
        %v1523 = vpop.xlane.xlu0 %1522
        %v1524 = vsel %vm822, %v1506, -inf
        %1525 = vmax.xlane.f32.xlu0 %v1524
        %v1526 = vpop.xlane.xlu0 %1525
        %v1527 = vsel %vm822, %v1507, -inf
        %1528 = vmax.xlane.f32.xlu0 %v1527
        %v1529 = vpop.xlane.xlu0 %1528
        %v1530 = vsel %vm822, %v1508, -inf
        %1531 = vmax.xlane.f32.xlu0 %v1530
        %v1532 = vpop.xlane.xlu0 %1531
        %v1533 = vsub.f32 %v1501, %v1511
        %v1534 = vsub.f32 %v1502, %v1514
        %v1535 = vsub.f32 %v1503, %v1517
        %v1536 = vsub.f32 %v1504, %v1520
        %v1537 = vsub.f32 %v1505, %v1523
        %v1538 = vsub.f32 %v1506, %v1526
        %v1539 = vsub.f32 %v1507, %v1529
        %v1540 = vsub.f32 %v1508, %v1532
        %v1541 = vmul.f32 %v1533, 1.442695
        %v1542 = vpow.pop %v1541
        %v1543 = vmul.f32 %v1534, 1.442695
        %v1544 = vpow.pop %v1543
        %v1545 = vmul.f32 %v1535, 1.442695
        %v1546 = vpow.pop %v1545
        %v1547 = vmul.f32 %v1536, 1.442695
        %v1548 = vpow.pop %v1547
        %v1549 = vmul.f32 %v1537, 1.442695
        %v1550 = vpow.pop %v1549
        %v1551 = vmul.f32 %v1538, 1.442695
        %v1552 = vpow.pop %v1551
        %v1553 = vmul.f32 %v1539, 1.442695
        %v1554 = vpow.pop %v1553
        %v1555 = vmul.f32 %v1540, 1.442695
        %v1556 = vpow.pop %v1555
        %v1557 = vsel %vm822, %v1542, 0.0
        %1558 = vadd.xlane.f32.xlu0 %v1557
        %v1559 = vpop.xlane.xlu0 %1558
        %v1560 = vsel %vm822, %v1544, 0.0
        %1561 = vadd.xlane.f32.xlu0 %v1560
        %v1562 = vpop.xlane.xlu0 %1561
        %v1563 = vsel %vm822, %v1546, 0.0
        %1564 = vadd.xlane.f32.xlu0 %v1563
        %v1565 = vpop.xlane.xlu0 %1564
        %v1566 = vsel %vm822, %v1548, 0.0
        %1567 = vadd.xlane.f32.xlu0 %v1566
        %v1568 = vpop.xlane.xlu0 %1567
        %v1569 = vsel %vm822, %v1550, 0.0
        %1570 = vadd.xlane.f32.xlu0 %v1569
        %v1571 = vpop.xlane.xlu0 %1570
        %v1572 = vsel %vm822, %v1552, 0.0
        %1573 = vadd.xlane.f32.xlu0 %v1572
        %v1574 = vpop.xlane.xlu0 %1573
        %v1575 = vsel %vm822, %v1554, 0.0
        %1576 = vadd.xlane.f32.xlu0 %v1575
        %v1577 = vpop.xlane.xlu0 %1576
        %v1578 = vsel %vm822, %v1556, 0.0
        %1579 = vadd.xlane.f32.xlu0 %v1578
        %v1580 = vpop.xlane.xlu0 %1579
        %v1581 = vpack.c.bf16 %v1544, %v1542
        %v1582 = vpack.c.bf16 %v1548, %v1546
        %v1583 = vpack.c.bf16 %v1552, %v1550
        %v1584 = vpack.c.bf16 %v1556, %v1554
        %1585 = vrot.lane.b32.xlu0 %v683, 64
        %v1586 = vpop.permute.xlu0 %1585
        %1587 = vrot.lane.b32.xlu0 %v686, 64
        %v1588 = vpop.permute.xlu0 %1587
        %1589 = vrot.lane.b32.xlu0 %v689, 64
        %v1590 = vpop.permute.xlu0 %1589
        %1591 = vrot.lane.b32.xlu0 %v692, 64
        %v1592 = vpop.permute.xlu0 %1591
        %v1598 = vsel %vm822, %v1581, 0
        %v1601 = vsel %vm822, %v1582, 0
        %v1604 = vsel %vm822, %v1583, 0
        %v1607 = vsel %vm822, %v1584, 0
        %1609 = vmatprep.subr.bf16.mxu0 0
        %1610 = vmatpush1.bf16.msra.mxu0 0
        %1611 = vmatprep.subr.bf16.mxu0 0
        %1612 = vmatpush1.bf16.msra.mxu0 0
        %1613 = vmatprep.subr.bf16.mxu0 0
        %1614 = vmatpush1.bf16.msra.mxu0 0
        %1615 = vmatprep.subr.bf16.mxu0 0
        %1616 = vmatpush1.bf16.msra.mxu0 0
        %1617 = vmatprep.subr.bf16.mxu0 0
        %1618 = vmatpush1.bf16.msra.mxu0 %v1592
        %1619 = vmatprep.subr.bf16.mxu0 0
        %1620 = vmatpush1.bf16.msra.mxu0 %v1590
        %1621 = vmatprep.subr.bf16.mxu0 0
        %1622 = vmatpush1.bf16.msra.mxu0 %v1588
        %1623 = vmatprep.subr.bf16.mxu0 0
        %1624 = vmatpush1.bf16.msra.mxu0 %v1586
        %1625 = vmatprep.subr.bf16.mxu0 0
        %1626 = vmatpush2.bf16.msra.mxu0 0
        %1627 = vmatprep.subr.bf16.mxu0 0
        %1628 = vmatpush2.bf16.msra.mxu0 0
        %1629 = vmatprep.subr.bf16.mxu0 0
        %1630 = vmatpush2.bf16.msra.mxu0 0
        %1631 = vmatprep.subr.bf16.mxu0 0
        %1632 = vmatpush2.bf16.msra.mxu0 0
        %1633 = vmatprep.subr.bf16.mxu0 0
        %1634 = vmatpush2.bf16.msra.mxu0 0
        %1635 = vmatprep.subr.bf16.mxu0 0
        %1636 = vmatpush2.bf16.msra.mxu0 0
        %1637 = vmatprep.subr.bf16.mxu0 0
        %1638 = vmatpush2.bf16.msra.mxu0 0
        %1639 = vmatprep.subr.bf16.mxu0 0
        %1640 = vmatpush2.bf16.msra.mxu0 0
        %1641 = vmatprep.mubr.bf16.mxu0 0
        %1642 = vmatmul.mubr.bf16.gmra.mxu0 %v1598
        %v1643 = vpop.f32.mrf.mxu0
        %v1644 = vadd.f32 0.0, %v1643
        %v1645 = vpop.f32.mrf.mxu0
        %v1646 = vpop.f32.mrf.mxu0
        %v1647 = vadd.f32 0.0, %v1646
        %v1648 = vpop.f32.mrf.mxu0
        %1649 = vmatprep.mubr.bf16.mxu0 0
        %1650 = vmatmul.mubr.bf16.gmra.mxu0 %v1601
        %v1651 = vpop.f32.mrf.mxu0
        %v1652 = vadd.f32 0.0, %v1651
        %v1653 = vpop.f32.mrf.mxu0
        %v1654 = vpop.f32.mrf.mxu0
        %v1655 = vadd.f32 0.0, %v1654
        %v1656 = vpop.f32.mrf.mxu0
        %1657 = vmatprep.mubr.bf16.mxu0 0
        %1658 = vmatmul.mubr.bf16.gmra.mxu0 %v1604
        %v1659 = vpop.f32.mrf.mxu0
        %v1660 = vadd.f32 0.0, %v1659
        %v1661 = vpop.f32.mrf.mxu0
        %v1662 = vpop.f32.mrf.mxu0
        %v1663 = vadd.f32 0.0, %v1662
        %v1664 = vpop.f32.mrf.mxu0
        %1665 = vmatprep.mubr.bf16.mxu0 0
        %1666 = vmatmul.mubr.bf16.gmra.mxu0 %v1607
        %v1667 = vpop.f32.mrf.mxu0
        %v1668 = vadd.f32 0.0, %v1667
        %v1669 = vpop.f32.mrf.mxu0
        %v1670 = vpop.f32.mrf.mxu0
        %v1671 = vadd.f32 0.0, %v1670
        %v1672 = vpop.f32.mrf.mxu0
        %1673 = vdwg.mxu0
        %v1674 = vrcp.pop %v1559
        %v1675 = vrcp.pop %v1562
        %v1676 = vrcp.pop %v1565
        %v1677 = vrcp.pop %v1568
        %v1678 = vrcp.pop %v1571
        %v1679 = vrcp.pop %v1574
        %v1680 = vrcp.pop %v1577
        %v1681 = vrcp.pop %v1580
        %v1682 = vmul.f32 %v1644, %v1674
        %v1683 = vmul.f32 %v1647, %v1675
        %v1684 = vmul.f32 %v1652, %v1676
        %v1685 = vmul.f32 %v1655, %v1677
        %v1686 = vmul.f32 %v1660, %v1678
        %v1687 = vmul.f32 %v1663, %v1679
        %v1688 = vmul.f32 %v1668, %v1680
        %v1689 = vmul.f32 %v1671, %v1681
        %v1690 = vpack.c.bf16 %v1683, %v1682
        %v1691 = vpack.c.bf16 %v1685, %v1684
        %v1692 = vpack.c.bf16 %v1687, %v1686
        %v1693 = vpack.c.bf16 %v1689, %v1688
        %v1698 = vunpack.c.l.b16 %v1690
        %v1699 = vunpack.c.h.b16 %v1690
        %v1700 = vunpack.c.l.b16 %v1691
        %v1701 = vunpack.c.h.b16 %v1691
        %v1702 = vunpack.c.l.b16 %v1692
        %v1703 = vunpack.c.h.b16 %v1692
        %v1704 = vunpack.c.l.b16 %v1693
        %v1705 = vunpack.c.h.b16 %v1693
        %v1706 = vpack.c.b16 %v1698, %v1698
        %v1707 = vpack.c.b16 %v1699, %v1699
        %v1708 = vpack.c.b16 %v1700, %v1700
        %v1709 = vpack.c.b16 %v1701, %v1701
        %v1710 = vpack.c.b16 %v1702, %v1702
        %v1711 = vpack.c.b16 %v1703, %v1703
        %v1712 = vpack.c.b16 %v1704, %v1704
        %v1713 = vpack.c.b16 %v1705, %v1705
        %1714 = vrot.lane.b32.xlu0 %v1706, 64
        %v1715 = vpop.permute.xlu0 %1714
        %1716 = vrot.lane.b32.xlu0 %v1707, 64
        %v1717 = vpop.permute.xlu0 %1716
        %1718 = vrot.lane.b32.xlu0 %v1708, 64
        %v1719 = vpop.permute.xlu0 %1718
        %1720 = vrot.lane.b32.xlu0 %v1709, 64
        %v1721 = vpop.permute.xlu0 %1720
        %1722 = vrot.lane.b32.xlu0 %v1710, 64
        %v1723 = vpop.permute.xlu0 %1722
        %1724 = vrot.lane.b32.xlu0 %v1711, 64
        %v1725 = vpop.permute.xlu0 %1724
        %1726 = vrot.lane.b32.xlu0 %v1712, 64
        %v1727 = vpop.permute.xlu0 %1726
        %1728 = vrot.lane.b32.xlu0 %v1713, 64
        %v1729 = vpop.permute.xlu0 %1728
        %vm1738 = vcmask 781824
        %1739 = vst.msk [vmem:[#allocation2] sm:$0xf] %vm1738, %v1715
        %1740 = vst.msk [vmem:[#allocation2 + $0x4] sm:$0xf] %vm1738, %v1717
        %1741 = vst.msk [vmem:[#allocation2 + $0x8] sm:$0xf] %vm1738, %v1719
        %1742 = vst.msk [vmem:[#allocation2 + $0xc] sm:$0xf] %vm1738, %v1721
        %1743 = vst.msk [vmem:[#allocation2 + $0x10] sm:$0xf] %vm1738, %v1723
        %1744 = vst.msk [vmem:[#allocation2 + $0x14] sm:$0xf] %vm1738, %v1725
        %1745 = vst.msk [vmem:[#allocation2 + $0x18] sm:$0xf] %vm1738, %v1727
        %1746 = vst.msk [vmem:[#allocation2 + $0x1c] sm:$0xf] %vm1738, %v1729
        %1747 = vrot.lane.b32.xlu0 %v681, 32
        %v1748 = vpop.permute.xlu0 %1747
        %1749 = vrot.lane.b32.xlu0 %v684, 32
        %v1750 = vpop.permute.xlu0 %1749
        %1751 = vrot.lane.b32.xlu0 %v687, 32
        %v1752 = vpop.permute.xlu0 %1751
        %1753 = vrot.lane.b32.xlu0 %v690, 32
        %v1754 = vpop.permute.xlu0 %1753
        %1755 = vrot.lane.b32.xlu0 %v682, 32
        %v1756 = vpop.permute.xlu0 %1755
        %1757 = vrot.lane.b32.xlu0 %v685, 32
        %v1758 = vpop.permute.xlu0 %1757
        %1759 = vrot.lane.b32.xlu0 %v688, 32
        %v1760 = vpop.permute.xlu0 %1759
        %1761 = vrot.lane.b32.xlu0 %v691, 32
        %v1762 = vpop.permute.xlu0 %1761
        %v1764 = vsel %vm724, %v1748, 0
        %v1767 = vsel %vm724, %v1750, 0
        %v1770 = vsel %vm724, %v1752, 0
        %v1773 = vsel %vm724, %v1754, 0
        %v1776 = vsel %vm724, %v1756, 0
        %v1779 = vsel %vm724, %v1758, 0
        %v1782 = vsel %vm724, %v1760, 0
        %v1785 = vsel %vm724, %v1762, 0
        %1787 = vmatprep.subr.bf16.mxu0 0
        %1788 = vmatpush1.bf16.xpose.msra.mxu0 0
        %1789 = vmatprep.subr.bf16.mxu0 0
        %1790 = vmatpush1.bf16.xpose.msra.mxu0 0
        %1791 = vmatprep.subr.bf16.mxu0 0
        %1792 = vmatpush1.bf16.xpose.msra.mxu0 0
        %1793 = vmatprep.subr.bf16.mxu0 0
        %1794 = vmatpush1.bf16.xpose.msra.mxu0 0
        %1795 = vmatprep.subr.bf16.mxu0 0
        %1796 = vmatpush1.bf16.xpose.msra.mxu0 %v1785
        %1797 = vmatprep.subr.bf16.mxu0 0
        %1798 = vmatpush1.bf16.xpose.msra.mxu0 %v1782
        %1799 = vmatprep.subr.bf16.mxu0 0
        %1800 = vmatpush1.bf16.xpose.msra.mxu0 %v1779
        %1801 = vmatprep.subr.bf16.mxu0 0
        %1802 = vmatpush1.bf16.xpose.msra.mxu0 %v1776
        %1803 = vmatprep.subr.bf16.mxu0 0
        %1804 = vmatpush2.bf16.xpose.msra.mxu0 0
        %1805 = vmatprep.subr.bf16.mxu0 0
        %1806 = vmatpush2.bf16.xpose.msra.mxu0 0
        %1807 = vmatprep.subr.bf16.mxu0 0
        %1808 = vmatpush2.bf16.xpose.msra.mxu0 0
        %1809 = vmatprep.subr.bf16.mxu0 0
        %1810 = vmatpush2.bf16.xpose.msra.mxu0 0
        %1811 = vmatprep.subr.bf16.mxu0 0
        %1812 = vmatpush2.bf16.xpose.msra.mxu0 0
        %1813 = vmatprep.subr.bf16.mxu0 0
        %1814 = vmatpush2.bf16.xpose.msra.mxu0 0
        %1815 = vmatprep.subr.bf16.mxu0 0
        %1816 = vmatpush2.bf16.xpose.msra.mxu0 0
        %1817 = vmatprep.subr.bf16.mxu0 0
        %1818 = vmatpush2.bf16.xpose.msra.mxu0 0
        %1819 = vmatprep.mubr.bf16.mxu0 0
        %1820 = vmatmul.mubr.bf16.gmra.mxu0 %v1764
        %v1821 = vpop.f32.mrf.mxu0
        %v1822 = vadd.f32 0.0, %v1821
        %v1823 = vpop.f32.mrf.mxu0
        %v1824 = vpop.f32.mrf.mxu0
        %v1825 = vadd.f32 0.0, %v1824
        %v1826 = vpop.f32.mrf.mxu0
        %1827 = vmatprep.mubr.bf16.mxu0 0
        %1828 = vmatmul.mubr.bf16.gmra.mxu0 %v1767
        %v1829 = vpop.f32.mrf.mxu0
        %v1830 = vadd.f32 0.0, %v1829
        %v1831 = vpop.f32.mrf.mxu0
        %v1832 = vpop.f32.mrf.mxu0
        %v1833 = vadd.f32 0.0, %v1832
        %v1834 = vpop.f32.mrf.mxu0
        %1835 = vmatprep.mubr.bf16.mxu0 0
        %1836 = vmatmul.mubr.bf16.gmra.mxu0 %v1770
        %v1837 = vpop.f32.mrf.mxu0
        %v1838 = vadd.f32 0.0, %v1837
        %v1839 = vpop.f32.mrf.mxu0
        %v1840 = vpop.f32.mrf.mxu0
        %v1841 = vadd.f32 0.0, %v1840
        %v1842 = vpop.f32.mrf.mxu0
        %1843 = vmatprep.mubr.bf16.mxu0 0
        %1844 = vmatmul.mubr.bf16.gmra.mxu0 %v1773
        %v1845 = vpop.f32.mrf.mxu0
        %v1846 = vadd.f32 0.0, %v1845
        %v1847 = vpop.f32.mrf.mxu0
        %v1848 = vpop.f32.mrf.mxu0
        %v1849 = vadd.f32 0.0, %v1848
        %v1850 = vpop.f32.mrf.mxu0
        %1851 = vdwg.mxu0
        %v1852 = vsel %vm716, %v1822, -1e+30
        %v1853 = vsel %vm717, %v1825, -1e+30
        %v1854 = vsel %vm718, %v1830, -1e+30
        %v1855 = vsel %vm719, %v1833, -1e+30
        %v1856 = vsel %vm720, %v1838, -1e+30
        %v1857 = vsel %vm721, %v1841, -1e+30
        %v1858 = vsel %vm722, %v1846, -1e+30
        %v1859 = vsel %vm723, %v1849, -1e+30
        %v1860 = vsel %vm822, %v1852, -inf
        %1861 = vmax.xlane.f32.xlu0 %v1860
        %v1862 = vpop.xlane.xlu0 %1861
        %v1863 = vsel %vm822, %v1853, -inf
        %1864 = vmax.xlane.f32.xlu0 %v1863
        %v1865 = vpop.xlane.xlu0 %1864
        %v1866 = vsel %vm822, %v1854, -inf
        %1867 = vmax.xlane.f32.xlu0 %v1866
        %v1868 = vpop.xlane.xlu0 %1867
        %v1869 = vsel %vm822, %v1855, -inf
        %1870 = vmax.xlane.f32.xlu0 %v1869
        %v1871 = vpop.xlane.xlu0 %1870
        %v1872 = vsel %vm822, %v1856, -inf
        %1873 = vmax.xlane.f32.xlu0 %v1872
        %v1874 = vpop.xlane.xlu0 %1873
        %v1875 = vsel %vm822, %v1857, -inf
        %1876 = vmax.xlane.f32.xlu0 %v1875
        %v1877 = vpop.xlane.xlu0 %1876
        %v1878 = vsel %vm822, %v1858, -inf
        %1879 = vmax.xlane.f32.xlu0 %v1878
        %v1880 = vpop.xlane.xlu0 %1879
        %v1881 = vsel %vm822, %v1859, -inf
        %1882 = vmax.xlane.f32.xlu0 %v1881
        %v1883 = vpop.xlane.xlu0 %1882
        %v1884 = vsub.f32 %v1852, %v1862
        %v1885 = vsub.f32 %v1853, %v1865
        %v1886 = vsub.f32 %v1854, %v1868
        %v1887 = vsub.f32 %v1855, %v1871
        %v1888 = vsub.f32 %v1856, %v1874
        %v1889 = vsub.f32 %v1857, %v1877
        %v1890 = vsub.f32 %v1858, %v1880
        %v1891 = vsub.f32 %v1859, %v1883
        %v1892 = vmul.f32 %v1884, 1.442695
        %v1893 = vpow.pop %v1892
        %v1894 = vmul.f32 %v1885, 1.442695
        %v1895 = vpow.pop %v1894
        %v1896 = vmul.f32 %v1886, 1.442695
        %v1897 = vpow.pop %v1896
        %v1898 = vmul.f32 %v1887, 1.442695
        %v1899 = vpow.pop %v1898
        %v1900 = vmul.f32 %v1888, 1.442695
        %v1901 = vpow.pop %v1900
        %v1902 = vmul.f32 %v1889, 1.442695
        %v1903 = vpow.pop %v1902
        %v1904 = vmul.f32 %v1890, 1.442695
        %v1905 = vpow.pop %v1904
        %v1906 = vmul.f32 %v1891, 1.442695
        %v1907 = vpow.pop %v1906
        %v1908 = vsel %vm822, %v1893, 0.0
        %1909 = vadd.xlane.f32.xlu0 %v1908
        %v1910 = vpop.xlane.xlu0 %1909
        %v1911 = vsel %vm822, %v1895, 0.0
        %1912 = vadd.xlane.f32.xlu0 %v1911
        %v1913 = vpop.xlane.xlu0 %1912
        %v1914 = vsel %vm822, %v1897, 0.0
        %1915 = vadd.xlane.f32.xlu0 %v1914
        %v1916 = vpop.xlane.xlu0 %1915
        %v1917 = vsel %vm822, %v1899, 0.0
        %1918 = vadd.xlane.f32.xlu0 %v1917
        %v1919 = vpop.xlane.xlu0 %1918
        %v1920 = vsel %vm822, %v1901, 0.0
        %1921 = vadd.xlane.f32.xlu0 %v1920
        %v1922 = vpop.xlane.xlu0 %1921
        %v1923 = vsel %vm822, %v1903, 0.0
        %1924 = vadd.xlane.f32.xlu0 %v1923
        %v1925 = vpop.xlane.xlu0 %1924
        %v1926 = vsel %vm822, %v1905, 0.0
        %1927 = vadd.xlane.f32.xlu0 %v1926
        %v1928 = vpop.xlane.xlu0 %1927
        %v1929 = vsel %vm822, %v1907, 0.0
        %1930 = vadd.xlane.f32.xlu0 %v1929
        %v1931 = vpop.xlane.xlu0 %1930
        %v1932 = vpack.c.bf16 %v1895, %v1893
        %v1933 = vpack.c.bf16 %v1899, %v1897
        %v1934 = vpack.c.bf16 %v1903, %v1901
        %v1935 = vpack.c.bf16 %v1907, %v1905
        %1936 = vrot.lane.b32.xlu0 %v683, 32
        %v1937 = vpop.permute.xlu0 %1936
        %1938 = vrot.lane.b32.xlu0 %v686, 32
        %v1939 = vpop.permute.xlu0 %1938
        %1940 = vrot.lane.b32.xlu0 %v689, 32
        %v1941 = vpop.permute.xlu0 %1940
        %1942 = vrot.lane.b32.xlu0 %v692, 32
        %v1943 = vpop.permute.xlu0 %1942
        %v1949 = vsel %vm822, %v1932, 0
        %v1952 = vsel %vm822, %v1933, 0
        %v1955 = vsel %vm822, %v1934, 0
        %v1958 = vsel %vm822, %v1935, 0
        %1960 = vmatprep.subr.bf16.mxu0 0
        %1961 = vmatpush1.bf16.msra.mxu0 0
        %1962 = vmatprep.subr.bf16.mxu0 0
        %1963 = vmatpush1.bf16.msra.mxu0 0
        %1964 = vmatprep.subr.bf16.mxu0 0
        %1965 = vmatpush1.bf16.msra.mxu0 0
        %1966 = vmatprep.subr.bf16.mxu0 0
        %1967 = vmatpush1.bf16.msra.mxu0 0
        %1968 = vmatprep.subr.bf16.mxu0 0
        %1969 = vmatpush1.bf16.msra.mxu0 %v1943
        %1970 = vmatprep.subr.bf16.mxu0 0
        %1971 = vmatpush1.bf16.msra.mxu0 %v1941
        %1972 = vmatprep.subr.bf16.mxu0 0
        %1973 = vmatpush1.bf16.msra.mxu0 %v1939
        %1974 = vmatprep.subr.bf16.mxu0 0
        %1975 = vmatpush1.bf16.msra.mxu0 %v1937
        %1976 = vmatprep.subr.bf16.mxu0 0
        %1977 = vmatpush2.bf16.msra.mxu0 0
        %1978 = vmatprep.subr.bf16.mxu0 0
        %1979 = vmatpush2.bf16.msra.mxu0 0
        %1980 = vmatprep.subr.bf16.mxu0 0
        %1981 = vmatpush2.bf16.msra.mxu0 0
        %1982 = vmatprep.subr.bf16.mxu0 0
        %1983 = vmatpush2.bf16.msra.mxu0 0
        %1984 = vmatprep.subr.bf16.mxu0 0
        %1985 = vmatpush2.bf16.msra.mxu0 0
        %1986 = vmatprep.subr.bf16.mxu0 0
        %1987 = vmatpush2.bf16.msra.mxu0 0
        %1988 = vmatprep.subr.bf16.mxu0 0
        %1989 = vmatpush2.bf16.msra.mxu0 0
        %1990 = vmatprep.subr.bf16.mxu0 0
        %1991 = vmatpush2.bf16.msra.mxu0 0
        %1992 = vmatprep.mubr.bf16.mxu0 0
        %1993 = vmatmul.mubr.bf16.gmra.mxu0 %v1949
        %v1994 = vpop.f32.mrf.mxu0
        %v1995 = vadd.f32 0.0, %v1994
        %v1996 = vpop.f32.mrf.mxu0
        %v1997 = vpop.f32.mrf.mxu0
        %v1998 = vadd.f32 0.0, %v1997
        %v1999 = vpop.f32.mrf.mxu0
        %2000 = vmatprep.mubr.bf16.mxu0 0
        %2001 = vmatmul.mubr.bf16.gmra.mxu0 %v1952
        %v2002 = vpop.f32.mrf.mxu0
        %v2003 = vadd.f32 0.0, %v2002
        %v2004 = vpop.f32.mrf.mxu0
        %v2005 = vpop.f32.mrf.mxu0
        %v2006 = vadd.f32 0.0, %v2005
        %v2007 = vpop.f32.mrf.mxu0
        %2008 = vmatprep.mubr.bf16.mxu0 0
        %2009 = vmatmul.mubr.bf16.gmra.mxu0 %v1955
        %v2010 = vpop.f32.mrf.mxu0
        %v2011 = vadd.f32 0.0, %v2010
        %v2012 = vpop.f32.mrf.mxu0
        %v2013 = vpop.f32.mrf.mxu0
        %v2014 = vadd.f32 0.0, %v2013
        %v2015 = vpop.f32.mrf.mxu0
        %2016 = vmatprep.mubr.bf16.mxu0 0
        %2017 = vmatmul.mubr.bf16.gmra.mxu0 %v1958
        %v2018 = vpop.f32.mrf.mxu0
        %v2019 = vadd.f32 0.0, %v2018
        %v2020 = vpop.f32.mrf.mxu0
        %v2021 = vpop.f32.mrf.mxu0
        %v2022 = vadd.f32 0.0, %v2021
        %v2023 = vpop.f32.mrf.mxu0
        %2024 = vdwg.mxu0
        %v2025 = vrcp.pop %v1910
        %v2026 = vrcp.pop %v1913
        %v2027 = vrcp.pop %v1916
        %v2028 = vrcp.pop %v1919
        %v2029 = vrcp.pop %v1922
        %v2030 = vrcp.pop %v1925
        %v2031 = vrcp.pop %v1928
        %v2032 = vrcp.pop %v1931
        %v2033 = vmul.f32 %v1995, %v2025
        %v2034 = vmul.f32 %v1998, %v2026
        %v2035 = vmul.f32 %v2003, %v2027
        %v2036 = vmul.f32 %v2006, %v2028
        %v2037 = vmul.f32 %v2011, %v2029
        %v2038 = vmul.f32 %v2014, %v2030
        %v2039 = vmul.f32 %v2019, %v2031
        %v2040 = vmul.f32 %v2022, %v2032
        %v2041 = vpack.c.bf16 %v2034, %v2033
        %v2042 = vpack.c.bf16 %v2036, %v2035
        %v2043 = vpack.c.bf16 %v2038, %v2037
        %v2044 = vpack.c.bf16 %v2040, %v2039
        %v2049 = vunpack.c.l.b16 %v2041
        %v2050 = vunpack.c.h.b16 %v2041
        %v2051 = vunpack.c.l.b16 %v2042
        %v2052 = vunpack.c.h.b16 %v2042
        %v2053 = vunpack.c.l.b16 %v2043
        %v2054 = vunpack.c.h.b16 %v2043
        %v2055 = vunpack.c.l.b16 %v2044
        %v2056 = vunpack.c.h.b16 %v2044
        %v2057 = vpack.c.b16 %v2049, %v2049
        %v2058 = vpack.c.b16 %v2050, %v2050
        %v2059 = vpack.c.b16 %v2051, %v2051
        %v2060 = vpack.c.b16 %v2052, %v2052
        %v2061 = vpack.c.b16 %v2053, %v2053
        %v2062 = vpack.c.b16 %v2054, %v2054
        %v2063 = vpack.c.b16 %v2055, %v2055
        %v2064 = vpack.c.b16 %v2056, %v2056
        %2065 = vrot.lane.b32.xlu0 %v2057, 96
        %v2066 = vpop.permute.xlu0 %2065
        %2067 = vrot.lane.b32.xlu0 %v2058, 96
        %v2068 = vpop.permute.xlu0 %2067
        %2069 = vrot.lane.b32.xlu0 %v2059, 96
        %v2070 = vpop.permute.xlu0 %2069
        %2071 = vrot.lane.b32.xlu0 %v2060, 96
        %v2072 = vpop.permute.xlu0 %2071
        %2073 = vrot.lane.b32.xlu0 %v2061, 96
        %v2074 = vpop.permute.xlu0 %2073
        %2075 = vrot.lane.b32.xlu0 %v2062, 96
        %v2076 = vpop.permute.xlu0 %2075
        %2077 = vrot.lane.b32.xlu0 %v2063, 96
        %v2078 = vpop.permute.xlu0 %2077
        %2079 = vrot.lane.b32.xlu0 %v2064, 96
        %v2080 = vpop.permute.xlu0 %2079
        %vm2089 = vcmask 1044224
        %2090 = vst.msk [vmem:[#allocation2] sm:$0xf] %vm2089, %v2066
        %2091 = vst.msk [vmem:[#allocation2 + $0x4] sm:$0xf] %vm2089, %v2068
        %2092 = vst.msk [vmem:[#allocation2 + $0x8] sm:$0xf] %vm2089, %v2070
        %2093 = vst.msk [vmem:[#allocation2 + $0xc] sm:$0xf] %vm2089, %v2072
        %2094 = vst.msk [vmem:[#allocation2 + $0x10] sm:$0xf] %vm2089, %v2074
        %2095 = vst.msk [vmem:[#allocation2 + $0x14] sm:$0xf] %vm2089, %v2076
        %2096 = vst.msk [vmem:[#allocation2 + $0x18] sm:$0xf] %vm2089, %v2078
        %2097 = vst.msk [vmem:[#allocation2 + $0x1c] sm:$0xf] %vm2089, %v2080
        %v2099 = vsel %vm724, %v693, 0
        %v2102 = vsel %vm724, %v696, 0
        %v2105 = vsel %vm724, %v699, 0
        %v2108 = vsel %vm724, %v702, 0
        %v2111 = vsel %vm724, %v694, 0
        %v2114 = vsel %vm724, %v697, 0
        %v2117 = vsel %vm724, %v700, 0
        %v2120 = vsel %vm724, %v703, 0
        %2122 = vmatprep.subr.bf16.mxu0 0
        %2123 = vmatpush1.bf16.xpose.msra.mxu0 0
        %2124 = vmatprep.subr.bf16.mxu0 0
        %2125 = vmatpush1.bf16.xpose.msra.mxu0 0
        %2126 = vmatprep.subr.bf16.mxu0 0
        %2127 = vmatpush1.bf16.xpose.msra.mxu0 0
        %2128 = vmatprep.subr.bf16.mxu0 0
        %2129 = vmatpush1.bf16.xpose.msra.mxu0 0
        %2130 = vmatprep.subr.bf16.mxu0 0
        %2131 = vmatpush1.bf16.xpose.msra.mxu0 %v2120
        %2132 = vmatprep.subr.bf16.mxu0 0
        %2133 = vmatpush1.bf16.xpose.msra.mxu0 %v2117
        %2134 = vmatprep.subr.bf16.mxu0 0
        %2135 = vmatpush1.bf16.xpose.msra.mxu0 %v2114
        %2136 = vmatprep.subr.bf16.mxu0 0
        %2137 = vmatpush1.bf16.xpose.msra.mxu0 %v2111
        %2138 = vmatprep.subr.bf16.mxu0 0
        %2139 = vmatpush2.bf16.xpose.msra.mxu0 0
        %2140 = vmatprep.subr.bf16.mxu0 0
        %2141 = vmatpush2.bf16.xpose.msra.mxu0 0
        %2142 = vmatprep.subr.bf16.mxu0 0
        %2143 = vmatpush2.bf16.xpose.msra.mxu0 0
        %2144 = vmatprep.subr.bf16.mxu0 0
        %2145 = vmatpush2.bf16.xpose.msra.mxu0 0
        %2146 = vmatprep.subr.bf16.mxu0 0
        %2147 = vmatpush2.bf16.xpose.msra.mxu0 0
        %2148 = vmatprep.subr.bf16.mxu0 0
        %2149 = vmatpush2.bf16.xpose.msra.mxu0 0
        %2150 = vmatprep.subr.bf16.mxu0 0
        %2151 = vmatpush2.bf16.xpose.msra.mxu0 0
        %2152 = vmatprep.subr.bf16.mxu0 0
        %2153 = vmatpush2.bf16.xpose.msra.mxu0 0
        %2154 = vmatprep.mubr.bf16.mxu0 0
        %2155 = vmatmul.mubr.bf16.gmra.mxu0 %v2099
        %v2156 = vpop.f32.mrf.mxu0
        %v2157 = vadd.f32 0.0, %v2156
        %v2158 = vpop.f32.mrf.mxu0
        %v2159 = vpop.f32.mrf.mxu0
        %v2160 = vadd.f32 0.0, %v2159
        %v2161 = vpop.f32.mrf.mxu0
        %2162 = vmatprep.mubr.bf16.mxu0 0
        %2163 = vmatmul.mubr.bf16.gmra.mxu0 %v2102
        %v2164 = vpop.f32.mrf.mxu0
        %v2165 = vadd.f32 0.0, %v2164
        %v2166 = vpop.f32.mrf.mxu0
        %v2167 = vpop.f32.mrf.mxu0
        %v2168 = vadd.f32 0.0, %v2167
        %v2169 = vpop.f32.mrf.mxu0
        %2170 = vmatprep.mubr.bf16.mxu0 0
        %2171 = vmatmul.mubr.bf16.gmra.mxu0 %v2105
        %v2172 = vpop.f32.mrf.mxu0
        %v2173 = vadd.f32 0.0, %v2172
        %v2174 = vpop.f32.mrf.mxu0
        %v2175 = vpop.f32.mrf.mxu0
        %v2176 = vadd.f32 0.0, %v2175
        %v2177 = vpop.f32.mrf.mxu0
        %2178 = vmatprep.mubr.bf16.mxu0 0
        %2179 = vmatmul.mubr.bf16.gmra.mxu0 %v2108
        %v2180 = vpop.f32.mrf.mxu0
        %v2181 = vadd.f32 0.0, %v2180
        %v2182 = vpop.f32.mrf.mxu0
        %v2183 = vpop.f32.mrf.mxu0
        %v2184 = vadd.f32 0.0, %v2183
        %v2185 = vpop.f32.mrf.mxu0
        %2186 = vdwg.mxu0
        %v2187 = vsel %vm716, %v2157, -1e+30
        %v2188 = vsel %vm717, %v2160, -1e+30
        %v2189 = vsel %vm718, %v2165, -1e+30
        %v2190 = vsel %vm719, %v2168, -1e+30
        %v2191 = vsel %vm720, %v2173, -1e+30
        %v2192 = vsel %vm721, %v2176, -1e+30
        %v2193 = vsel %vm722, %v2181, -1e+30
        %v2194 = vsel %vm723, %v2184, -1e+30
        %v2195 = vsel %vm822, %v2187, -inf
        %2196 = vmax.xlane.f32.xlu0 %v2195
        %v2197 = vpop.xlane.xlu0 %2196
        %v2198 = vsel %vm822, %v2188, -inf
        %2199 = vmax.xlane.f32.xlu0 %v2198
        %v2200 = vpop.xlane.xlu0 %2199
        %v2201 = vsel %vm822, %v2189, -inf
        %2202 = vmax.xlane.f32.xlu0 %v2201
        %v2203 = vpop.xlane.xlu0 %2202
        %v2204 = vsel %vm822, %v2190, -inf
        %2205 = vmax.xlane.f32.xlu0 %v2204
        %v2206 = vpop.xlane.xlu0 %2205
        %v2207 = vsel %vm822, %v2191, -inf
        %2208 = vmax.xlane.f32.xlu0 %v2207
        %v2209 = vpop.xlane.xlu0 %2208
        %v2210 = vsel %vm822, %v2192, -inf
        %2211 = vmax.xlane.f32.xlu0 %v2210
        %v2212 = vpop.xlane.xlu0 %2211
        %v2213 = vsel %vm822, %v2193, -inf
        %2214 = vmax.xlane.f32.xlu0 %v2213
        %v2215 = vpop.xlane.xlu0 %2214
        %v2216 = vsel %vm822, %v2194, -inf
        %2217 = vmax.xlane.f32.xlu0 %v2216
        %v2218 = vpop.xlane.xlu0 %2217
        %v2219 = vsub.f32 %v2187, %v2197
        %v2220 = vsub.f32 %v2188, %v2200
        %v2221 = vsub.f32 %v2189, %v2203
        %v2222 = vsub.f32 %v2190, %v2206
        %v2223 = vsub.f32 %v2191, %v2209
        %v2224 = vsub.f32 %v2192, %v2212
        %v2225 = vsub.f32 %v2193, %v2215
        %v2226 = vsub.f32 %v2194, %v2218
        %v2227 = vmul.f32 %v2219, 1.442695
        %v2228 = vpow.pop %v2227
        %v2229 = vmul.f32 %v2220, 1.442695
        %v2230 = vpow.pop %v2229
        %v2231 = vmul.f32 %v2221, 1.442695
        %v2232 = vpow.pop %v2231
        %v2233 = vmul.f32 %v2222, 1.442695
        %v2234 = vpow.pop %v2233
        %v2235 = vmul.f32 %v2223, 1.442695
        %v2236 = vpow.pop %v2235
        %v2237 = vmul.f32 %v2224, 1.442695
        %v2238 = vpow.pop %v2237
        %v2239 = vmul.f32 %v2225, 1.442695
        %v2240 = vpow.pop %v2239
        %v2241 = vmul.f32 %v2226, 1.442695
        %v2242 = vpow.pop %v2241
        %v2243 = vsel %vm822, %v2228, 0.0
        %2244 = vadd.xlane.f32.xlu0 %v2243
        %v2245 = vpop.xlane.xlu0 %2244
        %v2246 = vsel %vm822, %v2230, 0.0
        %2247 = vadd.xlane.f32.xlu0 %v2246
        %v2248 = vpop.xlane.xlu0 %2247
        %v2249 = vsel %vm822, %v2232, 0.0
        %2250 = vadd.xlane.f32.xlu0 %v2249
        %v2251 = vpop.xlane.xlu0 %2250
        %v2252 = vsel %vm822, %v2234, 0.0
        %2253 = vadd.xlane.f32.xlu0 %v2252
        %v2254 = vpop.xlane.xlu0 %2253
        %v2255 = vsel %vm822, %v2236, 0.0
        %2256 = vadd.xlane.f32.xlu0 %v2255
        %v2257 = vpop.xlane.xlu0 %2256
        %v2258 = vsel %vm822, %v2238, 0.0
        %2259 = vadd.xlane.f32.xlu0 %v2258
        %v2260 = vpop.xlane.xlu0 %2259
        %v2261 = vsel %vm822, %v2240, 0.0
        %2262 = vadd.xlane.f32.xlu0 %v2261
        %v2263 = vpop.xlane.xlu0 %2262
        %v2264 = vsel %vm822, %v2242, 0.0
        %2265 = vadd.xlane.f32.xlu0 %v2264
        %v2266 = vpop.xlane.xlu0 %2265
        %v2267 = vpack.c.bf16 %v2230, %v2228
        %v2268 = vpack.c.bf16 %v2234, %v2232
        %v2269 = vpack.c.bf16 %v2238, %v2236
        %v2270 = vpack.c.bf16 %v2242, %v2240
        %v2272 = vsel %vm822, %v2267, 0
        %v2275 = vsel %vm822, %v2268, 0
        %v2278 = vsel %vm822, %v2269, 0
        %v2281 = vsel %vm822, %v2270, 0
        %2283 = vmatprep.subr.bf16.mxu0 0
        %2284 = vmatpush1.bf16.msra.mxu0 0
        %2285 = vmatprep.subr.bf16.mxu0 0
        %2286 = vmatpush1.bf16.msra.mxu0 0
        %2287 = vmatprep.subr.bf16.mxu0 0
        %2288 = vmatpush1.bf16.msra.mxu0 0
        %2289 = vmatprep.subr.bf16.mxu0 0
        %2290 = vmatpush1.bf16.msra.mxu0 0
        %2291 = vmatprep.subr.bf16.mxu0 0
        %2292 = vmatpush1.bf16.msra.mxu0 %v704
        %2293 = vmatprep.subr.bf16.mxu0 0
        %2294 = vmatpush1.bf16.msra.mxu0 %v701
        %2295 = vmatprep.subr.bf16.mxu0 0
        %2296 = vmatpush1.bf16.msra.mxu0 %v698
        %2297 = vmatprep.subr.bf16.mxu0 0
        %2298 = vmatpush1.bf16.msra.mxu0 %v695
        %2299 = vmatprep.subr.bf16.mxu0 0
        %2300 = vmatpush2.bf16.msra.mxu0 0
        %2301 = vmatprep.subr.bf16.mxu0 0
        %2302 = vmatpush2.bf16.msra.mxu0 0
        %2303 = vmatprep.subr.bf16.mxu0 0
        %2304 = vmatpush2.bf16.msra.mxu0 0
        %2305 = vmatprep.subr.bf16.mxu0 0
        %2306 = vmatpush2.bf16.msra.mxu0 0
        %2307 = vmatprep.subr.bf16.mxu0 0
        %2308 = vmatpush2.bf16.msra.mxu0 0
        %2309 = vmatprep.subr.bf16.mxu0 0
        %2310 = vmatpush2.bf16.msra.mxu0 0
        %2311 = vmatprep.subr.bf16.mxu0 0
        %2312 = vmatpush2.bf16.msra.mxu0 0
        %2313 = vmatprep.subr.bf16.mxu0 0
        %2314 = vmatpush2.bf16.msra.mxu0 0
        %2315 = vmatprep.mubr.bf16.mxu0 0
        %2316 = vmatmul.mubr.bf16.gmra.mxu0 %v2272
        %v2317 = vpop.f32.mrf.mxu0
        %v2318 = vadd.f32 0.0, %v2317
        %v2319 = vpop.f32.mrf.mxu0
        %v2320 = vpop.f32.mrf.mxu0
        %v2321 = vadd.f32 0.0, %v2320
        %v2322 = vpop.f32.mrf.mxu0
        %2323 = vmatprep.mubr.bf16.mxu0 0
        %2324 = vmatmul.mubr.bf16.gmra.mxu0 %v2275
        %v2325 = vpop.f32.mrf.mxu0
        %v2326 = vadd.f32 0.0, %v2325
        %v2327 = vpop.f32.mrf.mxu0
        %v2328 = vpop.f32.mrf.mxu0
        %v2329 = vadd.f32 0.0, %v2328
        %v2330 = vpop.f32.mrf.mxu0
        %2331 = vmatprep.mubr.bf16.mxu0 0
        %2332 = vmatmul.mubr.bf16.gmra.mxu0 %v2278
        %v2333 = vpop.f32.mrf.mxu0
        %v2334 = vadd.f32 0.0, %v2333
        %v2335 = vpop.f32.mrf.mxu0
        %v2336 = vpop.f32.mrf.mxu0
        %v2337 = vadd.f32 0.0, %v2336
        %v2338 = vpop.f32.mrf.mxu0
        %2339 = vmatprep.mubr.bf16.mxu0 0
        %2340 = vmatmul.mubr.bf16.gmra.mxu0 %v2281
        %v2341 = vpop.f32.mrf.mxu0
        %v2342 = vadd.f32 0.0, %v2341
        %v2343 = vpop.f32.mrf.mxu0
        %v2344 = vpop.f32.mrf.mxu0
        %v2345 = vadd.f32 0.0, %v2344
        %v2346 = vpop.f32.mrf.mxu0
        %2347 = vdwg.mxu0
        %v2348 = vrcp.pop %v2245
        %v2349 = vrcp.pop %v2248
        %v2350 = vrcp.pop %v2251
        %v2351 = vrcp.pop %v2254
        %v2352 = vrcp.pop %v2257
        %v2353 = vrcp.pop %v2260
        %v2354 = vrcp.pop %v2263
        %v2355 = vrcp.pop %v2266
        %v2356 = vmul.f32 %v2318, %v2348
        %v2357 = vmul.f32 %v2321, %v2349
        %v2358 = vmul.f32 %v2326, %v2350
        %v2359 = vmul.f32 %v2329, %v2351
        %v2360 = vmul.f32 %v2334, %v2352
        %v2361 = vmul.f32 %v2337, %v2353
        %v2362 = vmul.f32 %v2342, %v2354
        %v2363 = vmul.f32 %v2345, %v2355
        %v2364 = vpack.c.bf16 %v2357, %v2356
        %v2365 = vpack.c.bf16 %v2359, %v2358
        %v2366 = vpack.c.bf16 %v2361, %v2360
        %v2367 = vpack.c.bf16 %v2363, %v2362
        %v2372 = vunpack.c.l.b16 %v2364
        %v2373 = vunpack.c.h.b16 %v2364
        %v2374 = vunpack.c.l.b16 %v2365
        %v2375 = vunpack.c.h.b16 %v2365
        %v2376 = vunpack.c.l.b16 %v2366
        %v2377 = vunpack.c.h.b16 %v2366
        %v2378 = vunpack.c.l.b16 %v2367
        %v2379 = vunpack.c.h.b16 %v2367
        %v2380 = vpack.c.b16 %v2372, %v2372
        %v2381 = vpack.c.b16 %v2373, %v2373
        %v2382 = vpack.c.b16 %v2374, %v2374
        %v2383 = vpack.c.b16 %v2375, %v2375
        %v2384 = vpack.c.b16 %v2376, %v2376
        %v2385 = vpack.c.b16 %v2377, %v2377
        %v2386 = vpack.c.b16 %v2378, %v2378
        %v2387 = vpack.c.b16 %v2379, %v2379
        %2396 = vst.msk [vmem:[#allocation2 + $0x20] sm:$0xf] %vm1024, %v2380
        %2397 = vst.msk [vmem:[#allocation2 + $0x24] sm:$0xf] %vm1024, %v2381
        %2398 = vst.msk [vmem:[#allocation2 + $0x28] sm:$0xf] %vm1024, %v2382
        %2399 = vst.msk [vmem:[#allocation2 + $0x2c] sm:$0xf] %vm1024, %v2383
        %2400 = vst.msk [vmem:[#allocation2 + $0x30] sm:$0xf] %vm1024, %v2384
        %2401 = vst.msk [vmem:[#allocation2 + $0x34] sm:$0xf] %vm1024, %v2385
        %2402 = vst.msk [vmem:[#allocation2 + $0x38] sm:$0xf] %vm1024, %v2386
        %2403 = vst.msk [vmem:[#allocation2 + $0x3c] sm:$0xf] %vm1024, %v2387
        %2408 = vrot.lane.b32.xlu0 %v693, 96
        %v2409 = vpop.permute.xlu0 %2408
        %2410 = vrot.lane.b32.xlu0 %v696, 96
        %v2411 = vpop.permute.xlu0 %2410
        %2412 = vrot.lane.b32.xlu0 %v699, 96
        %v2413 = vpop.permute.xlu0 %2412
        %2414 = vrot.lane.b32.xlu0 %v702, 96
        %v2415 = vpop.permute.xlu0 %2414
        %2420 = vrot.lane.b32.xlu0 %v694, 96
        %v2421 = vpop.permute.xlu0 %2420
        %2422 = vrot.lane.b32.xlu0 %v697, 96
        %v2423 = vpop.permute.xlu0 %2422
        %2424 = vrot.lane.b32.xlu0 %v700, 96
        %v2425 = vpop.permute.xlu0 %2424
        %2426 = vrot.lane.b32.xlu0 %v703, 96
        %v2427 = vpop.permute.xlu0 %2426
        %v2429 = vsel %vm724, %v2409, 0
        %v2432 = vsel %vm724, %v2411, 0
        %v2435 = vsel %vm724, %v2413, 0
        %v2438 = vsel %vm724, %v2415, 0
        %v2441 = vsel %vm724, %v2421, 0
        %v2444 = vsel %vm724, %v2423, 0
        %v2447 = vsel %vm724, %v2425, 0
        %v2450 = vsel %vm724, %v2427, 0
        %2452 = vmatprep.subr.bf16.mxu0 0
        %2453 = vmatpush1.bf16.xpose.msra.mxu0 0
        %2454 = vmatprep.subr.bf16.mxu0 0
        %2455 = vmatpush1.bf16.xpose.msra.mxu0 0
        %2456 = vmatprep.subr.bf16.mxu0 0
        %2457 = vmatpush1.bf16.xpose.msra.mxu0 0
        %2458 = vmatprep.subr.bf16.mxu0 0
        %2459 = vmatpush1.bf16.xpose.msra.mxu0 0
        %2460 = vmatprep.subr.bf16.mxu0 0
        %2461 = vmatpush1.bf16.xpose.msra.mxu0 %v2450
        %2462 = vmatprep.subr.bf16.mxu0 0
        %2463 = vmatpush1.bf16.xpose.msra.mxu0 %v2447
        %2464 = vmatprep.subr.bf16.mxu0 0
        %2465 = vmatpush1.bf16.xpose.msra.mxu0 %v2444
        %2466 = vmatprep.subr.bf16.mxu0 0
        %2467 = vmatpush1.bf16.xpose.msra.mxu0 %v2441
        %2468 = vmatprep.subr.bf16.mxu0 0
        %2469 = vmatpush2.bf16.xpose.msra.mxu0 0
        %2470 = vmatprep.subr.bf16.mxu0 0
        %2471 = vmatpush2.bf16.xpose.msra.mxu0 0
        %2472 = vmatprep.subr.bf16.mxu0 0
        %2473 = vmatpush2.bf16.xpose.msra.mxu0 0
        %2474 = vmatprep.subr.bf16.mxu0 0
        %2475 = vmatpush2.bf16.xpose.msra.mxu0 0
        %2476 = vmatprep.subr.bf16.mxu0 0
        %2477 = vmatpush2.bf16.xpose.msra.mxu0 0
        %2478 = vmatprep.subr.bf16.mxu0 0
        %2479 = vmatpush2.bf16.xpose.msra.mxu0 0
        %2480 = vmatprep.subr.bf16.mxu0 0
        %2481 = vmatpush2.bf16.xpose.msra.mxu0 0
        %2482 = vmatprep.subr.bf16.mxu0 0
        %2483 = vmatpush2.bf16.xpose.msra.mxu0 0
        %2484 = vmatprep.mubr.bf16.mxu0 0
        %2485 = vmatmul.mubr.bf16.gmra.mxu0 %v2429
        %v2486 = vpop.f32.mrf.mxu0
        %v2487 = vadd.f32 0.0, %v2486
        %v2488 = vpop.f32.mrf.mxu0
        %v2489 = vpop.f32.mrf.mxu0
        %v2490 = vadd.f32 0.0, %v2489
        %v2491 = vpop.f32.mrf.mxu0
        %2492 = vmatprep.mubr.bf16.mxu0 0
        %2493 = vmatmul.mubr.bf16.gmra.mxu0 %v2432
        %v2494 = vpop.f32.mrf.mxu0
        %v2495 = vadd.f32 0.0, %v2494
        %v2496 = vpop.f32.mrf.mxu0
        %v2497 = vpop.f32.mrf.mxu0
        %v2498 = vadd.f32 0.0, %v2497
        %v2499 = vpop.f32.mrf.mxu0
        %2500 = vmatprep.mubr.bf16.mxu0 0
        %2501 = vmatmul.mubr.bf16.gmra.mxu0 %v2435
        %v2502 = vpop.f32.mrf.mxu0
        %v2503 = vadd.f32 0.0, %v2502
        %v2504 = vpop.f32.mrf.mxu0
        %v2505 = vpop.f32.mrf.mxu0
        %v2506 = vadd.f32 0.0, %v2505
        %v2507 = vpop.f32.mrf.mxu0
        %2508 = vmatprep.mubr.bf16.mxu0 0
        %2509 = vmatmul.mubr.bf16.gmra.mxu0 %v2438
        %v2510 = vpop.f32.mrf.mxu0
        %v2511 = vadd.f32 0.0, %v2510
        %v2512 = vpop.f32.mrf.mxu0
        %v2513 = vpop.f32.mrf.mxu0
        %v2514 = vadd.f32 0.0, %v2513
        %v2515 = vpop.f32.mrf.mxu0
        %2516 = vdwg.mxu0
        %v2517 = vsel %vm716, %v2487, -1e+30
        %v2518 = vsel %vm717, %v2490, -1e+30
        %v2519 = vsel %vm718, %v2495, -1e+30
        %v2520 = vsel %vm719, %v2498, -1e+30
        %v2521 = vsel %vm720, %v2503, -1e+30
        %v2522 = vsel %vm721, %v2506, -1e+30
        %v2523 = vsel %vm722, %v2511, -1e+30
        %v2524 = vsel %vm723, %v2514, -1e+30
        %v2525 = vsel %vm822, %v2517, -inf
        %2526 = vmax.xlane.f32.xlu0 %v2525
        %v2527 = vpop.xlane.xlu0 %2526
        %v2528 = vsel %vm822, %v2518, -inf
        %2529 = vmax.xlane.f32.xlu0 %v2528
        %v2530 = vpop.xlane.xlu0 %2529
        %v2531 = vsel %vm822, %v2519, -inf
        %2532 = vmax.xlane.f32.xlu0 %v2531
        %v2533 = vpop.xlane.xlu0 %2532
        %v2534 = vsel %vm822, %v2520, -inf
        %2535 = vmax.xlane.f32.xlu0 %v2534
        %v2536 = vpop.xlane.xlu0 %2535
        %v2537 = vsel %vm822, %v2521, -inf
        %2538 = vmax.xlane.f32.xlu0 %v2537
        %v2539 = vpop.xlane.xlu0 %2538
        %v2540 = vsel %vm822, %v2522, -inf
        %2541 = vmax.xlane.f32.xlu0 %v2540
        %v2542 = vpop.xlane.xlu0 %2541
        %v2543 = vsel %vm822, %v2523, -inf
        %2544 = vmax.xlane.f32.xlu0 %v2543
        %v2545 = vpop.xlane.xlu0 %2544
        %v2546 = vsel %vm822, %v2524, -inf
        %2547 = vmax.xlane.f32.xlu0 %v2546
        %v2548 = vpop.xlane.xlu0 %2547
        %v2549 = vsub.f32 %v2517, %v2527
        %v2550 = vsub.f32 %v2518, %v2530
        %v2551 = vsub.f32 %v2519, %v2533
        %v2552 = vsub.f32 %v2520, %v2536
        %v2553 = vsub.f32 %v2521, %v2539
        %v2554 = vsub.f32 %v2522, %v2542
        %v2555 = vsub.f32 %v2523, %v2545
        %v2556 = vsub.f32 %v2524, %v2548
        %v2557 = vmul.f32 %v2549, 1.442695
        %v2558 = vpow.pop %v2557
        %v2559 = vmul.f32 %v2550, 1.442695
        %v2560 = vpow.pop %v2559
        %v2561 = vmul.f32 %v2551, 1.442695
        %v2562 = vpow.pop %v2561
        %v2563 = vmul.f32 %v2552, 1.442695
        %v2564 = vpow.pop %v2563
        %v2565 = vmul.f32 %v2553, 1.442695
        %v2566 = vpow.pop %v2565
        %v2567 = vmul.f32 %v2554, 1.442695
        %v2568 = vpow.pop %v2567
        %v2569 = vmul.f32 %v2555, 1.442695
        %v2570 = vpow.pop %v2569
        %v2571 = vmul.f32 %v2556, 1.442695
        %v2572 = vpow.pop %v2571
        %v2573 = vsel %vm822, %v2558, 0.0
        %2574 = vadd.xlane.f32.xlu0 %v2573
        %v2575 = vpop.xlane.xlu0 %2574
        %v2576 = vsel %vm822, %v2560, 0.0
        %2577 = vadd.xlane.f32.xlu0 %v2576
        %v2578 = vpop.xlane.xlu0 %2577
        %v2579 = vsel %vm822, %v2562, 0.0
        %2580 = vadd.xlane.f32.xlu0 %v2579
        %v2581 = vpop.xlane.xlu0 %2580
        %v2582 = vsel %vm822, %v2564, 0.0
        %2583 = vadd.xlane.f32.xlu0 %v2582
        %v2584 = vpop.xlane.xlu0 %2583
        %v2585 = vsel %vm822, %v2566, 0.0
        %2586 = vadd.xlane.f32.xlu0 %v2585
        %v2587 = vpop.xlane.xlu0 %2586
        %v2588 = vsel %vm822, %v2568, 0.0
        %2589 = vadd.xlane.f32.xlu0 %v2588
        %v2590 = vpop.xlane.xlu0 %2589
        %v2591 = vsel %vm822, %v2570, 0.0
        %2592 = vadd.xlane.f32.xlu0 %v2591
        %v2593 = vpop.xlane.xlu0 %2592
        %v2594 = vsel %vm822, %v2572, 0.0
        %2595 = vadd.xlane.f32.xlu0 %v2594
        %v2596 = vpop.xlane.xlu0 %2595
        %v2597 = vpack.c.bf16 %v2560, %v2558
        %v2598 = vpack.c.bf16 %v2564, %v2562
        %v2599 = vpack.c.bf16 %v2568, %v2566
        %v2600 = vpack.c.bf16 %v2572, %v2570
        %2605 = vrot.lane.b32.xlu0 %v695, 96
        %v2606 = vpop.permute.xlu0 %2605
        %2607 = vrot.lane.b32.xlu0 %v698, 96
        %v2608 = vpop.permute.xlu0 %2607
        %2609 = vrot.lane.b32.xlu0 %v701, 96
        %v2610 = vpop.permute.xlu0 %2609
        %2611 = vrot.lane.b32.xlu0 %v704, 96
        %v2612 = vpop.permute.xlu0 %2611
        %v2618 = vsel %vm822, %v2597, 0
        %v2621 = vsel %vm822, %v2598, 0
        %v2624 = vsel %vm822, %v2599, 0
        %v2627 = vsel %vm822, %v2600, 0
        %2629 = vmatprep.subr.bf16.mxu0 0
        %2630 = vmatpush1.bf16.msra.mxu0 0
        %2631 = vmatprep.subr.bf16.mxu0 0
        %2632 = vmatpush1.bf16.msra.mxu0 0
        %2633 = vmatprep.subr.bf16.mxu0 0
        %2634 = vmatpush1.bf16.msra.mxu0 0
        %2635 = vmatprep.subr.bf16.mxu0 0
        %2636 = vmatpush1.bf16.msra.mxu0 0
        %2637 = vmatprep.subr.bf16.mxu0 0
        %2638 = vmatpush1.bf16.msra.mxu0 %v2612
        %2639 = vmatprep.subr.bf16.mxu0 0
        %2640 = vmatpush1.bf16.msra.mxu0 %v2610
        %2641 = vmatprep.subr.bf16.mxu0 0
        %2642 = vmatpush1.bf16.msra.mxu0 %v2608
        %2643 = vmatprep.subr.bf16.mxu0 0
        %2644 = vmatpush1.bf16.msra.mxu0 %v2606
        %2645 = vmatprep.subr.bf16.mxu0 0
        %2646 = vmatpush2.bf16.msra.mxu0 0
        %2647 = vmatprep.subr.bf16.mxu0 0
        %2648 = vmatpush2.bf16.msra.mxu0 0
        %2649 = vmatprep.subr.bf16.mxu0 0
        %2650 = vmatpush2.bf16.msra.mxu0 0
        %2651 = vmatprep.subr.bf16.mxu0 0
        %2652 = vmatpush2.bf16.msra.mxu0 0
        %2653 = vmatprep.subr.bf16.mxu0 0
        %2654 = vmatpush2.bf16.msra.mxu0 0
        %2655 = vmatprep.subr.bf16.mxu0 0
        %2656 = vmatpush2.bf16.msra.mxu0 0
        %2657 = vmatprep.subr.bf16.mxu0 0
        %2658 = vmatpush2.bf16.msra.mxu0 0
        %2659 = vmatprep.subr.bf16.mxu0 0
        %2660 = vmatpush2.bf16.msra.mxu0 0
        %2661 = vmatprep.mubr.bf16.mxu0 0
        %2662 = vmatmul.mubr.bf16.gmra.mxu0 %v2618
        %v2663 = vpop.f32.mrf.mxu0
        %v2664 = vadd.f32 0.0, %v2663
        %v2665 = vpop.f32.mrf.mxu0
        %v2666 = vpop.f32.mrf.mxu0
        %v2667 = vadd.f32 0.0, %v2666
        %v2668 = vpop.f32.mrf.mxu0
        %2669 = vmatprep.mubr.bf16.mxu0 0
        %2670 = vmatmul.mubr.bf16.gmra.mxu0 %v2621
        %v2671 = vpop.f32.mrf.mxu0
        %v2672 = vadd.f32 0.0, %v2671
        %v2673 = vpop.f32.mrf.mxu0
        %v2674 = vpop.f32.mrf.mxu0
        %v2675 = vadd.f32 0.0, %v2674
        %v2676 = vpop.f32.mrf.mxu0
        %2677 = vmatprep.mubr.bf16.mxu0 0
        %2678 = vmatmul.mubr.bf16.gmra.mxu0 %v2624
        %v2679 = vpop.f32.mrf.mxu0
        %v2680 = vadd.f32 0.0, %v2679
        %v2681 = vpop.f32.mrf.mxu0
        %v2682 = vpop.f32.mrf.mxu0
        %v2683 = vadd.f32 0.0, %v2682
        %v2684 = vpop.f32.mrf.mxu0
        %2685 = vmatprep.mubr.bf16.mxu0 0
        %2686 = vmatmul.mubr.bf16.gmra.mxu0 %v2627
        %v2687 = vpop.f32.mrf.mxu0
        %v2688 = vadd.f32 0.0, %v2687
        %v2689 = vpop.f32.mrf.mxu0
        %v2690 = vpop.f32.mrf.mxu0
        %v2691 = vadd.f32 0.0, %v2690
        %v2692 = vpop.f32.mrf.mxu0
        %2693 = vdwg.mxu0
        %v2694 = vrcp.pop %v2575
        %v2695 = vrcp.pop %v2578
        %v2696 = vrcp.pop %v2581
        %v2697 = vrcp.pop %v2584
        %v2698 = vrcp.pop %v2587
        %v2699 = vrcp.pop %v2590
        %v2700 = vrcp.pop %v2593
        %v2701 = vrcp.pop %v2596
        %v2702 = vmul.f32 %v2664, %v2694
        %v2703 = vmul.f32 %v2667, %v2695
        %v2704 = vmul.f32 %v2672, %v2696
        %v2705 = vmul.f32 %v2675, %v2697
        %v2706 = vmul.f32 %v2680, %v2698
        %v2707 = vmul.f32 %v2683, %v2699
        %v2708 = vmul.f32 %v2688, %v2700
        %v2709 = vmul.f32 %v2691, %v2701
        %v2710 = vpack.c.bf16 %v2703, %v2702
        %v2711 = vpack.c.bf16 %v2705, %v2704
        %v2712 = vpack.c.bf16 %v2707, %v2706
        %v2713 = vpack.c.bf16 %v2709, %v2708
        %v2718 = vunpack.c.l.b16 %v2710
        %v2719 = vunpack.c.h.b16 %v2710
        %v2720 = vunpack.c.l.b16 %v2711
        %v2721 = vunpack.c.h.b16 %v2711
        %v2722 = vunpack.c.l.b16 %v2712
        %v2723 = vunpack.c.h.b16 %v2712
        %v2724 = vunpack.c.l.b16 %v2713
        %v2725 = vunpack.c.h.b16 %v2713
        %v2726 = vpack.c.b16 %v2718, %v2718
        %v2727 = vpack.c.b16 %v2719, %v2719
        %v2728 = vpack.c.b16 %v2720, %v2720
        %v2729 = vpack.c.b16 %v2721, %v2721
        %v2730 = vpack.c.b16 %v2722, %v2722
        %v2731 = vpack.c.b16 %v2723, %v2723
        %v2732 = vpack.c.b16 %v2724, %v2724
        %v2733 = vpack.c.b16 %v2725, %v2725
        %2734 = vrot.lane.b32.xlu0 %v2726, 32
        %v2735 = vpop.permute.xlu0 %2734
        %2736 = vrot.lane.b32.xlu0 %v2727, 32
        %v2737 = vpop.permute.xlu0 %2736
        %2738 = vrot.lane.b32.xlu0 %v2728, 32
        %v2739 = vpop.permute.xlu0 %2738
        %2740 = vrot.lane.b32.xlu0 %v2729, 32
        %v2741 = vpop.permute.xlu0 %2740
        %2742 = vrot.lane.b32.xlu0 %v2730, 32
        %v2743 = vpop.permute.xlu0 %2742
        %2744 = vrot.lane.b32.xlu0 %v2731, 32
        %v2745 = vpop.permute.xlu0 %2744
        %2746 = vrot.lane.b32.xlu0 %v2732, 32
        %v2747 = vpop.permute.xlu0 %2746
        %2748 = vrot.lane.b32.xlu0 %v2733, 32
        %v2749 = vpop.permute.xlu0 %2748
        %2758 = vst.msk [vmem:[#allocation2 + $0x20] sm:$0xf] %vm1387, %v2735
        %2759 = vst.msk [vmem:[#allocation2 + $0x24] sm:$0xf] %vm1387, %v2737
        %2760 = vst.msk [vmem:[#allocation2 + $0x28] sm:$0xf] %vm1387, %v2739
        %2761 = vst.msk [vmem:[#allocation2 + $0x2c] sm:$0xf] %vm1387, %v2741
        %2762 = vst.msk [vmem:[#allocation2 + $0x30] sm:$0xf] %vm1387, %v2743
        %2763 = vst.msk [vmem:[#allocation2 + $0x34] sm:$0xf] %vm1387, %v2745
        %2764 = vst.msk [vmem:[#allocation2 + $0x38] sm:$0xf] %vm1387, %v2747
        %2765 = vst.msk [vmem:[#allocation2 + $0x3c] sm:$0xf] %vm1387, %v2749
        %2766 = vrot.lane.b32.xlu0 %v693, 64
        %v2767 = vpop.permute.xlu0 %2766
        %2768 = vrot.lane.b32.xlu0 %v696, 64
        %v2769 = vpop.permute.xlu0 %2768
        %2770 = vrot.lane.b32.xlu0 %v699, 64
        %v2771 = vpop.permute.xlu0 %2770
        %2772 = vrot.lane.b32.xlu0 %v702, 64
        %v2773 = vpop.permute.xlu0 %2772
        %2774 = vrot.lane.b32.xlu0 %v694, 64
        %v2775 = vpop.permute.xlu0 %2774
        %2776 = vrot.lane.b32.xlu0 %v697, 64
        %v2777 = vpop.permute.xlu0 %2776
        %2778 = vrot.lane.b32.xlu0 %v700, 64
        %v2779 = vpop.permute.xlu0 %2778
        %2780 = vrot.lane.b32.xlu0 %v703, 64
        %v2781 = vpop.permute.xlu0 %2780
        %v2783 = vsel %vm724, %v2767, 0
        %v2786 = vsel %vm724, %v2769, 0
        %v2789 = vsel %vm724, %v2771, 0
        %v2792 = vsel %vm724, %v2773, 0
        %v2795 = vsel %vm724, %v2775, 0
        %v2798 = vsel %vm724, %v2777, 0
        %v2801 = vsel %vm724, %v2779, 0
        %v2804 = vsel %vm724, %v2781, 0
        %2806 = vmatprep.subr.bf16.mxu0 0
        %2807 = vmatpush1.bf16.xpose.msra.mxu0 0
        %2808 = vmatprep.subr.bf16.mxu0 0
        %2809 = vmatpush1.bf16.xpose.msra.mxu0 0
        %2810 = vmatprep.subr.bf16.mxu0 0
        %2811 = vmatpush1.bf16.xpose.msra.mxu0 0
        %2812 = vmatprep.subr.bf16.mxu0 0
        %2813 = vmatpush1.bf16.xpose.msra.mxu0 0
        %2814 = vmatprep.subr.bf16.mxu0 0
        %2815 = vmatpush1.bf16.xpose.msra.mxu0 %v2804
        %2816 = vmatprep.subr.bf16.mxu0 0
        %2817 = vmatpush1.bf16.xpose.msra.mxu0 %v2801
        %2818 = vmatprep.subr.bf16.mxu0 0
        %2819 = vmatpush1.bf16.xpose.msra.mxu0 %v2798
        %2820 = vmatprep.subr.bf16.mxu0 0
        %2821 = vmatpush1.bf16.xpose.msra.mxu0 %v2795
        %2822 = vmatprep.subr.bf16.mxu0 0
        %2823 = vmatpush2.bf16.xpose.msra.mxu0 0
        %2824 = vmatprep.subr.bf16.mxu0 0
        %2825 = vmatpush2.bf16.xpose.msra.mxu0 0
        %2826 = vmatprep.subr.bf16.mxu0 0
        %2827 = vmatpush2.bf16.xpose.msra.mxu0 0
        %2828 = vmatprep.subr.bf16.mxu0 0
        %2829 = vmatpush2.bf16.xpose.msra.mxu0 0
        %2830 = vmatprep.subr.bf16.mxu0 0
        %2831 = vmatpush2.bf16.xpose.msra.mxu0 0
        %2832 = vmatprep.subr.bf16.mxu0 0
        %2833 = vmatpush2.bf16.xpose.msra.mxu0 0
        %2834 = vmatprep.subr.bf16.mxu0 0
        %2835 = vmatpush2.bf16.xpose.msra.mxu0 0
        %2836 = vmatprep.subr.bf16.mxu0 0
        %2837 = vmatpush2.bf16.xpose.msra.mxu0 0
        %2838 = vmatprep.mubr.bf16.mxu0 0
        %2839 = vmatmul.mubr.bf16.gmra.mxu0 %v2783
        %v2840 = vpop.f32.mrf.mxu0
        %v2841 = vadd.f32 0.0, %v2840
        %v2842 = vpop.f32.mrf.mxu0
        %v2843 = vpop.f32.mrf.mxu0
        %v2844 = vadd.f32 0.0, %v2843
        %v2845 = vpop.f32.mrf.mxu0
        %2846 = vmatprep.mubr.bf16.mxu0 0
        %2847 = vmatmul.mubr.bf16.gmra.mxu0 %v2786
        %v2848 = vpop.f32.mrf.mxu0
        %v2849 = vadd.f32 0.0, %v2848
        %v2850 = vpop.f32.mrf.mxu0
        %v2851 = vpop.f32.mrf.mxu0
        %v2852 = vadd.f32 0.0, %v2851
        %v2853 = vpop.f32.mrf.mxu0
        %2854 = vmatprep.mubr.bf16.mxu0 0
        %2855 = vmatmul.mubr.bf16.gmra.mxu0 %v2789
        %v2856 = vpop.f32.mrf.mxu0
        %v2857 = vadd.f32 0.0, %v2856
        %v2858 = vpop.f32.mrf.mxu0
        %v2859 = vpop.f32.mrf.mxu0
        %v2860 = vadd.f32 0.0, %v2859
        %v2861 = vpop.f32.mrf.mxu0
        %2862 = vmatprep.mubr.bf16.mxu0 0
        %2863 = vmatmul.mubr.bf16.gmra.mxu0 %v2792
        %v2864 = vpop.f32.mrf.mxu0
        %v2865 = vadd.f32 0.0, %v2864
        %v2866 = vpop.f32.mrf.mxu0
        %v2867 = vpop.f32.mrf.mxu0
        %v2868 = vadd.f32 0.0, %v2867
        %v2869 = vpop.f32.mrf.mxu0
        %2870 = vdwg.mxu0
        %v2871 = vsel %vm716, %v2841, -1e+30
        %v2872 = vsel %vm717, %v2844, -1e+30
        %v2873 = vsel %vm718, %v2849, -1e+30
        %v2874 = vsel %vm719, %v2852, -1e+30
        %v2875 = vsel %vm720, %v2857, -1e+30
        %v2876 = vsel %vm721, %v2860, -1e+30
        %v2877 = vsel %vm722, %v2865, -1e+30
        %v2878 = vsel %vm723, %v2868, -1e+30
        %v2879 = vsel %vm822, %v2871, -inf
        %2880 = vmax.xlane.f32.xlu0 %v2879
        %v2881 = vpop.xlane.xlu0 %2880
        %v2882 = vsel %vm822, %v2872, -inf
        %2883 = vmax.xlane.f32.xlu0 %v2882
        %v2884 = vpop.xlane.xlu0 %2883
        %v2885 = vsel %vm822, %v2873, -inf
        %2886 = vmax.xlane.f32.xlu0 %v2885
        %v2887 = vpop.xlane.xlu0 %2886
        %v2888 = vsel %vm822, %v2874, -inf
        %2889 = vmax.xlane.f32.xlu0 %v2888
        %v2890 = vpop.xlane.xlu0 %2889
        %v2891 = vsel %vm822, %v2875, -inf
        %2892 = vmax.xlane.f32.xlu0 %v2891
        %v2893 = vpop.xlane.xlu0 %2892
        %v2894 = vsel %vm822, %v2876, -inf
        %2895 = vmax.xlane.f32.xlu0 %v2894
        %v2896 = vpop.xlane.xlu0 %2895
        %v2897 = vsel %vm822, %v2877, -inf
        %2898 = vmax.xlane.f32.xlu0 %v2897
        %v2899 = vpop.xlane.xlu0 %2898
        %v2900 = vsel %vm822, %v2878, -inf
        %2901 = vmax.xlane.f32.xlu0 %v2900
        %v2902 = vpop.xlane.xlu0 %2901
        %v2903 = vsub.f32 %v2871, %v2881
        %v2904 = vsub.f32 %v2872, %v2884
        %v2905 = vsub.f32 %v2873, %v2887
        %v2906 = vsub.f32 %v2874, %v2890
        %v2907 = vsub.f32 %v2875, %v2893
        %v2908 = vsub.f32 %v2876, %v2896
        %v2909 = vsub.f32 %v2877, %v2899
        %v2910 = vsub.f32 %v2878, %v2902
        %v2911 = vmul.f32 %v2903, 1.442695
        %v2912 = vpow.pop %v2911
        %v2913 = vmul.f32 %v2904, 1.442695
        %v2914 = vpow.pop %v2913
        %v2915 = vmul.f32 %v2905, 1.442695
        %v2916 = vpow.pop %v2915
        %v2917 = vmul.f32 %v2906, 1.442695
        %v2918 = vpow.pop %v2917
        %v2919 = vmul.f32 %v2907, 1.442695
        %v2920 = vpow.pop %v2919
        %v2921 = vmul.f32 %v2908, 1.442695
        %v2922 = vpow.pop %v2921
        %v2923 = vmul.f32 %v2909, 1.442695
        %v2924 = vpow.pop %v2923
        %v2925 = vmul.f32 %v2910, 1.442695
        %v2926 = vpow.pop %v2925
        %v2927 = vsel %vm822, %v2912, 0.0
        %2928 = vadd.xlane.f32.xlu0 %v2927
        %v2929 = vpop.xlane.xlu0 %2928
        %v2930 = vsel %vm822, %v2914, 0.0
        %2931 = vadd.xlane.f32.xlu0 %v2930
        %v2932 = vpop.xlane.xlu0 %2931
        %v2933 = vsel %vm822, %v2916, 0.0
        %2934 = vadd.xlane.f32.xlu0 %v2933
        %v2935 = vpop.xlane.xlu0 %2934
        %v2936 = vsel %vm822, %v2918, 0.0
        %2937 = vadd.xlane.f32.xlu0 %v2936
        %v2938 = vpop.xlane.xlu0 %2937
        %v2939 = vsel %vm822, %v2920, 0.0
        %2940 = vadd.xlane.f32.xlu0 %v2939
        %v2941 = vpop.xlane.xlu0 %2940
        %v2942 = vsel %vm822, %v2922, 0.0
        %2943 = vadd.xlane.f32.xlu0 %v2942
        %v2944 = vpop.xlane.xlu0 %2943
        %v2945 = vsel %vm822, %v2924, 0.0
        %2946 = vadd.xlane.f32.xlu0 %v2945
        %v2947 = vpop.xlane.xlu0 %2946
        %v2948 = vsel %vm822, %v2926, 0.0
        %2949 = vadd.xlane.f32.xlu0 %v2948
        %v2950 = vpop.xlane.xlu0 %2949
        %v2951 = vpack.c.bf16 %v2914, %v2912
        %v2952 = vpack.c.bf16 %v2918, %v2916
        %v2953 = vpack.c.bf16 %v2922, %v2920
        %v2954 = vpack.c.bf16 %v2926, %v2924
        %2955 = vrot.lane.b32.xlu0 %v695, 64
        %v2956 = vpop.permute.xlu0 %2955
        %2957 = vrot.lane.b32.xlu0 %v698, 64
        %v2958 = vpop.permute.xlu0 %2957
        %2959 = vrot.lane.b32.xlu0 %v701, 64
        %v2960 = vpop.permute.xlu0 %2959
        %2961 = vrot.lane.b32.xlu0 %v704, 64
        %v2962 = vpop.permute.xlu0 %2961
        %v2968 = vsel %vm822, %v2951, 0
        %v2971 = vsel %vm822, %v2952, 0
        %v2974 = vsel %vm822, %v2953, 0
        %v2977 = vsel %vm822, %v2954, 0
        %2979 = vmatprep.subr.bf16.mxu0 0
        %2980 = vmatpush1.bf16.msra.mxu0 0
        %2981 = vmatprep.subr.bf16.mxu0 0
        %2982 = vmatpush1.bf16.msra.mxu0 0
        %2983 = vmatprep.subr.bf16.mxu0 0
        %2984 = vmatpush1.bf16.msra.mxu0 0
        %2985 = vmatprep.subr.bf16.mxu0 0
        %2986 = vmatpush1.bf16.msra.mxu0 0
        %2987 = vmatprep.subr.bf16.mxu0 0
        %2988 = vmatpush1.bf16.msra.mxu0 %v2962
        %2989 = vmatprep.subr.bf16.mxu0 0
        %2990 = vmatpush1.bf16.msra.mxu0 %v2960
        %2991 = vmatprep.subr.bf16.mxu0 0
        %2992 = vmatpush1.bf16.msra.mxu0 %v2958
        %2993 = vmatprep.subr.bf16.mxu0 0
        %2994 = vmatpush1.bf16.msra.mxu0 %v2956
        %2995 = vmatprep.subr.bf16.mxu0 0
        %2996 = vmatpush2.bf16.msra.mxu0 0
        %2997 = vmatprep.subr.bf16.mxu0 0
        %2998 = vmatpush2.bf16.msra.mxu0 0
        %2999 = vmatprep.subr.bf16.mxu0 0
        %3000 = vmatpush2.bf16.msra.mxu0 0
        %3001 = vmatprep.subr.bf16.mxu0 0
        %3002 = vmatpush2.bf16.msra.mxu0 0
        %3003 = vmatprep.subr.bf16.mxu0 0
        %3004 = vmatpush2.bf16.msra.mxu0 0
        %3005 = vmatprep.subr.bf16.mxu0 0
        %3006 = vmatpush2.bf16.msra.mxu0 0
        %3007 = vmatprep.subr.bf16.mxu0 0
        %3008 = vmatpush2.bf16.msra.mxu0 0
        %3009 = vmatprep.subr.bf16.mxu0 0
        %3010 = vmatpush2.bf16.msra.mxu0 0
        %3011 = vmatprep.mubr.bf16.mxu0 0
        %3012 = vmatmul.mubr.bf16.gmra.mxu0 %v2968
        %v3013 = vpop.f32.mrf.mxu0
        %v3014 = vadd.f32 0.0, %v3013
        %v3015 = vpop.f32.mrf.mxu0
        %v3016 = vpop.f32.mrf.mxu0
        %v3017 = vadd.f32 0.0, %v3016
        %v3018 = vpop.f32.mrf.mxu0
        %3019 = vmatprep.mubr.bf16.mxu0 0
        %3020 = vmatmul.mubr.bf16.gmra.mxu0 %v2971
        %v3021 = vpop.f32.mrf.mxu0
        %v3022 = vadd.f32 0.0, %v3021
        %v3023 = vpop.f32.mrf.mxu0
        %v3024 = vpop.f32.mrf.mxu0
        %v3025 = vadd.f32 0.0, %v3024
        %v3026 = vpop.f32.mrf.mxu0
        %3027 = vmatprep.mubr.bf16.mxu0 0
        %3028 = vmatmul.mubr.bf16.gmra.mxu0 %v2974
        %v3029 = vpop.f32.mrf.mxu0
        %v3030 = vadd.f32 0.0, %v3029
        %v3031 = vpop.f32.mrf.mxu0
        %v3032 = vpop.f32.mrf.mxu0
        %v3033 = vadd.f32 0.0, %v3032
        %v3034 = vpop.f32.mrf.mxu0
        %3035 = vmatprep.mubr.bf16.mxu0 0
        %3036 = vmatmul.mubr.bf16.gmra.mxu0 %v2977
        %v3037 = vpop.f32.mrf.mxu0
        %v3038 = vadd.f32 0.0, %v3037
        %v3039 = vpop.f32.mrf.mxu0
        %v3040 = vpop.f32.mrf.mxu0
        %v3041 = vadd.f32 0.0, %v3040
        %v3042 = vpop.f32.mrf.mxu0
        %3043 = vdwg.mxu0
        %v3044 = vrcp.pop %v2929
        %v3045 = vrcp.pop %v2932
        %v3046 = vrcp.pop %v2935
        %v3047 = vrcp.pop %v2938
        %v3048 = vrcp.pop %v2941
        %v3049 = vrcp.pop %v2944
        %v3050 = vrcp.pop %v2947
        %v3051 = vrcp.pop %v2950
        %v3052 = vmul.f32 %v3014, %v3044
        %v3053 = vmul.f32 %v3017, %v3045
        %v3054 = vmul.f32 %v3022, %v3046
        %v3055 = vmul.f32 %v3025, %v3047
        %v3056 = vmul.f32 %v3030, %v3048
        %v3057 = vmul.f32 %v3033, %v3049
        %v3058 = vmul.f32 %v3038, %v3050
        %v3059 = vmul.f32 %v3041, %v3051
        %v3060 = vpack.c.bf16 %v3053, %v3052
        %v3061 = vpack.c.bf16 %v3055, %v3054
        %v3062 = vpack.c.bf16 %v3057, %v3056
        %v3063 = vpack.c.bf16 %v3059, %v3058
        %v3068 = vunpack.c.l.b16 %v3060
        %v3069 = vunpack.c.h.b16 %v3060
        %v3070 = vunpack.c.l.b16 %v3061
        %v3071 = vunpack.c.h.b16 %v3061
        %v3072 = vunpack.c.l.b16 %v3062
        %v3073 = vunpack.c.h.b16 %v3062
        %v3074 = vunpack.c.l.b16 %v3063
        %v3075 = vunpack.c.h.b16 %v3063
        %v3076 = vpack.c.b16 %v3068, %v3068
        %v3077 = vpack.c.b16 %v3069, %v3069
        %v3078 = vpack.c.b16 %v3070, %v3070
        %v3079 = vpack.c.b16 %v3071, %v3071
        %v3080 = vpack.c.b16 %v3072, %v3072
        %v3081 = vpack.c.b16 %v3073, %v3073
        %v3082 = vpack.c.b16 %v3074, %v3074
        %v3083 = vpack.c.b16 %v3075, %v3075
        %3084 = vrot.lane.b32.xlu0 %v3076, 64
        %v3085 = vpop.permute.xlu0 %3084
        %3086 = vrot.lane.b32.xlu0 %v3077, 64
        %v3087 = vpop.permute.xlu0 %3086
        %3088 = vrot.lane.b32.xlu0 %v3078, 64
        %v3089 = vpop.permute.xlu0 %3088
        %3090 = vrot.lane.b32.xlu0 %v3079, 64
        %v3091 = vpop.permute.xlu0 %3090
        %3092 = vrot.lane.b32.xlu0 %v3080, 64
        %v3093 = vpop.permute.xlu0 %3092
        %3094 = vrot.lane.b32.xlu0 %v3081, 64
        %v3095 = vpop.permute.xlu0 %3094
        %3096 = vrot.lane.b32.xlu0 %v3082, 64
        %v3097 = vpop.permute.xlu0 %3096
        %3098 = vrot.lane.b32.xlu0 %v3083, 64
        %v3099 = vpop.permute.xlu0 %3098
        %3108 = vst.msk [vmem:[#allocation2 + $0x20] sm:$0xf] %vm1738, %v3085
        %3109 = vst.msk [vmem:[#allocation2 + $0x24] sm:$0xf] %vm1738, %v3087
        %3110 = vst.msk [vmem:[#allocation2 + $0x28] sm:$0xf] %vm1738, %v3089
        %3111 = vst.msk [vmem:[#allocation2 + $0x2c] sm:$0xf] %vm1738, %v3091
        %3112 = vst.msk [vmem:[#allocation2 + $0x30] sm:$0xf] %vm1738, %v3093
        %3113 = vst.msk [vmem:[#allocation2 + $0x34] sm:$0xf] %vm1738, %v3095
        %3114 = vst.msk [vmem:[#allocation2 + $0x38] sm:$0xf] %vm1738, %v3097
        %3115 = vst.msk [vmem:[#allocation2 + $0x3c] sm:$0xf] %vm1738, %v3099
        %3116 = vrot.lane.b32.xlu0 %v693, 32
        %v3117 = vpop.permute.xlu0 %3116
        %3118 = vrot.lane.b32.xlu0 %v696, 32
        %v3119 = vpop.permute.xlu0 %3118
        %3120 = vrot.lane.b32.xlu0 %v699, 32
        %v3121 = vpop.permute.xlu0 %3120
        %3122 = vrot.lane.b32.xlu0 %v702, 32
        %v3123 = vpop.permute.xlu0 %3122
        %3124 = vrot.lane.b32.xlu0 %v694, 32
        %v3125 = vpop.permute.xlu0 %3124
        %3126 = vrot.lane.b32.xlu0 %v697, 32
        %v3127 = vpop.permute.xlu0 %3126
        %3128 = vrot.lane.b32.xlu0 %v700, 32
        %v3129 = vpop.permute.xlu0 %3128
        %3130 = vrot.lane.b32.xlu0 %v703, 32
        %v3131 = vpop.permute.xlu0 %3130
        %v3133 = vsel %vm724, %v3117, 0
        %v3136 = vsel %vm724, %v3119, 0
        %v3139 = vsel %vm724, %v3121, 0
        %v3142 = vsel %vm724, %v3123, 0
        %v3145 = vsel %vm724, %v3125, 0
        %v3148 = vsel %vm724, %v3127, 0
        %v3151 = vsel %vm724, %v3129, 0
        %v3154 = vsel %vm724, %v3131, 0
        %3156 = vmatprep.subr.bf16.mxu0 0
        %3157 = vmatpush1.bf16.xpose.msra.mxu0 0
        %3158 = vmatprep.subr.bf16.mxu0 0
        %3159 = vmatpush1.bf16.xpose.msra.mxu0 0
        %3160 = vmatprep.subr.bf16.mxu0 0
        %3161 = vmatpush1.bf16.xpose.msra.mxu0 0
        %3162 = vmatprep.subr.bf16.mxu0 0
        %3163 = vmatpush1.bf16.xpose.msra.mxu0 0
        %3164 = vmatprep.subr.bf16.mxu0 0
        %3165 = vmatpush1.bf16.xpose.msra.mxu0 %v3154
        %3166 = vmatprep.subr.bf16.mxu0 0
        %3167 = vmatpush1.bf16.xpose.msra.mxu0 %v3151
        %3168 = vmatprep.subr.bf16.mxu0 0
        %3169 = vmatpush1.bf16.xpose.msra.mxu0 %v3148
        %3170 = vmatprep.subr.bf16.mxu0 0
        %3171 = vmatpush1.bf16.xpose.msra.mxu0 %v3145
        %3172 = vmatprep.subr.bf16.mxu0 0
        %3173 = vmatpush2.bf16.xpose.msra.mxu0 0
        %3174 = vmatprep.subr.bf16.mxu0 0
        %3175 = vmatpush2.bf16.xpose.msra.mxu0 0
        %3176 = vmatprep.subr.bf16.mxu0 0
        %3177 = vmatpush2.bf16.xpose.msra.mxu0 0
        %3178 = vmatprep.subr.bf16.mxu0 0
        %3179 = vmatpush2.bf16.xpose.msra.mxu0 0
        %3180 = vmatprep.subr.bf16.mxu0 0
        %3181 = vmatpush2.bf16.xpose.msra.mxu0 0
        %3182 = vmatprep.subr.bf16.mxu0 0
        %3183 = vmatpush2.bf16.xpose.msra.mxu0 0
        %3184 = vmatprep.subr.bf16.mxu0 0
        %3185 = vmatpush2.bf16.xpose.msra.mxu0 0
        %3186 = vmatprep.subr.bf16.mxu0 0
        %3187 = vmatpush2.bf16.xpose.msra.mxu0 0
        %3188 = vmatprep.mubr.bf16.mxu0 0
        %3189 = vmatmul.mubr.bf16.gmra.mxu0 %v3133
        %v3190 = vpop.f32.mrf.mxu0
        %v3191 = vadd.f32 0.0, %v3190
        %v3192 = vpop.f32.mrf.mxu0
        %v3193 = vpop.f32.mrf.mxu0
        %v3194 = vadd.f32 0.0, %v3193
        %v3195 = vpop.f32.mrf.mxu0
        %3196 = vmatprep.mubr.bf16.mxu0 0
        %3197 = vmatmul.mubr.bf16.gmra.mxu0 %v3136
        %v3198 = vpop.f32.mrf.mxu0
        %v3199 = vadd.f32 0.0, %v3198
        %v3200 = vpop.f32.mrf.mxu0
        %v3201 = vpop.f32.mrf.mxu0
        %v3202 = vadd.f32 0.0, %v3201
        %v3203 = vpop.f32.mrf.mxu0
        %3204 = vmatprep.mubr.bf16.mxu0 0
        %3205 = vmatmul.mubr.bf16.gmra.mxu0 %v3139
        %v3206 = vpop.f32.mrf.mxu0
        %v3207 = vadd.f32 0.0, %v3206
        %v3208 = vpop.f32.mrf.mxu0
        %v3209 = vpop.f32.mrf.mxu0
        %v3210 = vadd.f32 0.0, %v3209
        %v3211 = vpop.f32.mrf.mxu0
        %3212 = vmatprep.mubr.bf16.mxu0 0
        %3213 = vmatmul.mubr.bf16.gmra.mxu0 %v3142
        %v3214 = vpop.f32.mrf.mxu0
        %v3215 = vadd.f32 0.0, %v3214
        %v3216 = vpop.f32.mrf.mxu0
        %v3217 = vpop.f32.mrf.mxu0
        %v3218 = vadd.f32 0.0, %v3217
        %v3219 = vpop.f32.mrf.mxu0
        %3220 = vdwg.mxu0
        %v3221 = vsel %vm716, %v3191, -1e+30
        %v3222 = vsel %vm717, %v3194, -1e+30
        %v3223 = vsel %vm718, %v3199, -1e+30
        %v3224 = vsel %vm719, %v3202, -1e+30
        %v3225 = vsel %vm720, %v3207, -1e+30
        %v3226 = vsel %vm721, %v3210, -1e+30
        %v3227 = vsel %vm722, %v3215, -1e+30
        %v3228 = vsel %vm723, %v3218, -1e+30
        %v3229 = vsel %vm822, %v3221, -inf
        %3230 = vmax.xlane.f32.xlu0 %v3229
        %v3231 = vpop.xlane.xlu0 %3230
        %v3232 = vsel %vm822, %v3222, -inf
        %3233 = vmax.xlane.f32.xlu0 %v3232
        %v3234 = vpop.xlane.xlu0 %3233
        %v3235 = vsel %vm822, %v3223, -inf
        %3236 = vmax.xlane.f32.xlu0 %v3235
        %v3237 = vpop.xlane.xlu0 %3236
        %v3238 = vsel %vm822, %v3224, -inf
        %3239 = vmax.xlane.f32.xlu0 %v3238
        %v3240 = vpop.xlane.xlu0 %3239
        %v3241 = vsel %vm822, %v3225, -inf
        %3242 = vmax.xlane.f32.xlu0 %v3241
        %v3243 = vpop.xlane.xlu0 %3242
        %v3244 = vsel %vm822, %v3226, -inf
        %3245 = vmax.xlane.f32.xlu0 %v3244
        %v3246 = vpop.xlane.xlu0 %3245
        %v3247 = vsel %vm822, %v3227, -inf
        %3248 = vmax.xlane.f32.xlu0 %v3247
        %v3249 = vpop.xlane.xlu0 %3248
        %v3250 = vsel %vm822, %v3228, -inf
        %3251 = vmax.xlane.f32.xlu0 %v3250
        %v3252 = vpop.xlane.xlu0 %3251
        %v3253 = vsub.f32 %v3221, %v3231
        %v3254 = vsub.f32 %v3222, %v3234
        %v3255 = vsub.f32 %v3223, %v3237
        %v3256 = vsub.f32 %v3224, %v3240
        %v3257 = vsub.f32 %v3225, %v3243
        %v3258 = vsub.f32 %v3226, %v3246
        %v3259 = vsub.f32 %v3227, %v3249
        %v3260 = vsub.f32 %v3228, %v3252
        %v3261 = vmul.f32 %v3253, 1.442695
        %v3262 = vpow.pop %v3261
        %v3263 = vmul.f32 %v3254, 1.442695
        %v3264 = vpow.pop %v3263
        %v3265 = vmul.f32 %v3255, 1.442695
        %v3266 = vpow.pop %v3265
        %v3267 = vmul.f32 %v3256, 1.442695
        %v3268 = vpow.pop %v3267
        %v3269 = vmul.f32 %v3257, 1.442695
        %v3270 = vpow.pop %v3269
        %v3271 = vmul.f32 %v3258, 1.442695
        %v3272 = vpow.pop %v3271
        %v3273 = vmul.f32 %v3259, 1.442695
        %v3274 = vpow.pop %v3273
        %v3275 = vmul.f32 %v3260, 1.442695
        %v3276 = vpow.pop %v3275
        %v3277 = vsel %vm822, %v3262, 0.0
        %3278 = vadd.xlane.f32.xlu0 %v3277
        %v3279 = vpop.xlane.xlu0 %3278
        %v3280 = vsel %vm822, %v3264, 0.0
        %3281 = vadd.xlane.f32.xlu0 %v3280
        %v3282 = vpop.xlane.xlu0 %3281
        %v3283 = vsel %vm822, %v3266, 0.0
        %3284 = vadd.xlane.f32.xlu0 %v3283
        %v3285 = vpop.xlane.xlu0 %3284
        %v3286 = vsel %vm822, %v3268, 0.0
        %3287 = vadd.xlane.f32.xlu0 %v3286
        %v3288 = vpop.xlane.xlu0 %3287
        %v3289 = vsel %vm822, %v3270, 0.0
        %3290 = vadd.xlane.f32.xlu0 %v3289
        %v3291 = vpop.xlane.xlu0 %3290
        %v3292 = vsel %vm822, %v3272, 0.0
        %3293 = vadd.xlane.f32.xlu0 %v3292
        %v3294 = vpop.xlane.xlu0 %3293
        %v3295 = vsel %vm822, %v3274, 0.0
        %3296 = vadd.xlane.f32.xlu0 %v3295
        %v3297 = vpop.xlane.xlu0 %3296
        %v3298 = vsel %vm822, %v3276, 0.0
        %3299 = vadd.xlane.f32.xlu0 %v3298
        %v3300 = vpop.xlane.xlu0 %3299
        %v3301 = vpack.c.bf16 %v3264, %v3262
        %v3302 = vpack.c.bf16 %v3268, %v3266
        %v3303 = vpack.c.bf16 %v3272, %v3270
        %v3304 = vpack.c.bf16 %v3276, %v3274
        %3305 = vrot.lane.b32.xlu0 %v695, 32
        %v3306 = vpop.permute.xlu0 %3305
        %3307 = vrot.lane.b32.xlu0 %v698, 32
        %v3308 = vpop.permute.xlu0 %3307
        %3309 = vrot.lane.b32.xlu0 %v701, 32
        %v3310 = vpop.permute.xlu0 %3309
        %3311 = vrot.lane.b32.xlu0 %v704, 32
        %v3312 = vpop.permute.xlu0 %3311
        %v3318 = vsel %vm822, %v3301, 0
        %v3321 = vsel %vm822, %v3302, 0
        %v3324 = vsel %vm822, %v3303, 0
        %v3327 = vsel %vm822, %v3304, 0
        %3329 = vmatprep.subr.bf16.mxu0 0
        %3330 = vmatpush1.bf16.msra.mxu0 0
        %3331 = vmatprep.subr.bf16.mxu0 0
        %3332 = vmatpush1.bf16.msra.mxu0 0
        %3333 = vmatprep.subr.bf16.mxu0 0
        %3334 = vmatpush1.bf16.msra.mxu0 0
        %3335 = vmatprep.subr.bf16.mxu0 0
        %3336 = vmatpush1.bf16.msra.mxu0 0
        %3337 = vmatprep.subr.bf16.mxu0 0
        %3338 = vmatpush1.bf16.msra.mxu0 %v3312
        %3339 = vmatprep.subr.bf16.mxu0 0
        %3340 = vmatpush1.bf16.msra.mxu0 %v3310
        %3341 = vmatprep.subr.bf16.mxu0 0
        %3342 = vmatpush1.bf16.msra.mxu0 %v3308
        %3343 = vmatprep.subr.bf16.mxu0 0
        %3344 = vmatpush1.bf16.msra.mxu0 %v3306
        %3345 = vmatprep.subr.bf16.mxu0 0
        %3346 = vmatpush2.bf16.msra.mxu0 0
        %3347 = vmatprep.subr.bf16.mxu0 0
        %3348 = vmatpush2.bf16.msra.mxu0 0
        %3349 = vmatprep.subr.bf16.mxu0 0
        %3350 = vmatpush2.bf16.msra.mxu0 0
        %3351 = vmatprep.subr.bf16.mxu0 0
        %3352 = vmatpush2.bf16.msra.mxu0 0
        %3353 = vmatprep.subr.bf16.mxu0 0
        %3354 = vmatpush2.bf16.msra.mxu0 0
        %3355 = vmatprep.subr.bf16.mxu0 0
        %3356 = vmatpush2.bf16.msra.mxu0 0
        %3357 = vmatprep.subr.bf16.mxu0 0
        %3358 = vmatpush2.bf16.msra.mxu0 0
        %3359 = vmatprep.subr.bf16.mxu0 0
        %3360 = vmatpush2.bf16.msra.mxu0 0
        %3361 = vmatprep.mubr.bf16.mxu0 0
        %3362 = vmatmul.mubr.bf16.gmra.mxu0 %v3318
        %v3363 = vpop.f32.mrf.mxu0
        %v3364 = vadd.f32 0.0, %v3363
        %v3365 = vpop.f32.mrf.mxu0
        %v3366 = vpop.f32.mrf.mxu0
        %v3367 = vadd.f32 0.0, %v3366
        %v3368 = vpop.f32.mrf.mxu0
        %3369 = vmatprep.mubr.bf16.mxu0 0
        %3370 = vmatmul.mubr.bf16.gmra.mxu0 %v3321
        %v3371 = vpop.f32.mrf.mxu0
        %v3372 = vadd.f32 0.0, %v3371
        %v3373 = vpop.f32.mrf.mxu0
        %v3374 = vpop.f32.mrf.mxu0
        %v3375 = vadd.f32 0.0, %v3374
        %v3376 = vpop.f32.mrf.mxu0
        %3377 = vmatprep.mubr.bf16.mxu0 0
        %3378 = vmatmul.mubr.bf16.gmra.mxu0 %v3324
        %v3379 = vpop.f32.mrf.mxu0
        %v3380 = vadd.f32 0.0, %v3379
        %v3381 = vpop.f32.mrf.mxu0
        %v3382 = vpop.f32.mrf.mxu0
        %v3383 = vadd.f32 0.0, %v3382
        %v3384 = vpop.f32.mrf.mxu0
        %3385 = vmatprep.mubr.bf16.mxu0 0
        %3386 = vmatmul.mubr.bf16.gmra.mxu0 %v3327
        %v3387 = vpop.f32.mrf.mxu0
        %v3388 = vadd.f32 0.0, %v3387
        %v3389 = vpop.f32.mrf.mxu0
        %v3390 = vpop.f32.mrf.mxu0
        %v3391 = vadd.f32 0.0, %v3390
        %v3392 = vpop.f32.mrf.mxu0
        %3393 = vdwg.mxu0
        %v3394 = vrcp.pop %v3279
        %v3395 = vrcp.pop %v3282
        %v3396 = vrcp.pop %v3285
        %v3397 = vrcp.pop %v3288
        %v3398 = vrcp.pop %v3291
        %v3399 = vrcp.pop %v3294
        %v3400 = vrcp.pop %v3297
        %v3401 = vrcp.pop %v3300
        %v3402 = vmul.f32 %v3364, %v3394
        %v3403 = vmul.f32 %v3367, %v3395
        %v3404 = vmul.f32 %v3372, %v3396
        %v3405 = vmul.f32 %v3375, %v3397
        %v3406 = vmul.f32 %v3380, %v3398
        %v3407 = vmul.f32 %v3383, %v3399
        %v3408 = vmul.f32 %v3388, %v3400
        %v3409 = vmul.f32 %v3391, %v3401
        %v3410 = vpack.c.bf16 %v3403, %v3402
        %v3411 = vpack.c.bf16 %v3405, %v3404
        %v3412 = vpack.c.bf16 %v3407, %v3406
        %v3413 = vpack.c.bf16 %v3409, %v3408
        %v3418 = vunpack.c.l.b16 %v3410
        %v3419 = vunpack.c.h.b16 %v3410
        %v3420 = vunpack.c.l.b16 %v3411
        %v3421 = vunpack.c.h.b16 %v3411
        %v3422 = vunpack.c.l.b16 %v3412
        %v3423 = vunpack.c.h.b16 %v3412
        %v3424 = vunpack.c.l.b16 %v3413
        %v3425 = vunpack.c.h.b16 %v3413
        %v3426 = vpack.c.b16 %v3418, %v3418
        %v3427 = vpack.c.b16 %v3419, %v3419
        %v3428 = vpack.c.b16 %v3420, %v3420
        %v3429 = vpack.c.b16 %v3421, %v3421
        %v3430 = vpack.c.b16 %v3422, %v3422
        %v3431 = vpack.c.b16 %v3423, %v3423
        %v3432 = vpack.c.b16 %v3424, %v3424
        %v3433 = vpack.c.b16 %v3425, %v3425
        %3434 = vrot.lane.b32.xlu0 %v3426, 96
        %v3435 = vpop.permute.xlu0 %3434
        %3436 = vrot.lane.b32.xlu0 %v3427, 96
        %v3437 = vpop.permute.xlu0 %3436
        %3438 = vrot.lane.b32.xlu0 %v3428, 96
        %v3439 = vpop.permute.xlu0 %3438
        %3440 = vrot.lane.b32.xlu0 %v3429, 96
        %v3441 = vpop.permute.xlu0 %3440
        %3442 = vrot.lane.b32.xlu0 %v3430, 96
        %v3443 = vpop.permute.xlu0 %3442
        %3444 = vrot.lane.b32.xlu0 %v3431, 96
        %v3445 = vpop.permute.xlu0 %3444
        %3446 = vrot.lane.b32.xlu0 %v3432, 96
        %v3447 = vpop.permute.xlu0 %3446
        %3448 = vrot.lane.b32.xlu0 %v3433, 96
        %v3449 = vpop.permute.xlu0 %3448
        %3458 = vst.msk [vmem:[#allocation2 + $0x20] sm:$0xf] %vm2089, %v3435
        %3459 = vst.msk [vmem:[#allocation2 + $0x24] sm:$0xf] %vm2089, %v3437
        %3460 = vst.msk [vmem:[#allocation2 + $0x28] sm:$0xf] %vm2089, %v3439
        %3461 = vst.msk [vmem:[#allocation2 + $0x2c] sm:$0xf] %vm2089, %v3441
        %3462 = vst.msk [vmem:[#allocation2 + $0x30] sm:$0xf] %vm2089, %v3443
        %3463 = vst.msk [vmem:[#allocation2 + $0x34] sm:$0xf] %vm2089, %v3445
        %3464 = vst.msk [vmem:[#allocation2 + $0x38] sm:$0xf] %vm2089, %v3447
        %3465 = vst.msk [vmem:[#allocation2 + $0x3c] sm:$0xf] %vm2089, %v3449
        %v3466 = vld [vmem:[#allocation2] sm:$0xf]
        %v3467 = vld [vmem:[#allocation2 + $0x4] sm:$0xf]
        %v3468 = vld [vmem:[#allocation2 + $0x8] sm:$0xf]
        %v3469 = vld [vmem:[#allocation2 + $0xc] sm:$0xf]
        %v3470 = vld [vmem:[#allocation2 + $0x10] sm:$0xf]
        %v3471 = vld [vmem:[#allocation2 + $0x14] sm:$0xf]
        %v3472 = vld [vmem:[#allocation2 + $0x18] sm:$0xf]
        %v3473 = vld [vmem:[#allocation2 + $0x1c] sm:$0xf]
        %v3474 = vld [vmem:[#allocation2 + $0x20] sm:$0xf]
        %v3475 = vld [vmem:[#allocation2 + $0x24] sm:$0xf]
        %v3476 = vld [vmem:[#allocation2 + $0x28] sm:$0xf]
        %v3477 = vld [vmem:[#allocation2 + $0x2c] sm:$0xf]
        %v3478 = vld [vmem:[#allocation2 + $0x30] sm:$0xf]
        %v3479 = vld [vmem:[#allocation2 + $0x34] sm:$0xf]
        %v3480 = vld [vmem:[#allocation2 + $0x38] sm:$0xf]
        %v3481 = vld [vmem:[#allocation2 + $0x3c] sm:$0xf]
        %v3482 = vld [vmem:[%s3] sm:$0xf]
        %v3483 = vld [vmem:[%s3 + $0x4] sm:$0xf]
        %v3484 = vld [vmem:[%s3 + $0x8] sm:$0xf]
        %v3485 = vld [vmem:[%s3 + $0xc] sm:$0xf]
        %v3486 = vld [vmem:[%s3 + $0x10] sm:$0xf]
        %v3487 = vld [vmem:[%s3 + $0x14] sm:$0xf]
        %v3488 = vld [vmem:[%s3 + $0x18] sm:$0xf]
        %v3489 = vld [vmem:[%s3 + $0x1c] sm:$0xf]
        %v3490 = vld [vmem:[%s3 + $0x20] sm:$0xf]
        %v3491 = vld [vmem:[%s3 + $0x24] sm:$0xf]
        %v3492 = vld [vmem:[%s3 + $0x28] sm:$0xf]
        %v3493 = vld [vmem:[%s3 + $0x2c] sm:$0xf]
        %v3494 = vld [vmem:[%s3 + $0x30] sm:$0xf]
        %v3495 = vld [vmem:[%s3 + $0x34] sm:$0xf]
        %v3496 = vld [vmem:[%s3 + $0x38] sm:$0xf]
        %v3497 = vld [vmem:[%s3 + $0x3c] sm:$0xf]
        %v3498 = vld [vmem:[%s4] sm:$0x1]
        %v3500 = vlaneseq
        %v3501 = vshrl.u32 %v3500, 7
        %v3502 = vsub.s32 0, %v3501
        %v3503 = vrot.slane %v3498, %v3502
        %v3521 = vunpack.c.l.b16 %v3466
        %v3522 = vunpack.c.l.b16 %v3467
        %v3523 = vunpack.c.l.b16 %v3468
        %v3524 = vunpack.c.l.b16 %v3469
        %v3525 = vunpack.c.l.b16 %v3470
        %v3526 = vunpack.c.l.b16 %v3471
        %v3527 = vunpack.c.l.b16 %v3472
        %v3528 = vunpack.c.l.b16 %v3473
        %v3529 = vunpack.c.l.b16 %v3474
        %v3530 = vunpack.c.l.b16 %v3475
        %v3531 = vunpack.c.l.b16 %v3476
        %v3532 = vunpack.c.l.b16 %v3477
        %v3533 = vunpack.c.l.b16 %v3478
        %v3534 = vunpack.c.l.b16 %v3479
        %v3535 = vunpack.c.l.b16 %v3480
        %v3536 = vunpack.c.l.b16 %v3481
        %v3537 = vpack.c.b16 %v3522, %v3521
        %v3538 = vpack.c.b16 %v3524, %v3523
        %v3539 = vpack.c.b16 %v3526, %v3525
        %v3540 = vpack.c.b16 %v3528, %v3527
        %v3541 = vpack.c.b16 %v3530, %v3529
        %v3542 = vpack.c.b16 %v3532, %v3531
        %v3543 = vpack.c.b16 %v3534, %v3533
        %v3544 = vpack.c.b16 %v3536, %v3535
        %v3569 = vunpack.c.l.b16 %v3482
        %v3570 = vunpack.c.l.b16 %v3483
        %v3571 = vunpack.c.l.b16 %v3484
        %v3572 = vunpack.c.l.b16 %v3485
        %v3573 = vunpack.c.l.b16 %v3486
        %v3574 = vunpack.c.l.b16 %v3487
        %v3575 = vunpack.c.l.b16 %v3488
        %v3576 = vunpack.c.l.b16 %v3489
        %v3577 = vunpack.c.l.b16 %v3490
        %v3578 = vunpack.c.l.b16 %v3491
        %v3579 = vunpack.c.l.b16 %v3492
        %v3580 = vunpack.c.l.b16 %v3493
        %v3581 = vunpack.c.l.b16 %v3494
        %v3582 = vunpack.c.l.b16 %v3495
        %v3583 = vunpack.c.l.b16 %v3496
        %v3584 = vunpack.c.l.b16 %v3497
        %v3585 = vpack.c.b16 %v3570, %v3569
        %v3586 = vpack.c.b16 %v3572, %v3571
        %v3587 = vpack.c.b16 %v3574, %v3573
        %v3588 = vpack.c.b16 %v3576, %v3575
        %v3589 = vpack.c.b16 %v3578, %v3577
        %v3590 = vpack.c.b16 %v3580, %v3579
        %v3591 = vpack.c.b16 %v3582, %v3581
        %v3592 = vpack.c.b16 %v3584, %v3583
        %3601 = vmatprep.subr.bf16.mxu0 0
        %3602 = vmatpush1.bf16.msra.mxu0 %v3592
        %3603 = vmatprep.subr.bf16.mxu0 0
        %3604 = vmatpush1.bf16.msra.mxu0 %v3591
        %3605 = vmatprep.subr.bf16.mxu0 0
        %3606 = vmatpush1.bf16.msra.mxu0 %v3590
        %3607 = vmatprep.subr.bf16.mxu0 0
        %3608 = vmatpush1.bf16.msra.mxu0 %v3589
        %3609 = vmatprep.subr.bf16.mxu0 0
        %3610 = vmatpush1.bf16.msra.mxu0 %v3588
        %3611 = vmatprep.subr.bf16.mxu0 0
        %3612 = vmatpush1.bf16.msra.mxu0 %v3587
        %3613 = vmatprep.subr.bf16.mxu0 0
        %3614 = vmatpush1.bf16.msra.mxu0 %v3586
        %3615 = vmatprep.subr.bf16.mxu0 0
        %3616 = vmatpush1.bf16.msra.mxu0 %v3585
        %3617 = vmatprep.subr.bf16.mxu0 0
        %3618 = vmatpush2.bf16.msra.mxu0 0
        %3619 = vmatprep.subr.bf16.mxu0 0
        %3620 = vmatpush2.bf16.msra.mxu0 0
        %3621 = vmatprep.subr.bf16.mxu0 0
        %3622 = vmatpush2.bf16.msra.mxu0 0
        %3623 = vmatprep.subr.bf16.mxu0 0
        %3624 = vmatpush2.bf16.msra.mxu0 0
        %3625 = vmatprep.subr.bf16.mxu0 0
        %3626 = vmatpush2.bf16.msra.mxu0 0
        %3627 = vmatprep.subr.bf16.mxu0 0
        %3628 = vmatpush2.bf16.msra.mxu0 0
        %3629 = vmatprep.subr.bf16.mxu0 0
        %3630 = vmatpush2.bf16.msra.mxu0 0
        %3631 = vmatprep.subr.bf16.mxu0 0
        %3632 = vmatpush2.bf16.msra.mxu0 0
        %3633 = vmatprep.mubr.bf16.mxu0 0
        %3634 = vmatmul.mubr.bf16.gmra.mxu0 %v3537
        %v3635 = vpop.f32.mrf.mxu0
        %v3636 = vadd.f32 %v3503, %v3635
        %v3637 = vpop.f32.mrf.mxu0
        %v3638 = vpop.f32.mrf.mxu0
        %v3639 = vadd.f32 %v3503, %v3638
        %v3640 = vpop.f32.mrf.mxu0
        %3641 = vmatprep.mubr.bf16.mxu0 0
        %3642 = vmatmul.mubr.bf16.gmra.mxu0 %v3538
        %v3643 = vpop.f32.mrf.mxu0
        %v3644 = vadd.f32 %v3503, %v3643
        %v3645 = vpop.f32.mrf.mxu0
        %v3646 = vpop.f32.mrf.mxu0
        %v3647 = vadd.f32 %v3503, %v3646
        %v3648 = vpop.f32.mrf.mxu0
        %3649 = vmatprep.mubr.bf16.mxu0 0
        %3650 = vmatmul.mubr.bf16.gmra.mxu0 %v3539
        %v3651 = vpop.f32.mrf.mxu0
        %v3652 = vadd.f32 %v3503, %v3651
        %v3653 = vpop.f32.mrf.mxu0
        %v3654 = vpop.f32.mrf.mxu0
        %v3655 = vadd.f32 %v3503, %v3654
        %v3656 = vpop.f32.mrf.mxu0
        %3657 = vmatprep.mubr.bf16.mxu0 0
        %3658 = vmatmul.mubr.bf16.gmra.mxu0 %v3540
        %v3659 = vpop.f32.mrf.mxu0
        %v3660 = vadd.f32 %v3503, %v3659
        %v3661 = vpop.f32.mrf.mxu0
        %v3662 = vpop.f32.mrf.mxu0
        %v3663 = vadd.f32 %v3503, %v3662
        %v3664 = vpop.f32.mrf.mxu0
        %3665 = vmatprep.mubr.bf16.mxu0 0
        %3666 = vmatmul.mubr.bf16.gmra.mxu0 %v3541
        %v3667 = vpop.f32.mrf.mxu0
        %v3668 = vadd.f32 %v3503, %v3667
        %v3669 = vpop.f32.mrf.mxu0
        %v3670 = vpop.f32.mrf.mxu0
        %v3671 = vadd.f32 %v3503, %v3670
        %v3672 = vpop.f32.mrf.mxu0
        %3673 = vmatprep.mubr.bf16.mxu0 0
        %3674 = vmatmul.mubr.bf16.gmra.mxu0 %v3542
        %v3675 = vpop.f32.mrf.mxu0
        %v3676 = vadd.f32 %v3503, %v3675
        %v3677 = vpop.f32.mrf.mxu0
        %v3678 = vpop.f32.mrf.mxu0
        %v3679 = vadd.f32 %v3503, %v3678
        %v3680 = vpop.f32.mrf.mxu0
        %3681 = vmatprep.mubr.bf16.mxu0 0
        %3682 = vmatmul.mubr.bf16.gmra.mxu0 %v3543
        %v3683 = vpop.f32.mrf.mxu0
        %v3684 = vadd.f32 %v3503, %v3683
        %v3685 = vpop.f32.mrf.mxu0
        %v3686 = vpop.f32.mrf.mxu0
        %v3687 = vadd.f32 %v3503, %v3686
        %v3688 = vpop.f32.mrf.mxu0
        %3689 = vmatprep.mubr.bf16.mxu0 0
        %3690 = vmatmul.mubr.bf16.gmra.mxu0 %v3544
        %v3691 = vpop.f32.mrf.mxu0
        %v3692 = vadd.f32 %v3503, %v3691
        %v3693 = vpop.f32.mrf.mxu0
        %v3694 = vpop.f32.mrf.mxu0
        %v3695 = vadd.f32 %v3503, %v3694
        %v3696 = vpop.f32.mrf.mxu0
        %3697 = vdwg.mxu0
        %3698 = vst [vmem:[%s220] sm:$0xff] %v3636
        %3699 = vst [vmem:[%s220 + $0x8] sm:$0xff] %v3639
        %3700 = vst [vmem:[%s220 + $0x10] sm:$0xff] %v3644
        %3701 = vst [vmem:[%s220 + $0x18] sm:$0xff] %v3647
        %3702 = vst [vmem:[%s220 + $0x20] sm:$0xff] %v3652
        %3703 = vst [vmem:[%s220 + $0x28] sm:$0xff] %v3655
        %3704 = vst [vmem:[%s220 + $0x30] sm:$0xff] %v3660
        %3705 = vst [vmem:[%s220 + $0x38] sm:$0xff] %v3663
        %3706 = vst [vmem:[%s220 + $0x40] sm:$0xff] %v3668
        %3707 = vst [vmem:[%s220 + $0x48] sm:$0xff] %v3671
        %3708 = vst [vmem:[%s220 + $0x50] sm:$0xff] %v3676
        %3709 = vst [vmem:[%s220 + $0x58] sm:$0xff] %v3679
        %3710 = vst [vmem:[%s220 + $0x60] sm:$0xff] %v3684
        %3711 = vst [vmem:[%s220 + $0x68] sm:$0xff] %v3687
        %3712 = vst [vmem:[%s220 + $0x70] sm:$0xff] %v3692
        %3713 = vst [vmem:[%s220 + $0x78] sm:$0xff] %v3695
        %s3714 = sand.u32 %s137, 1
        %s3715 = scalar_lea.sflag [#allocation4], %s3714
        %s3716 = sand.u32 %s137, 1
        %s3717 = smul.addr %s3716, 128
        %s3718 = scalar_lea.vmem [#allocation3], %s3717
        // Predicated region
        $region41: #{causal_self_attention.1} parent=39 // pred_check
          %p3719 = pneg %p147
        $region42: #{causal_self_attention.1} parent=39 // pred_check_branch
          %3721 = sbr.rel (%p3719) target = $region44
        $region43: #{causal_self_attention.1} parent=39 // pred_region
          %s3722 = smul.u32 2, %s19
          %s3724 = ssub.s32 2048, 2048
          %3725 = vsyncadd %s3715, %s3724
          %s3726 = smul.addr %s3722, 8
          %s3727 = smul.addr %s3726, 128
          %s3728 = scalar_lea.hbm %s5, %s3727
          %s3729 = sshll.u32 %s3718, 4
          %s3730 = int_to_ptr.vmem [resolvable:$true] %s3729
          %3735 = dma.vmem_to_hbm [thread:$0]  %s3730, 2048, %s3728, %s3715, 128, 128, 8
        $region44: #{causal_self_attention.1} parent=39 // pred_fallthru
          _
      $region40: #{causal_self_attention.1} parent=5 // pred_fallthru
        _
      %p3736 = scmp.le.s32.totalorder 2, %s14
      // Predicated region
      $region45: #{causal_self_attention.1} parent=5 // pred_check
        %p3737 = pneg %p3736
      $region46: #{causal_self_attention.1} parent=5 // pred_check_branch
        %3739 = sbr.rel (%p3737) target = $region48
      $region47: #{causal_self_attention.1} parent=5 // pred_region
        %s3740 = ssub.s32 %s14, 2
        // Predicated region
        $region49: #{causal_self_attention.1} parent=47 // pred_check
          %p3741 = pneg %p153
        $region50: #{causal_self_attention.1} parent=47 // pred_check_branch
          %3743 = sbr.rel (%p3741) target = $region52
        $region51: #{causal_self_attention.1} parent=47 // pred_region
          %s3744 = sand.u32 %s138, 1
          %s3745 = scalar_lea.sflag [#allocation4], %s3744
          %s3746 = sand.u32 %s138, 1
          %s3747 = smul.addr %s3746, 128
          %s3748 = scalar_lea.vmem [#allocation3], %s3747
          %3749 = dma.done %s3745, 2048
        $region52: #{causal_self_attention.1} parent=47 // pred_fallthru
          _
      $region48: #{causal_self_attention.1} parent=5 // pred_fallthru
        _
    $region6: #{causal_self_attention.1} parent=1 // loop_footer
      %s18 = sadd.s32 1, %s14
    $region7: #{causal_self_attention.1} parent=1 // loop_footer_branch
      %13 = sbr.rel target = $region3
    $region8: #{causal_self_attention.1} parent=1 // loop_exit
      _
    %3750 = vsyncpa [#allocation4], 1
    %s3751 = scalar_lea.sflag [#allocation4], 1
    %3752 = vsyncpa %s3751, 1

</llo_original>
